<compile_context>
chip_gen: v6e
topology: v6e:2x2x1
jax: 0.10.0
libtpu: 0.0.40
codegen_flags: <defaults>
</compile_context>

<pallas_src>
import math
import functools

import jax
import jax.numpy as jnp
from jax.experimental import pallas as pl
from jax.experimental.pallas import tpu as pltpu


def _sdpa_kernel(q_ref, k_ref, v_ref, out_ref, attn_ref, s_ref, *, inv_sqrt_dk):
    """One grid step: G heads x one TQ-row query tile, full key length S.

    Block shapes:
      q_ref    : (G, TQ, D)
      k_ref    : (G, S,  D)   (single-buffered, resident across query tiles)
      v_ref    : (G, S,  D)   (single-buffered, resident across query tiles)
      out_ref  : (G, TQ, D)
      attn_ref : (G, TQ, S)   (lane-dense; dominant HBM traffic)
      s_ref    : (G, TQ, S)   f32 scratch — scores / exp computed in place.
    """
    # Fold 1/sqrt(d_k) into the small Q tile (cheaper than scaling (G,TQ,S) scores).
    q = q_ref[...] * inv_sqrt_dk

    # scores = Q @ K^T, batched over G, contracting the last dim of both operands.
    # No explicit transpose of K: the MXU consumes the transposed-RHS form natively.
    s_ref[...] = jax.lax.dot_general(
        q, k_ref[...],
        dimension_numbers=(((2,), (2,)), ((0,), (0,))),
        preferred_element_type=jnp.float32,
    )

    # Numerically stable softmax along the key axis, in place in the f32 scratch.
    m = jnp.max(s_ref[...], axis=-1, keepdims=True)
    s_ref[...] = jnp.exp(s_ref[...] - m)
    denom = jnp.sum(s_ref[...], axis=-1, keepdims=True)
    # Exact divide: returned p_attn rows sum to 1; the divide is hidden under the
    # HBM writeback of p_attn (memory-bound kernel).
    p = s_ref[...] / denom
    attn_ref[...] = p.astype(attn_ref.dtype)

    # context = p_attn @ V, batched over G.
    ctx = jax.lax.dot_general(
        p.astype(v_ref.dtype), v_ref[...],
        dimension_numbers=(((2,), (1,)), ((0,), (0,))),
        preferred_element_type=jnp.float32,
    )
    out_ref[...] = ctx.astype(out_ref.dtype)


def _vmem_config():
    """Return (working-set budget, scoped vmem limit) for the current TPU generation."""
    vmem_phys = None
    try:
        info = pltpu.get_tpu_info()
        vmem_phys = getattr(info, "vmem_capacity_bytes", None)
    except Exception:
        vmem_phys = None
    if vmem_phys is None:
        # Conservative fallback: assume the smallest (v7x-sized, 64 MiB) VMEM.
        vmem_phys = 64 * 1024 * 1024
    if vmem_phys >= 96 * 1024 * 1024:
        # v5e / v6e: 128 MiB physical -> use most of it, keep compiler headroom.
        return 64 * 1024 * 1024, 100 * 1024 * 1024
    # v7x: 64 MiB physical per TensorCore -> leave headroom for Mosaic internal
    # scratch / pipeline buffers (do NOT set the limit to the full 64 MiB).
    return 28 * 1024 * 1024, 56 * 1024 * 1024


def _pick_tiles(bh, s, d, in_isz, out_isz, attn_isz, budget):
    """Pick (G heads per step, TQ query rows per step) under the VMEM budget.

    Preference: maximize TQ first (the kernel is p_attn-writeback-bound, so bigger
    blocks are the primary lever), then take as many heads as still fit, preferring
    an even number of head-groups so the v7x megacore split lands on the group axis.
    """
    tq_cands = [t for t in (1024, 512, 256, 128, 64, 32, 16, 8)
                if t <= s and s % t == 0] or [s]
    g_cands = [g for g in (8, 4, 2, 1) if bh % g == 0]

    def footprint(g, tq):
        f32 = 4
        scores_slab = g * tq * s * f32            # explicit f32 scratch (scores/exp)
        temp_slab = g * tq * s * f32              # one in-flight f32 temporary
        q_blk = 2 * g * tq * d * in_isz           # double-buffered Q
        kv_blk = 2 * (g * s * d * in_isz)         # K + V, single-buffered
        out_blk = 2 * g * tq * d * out_isz        # double-buffered context
        attn_blk = 2 * g * tq * s * attn_isz      # double-buffered p_attn
        return scores_slab + temp_slab + q_blk + kv_blk + out_blk + attn_blk

    for tq in tq_cands:                           # biggest query tile first
        feasible = [g for g in g_cands if footprint(g, tq) <= budget]
        if feasible:
            for g in feasible:                    # prefer even n_groups (v7x megacore)
                if (bh // g) % 2 == 0:
                    return g, tq
            return feasible[0], tq
    # TODO(synk): for extremely long S even the minimal tile may exceed VMEM; that
    # would need a key-axis (flash-style) pass, but p_attn must still be materialized
    # so the O(S^2) HBM writeback remains regardless.
    return 1, tq_cands[-1]


def scaled_dot_product_attention(Q, K, V, attn_mask=None, d_k=None, scale=None,
                                 *, block_g=None, block_tq=None, attn_dtype=None):
    """Pallas equivalent of Scaled_Dot_Product_Attention.forward.

    Q, K, V : (B, H, S, d_k) arrays.
    attn_mask, scale : accepted for API parity; they never affect the returned
        values in the original PyTorch forward, so they are unused here.
    attn_dtype : optional dtype for the returned p_attn (e.g. jnp.bfloat16 to halve
        the dominant HBM writeback). Default: same dtype as Q (original semantics).
    Returns (output, p_attn) with shapes (B, H, S, d_k) and (B, H, S, S).
    """
    B, H, S, D = Q.shape
    if d_k is None:
        d_k = D
    BH = B * H

    out_dtype = Q.dtype
    attn_out_dtype = jnp.dtype(attn_dtype) if attn_dtype is not None else jnp.dtype(Q.dtype)

    budget, vmem_limit = _vmem_config()
    g, tq = _pick_tiles(BH, S, D,
                        jnp.dtype(Q.dtype).itemsize,
                        jnp.dtype(out_dtype).itemsize,
                        attn_out_dtype.itemsize,
                        budget)
    if block_g is not None and BH % block_g == 0:
        g = block_g
    if block_tq is not None and S % block_tq == 0:
        tq = block_tq

    n_groups = BH // g
    n_qtiles = S // tq

    q = Q.reshape(BH, S, D)
    k = K.reshape(BH, S, D)
    v = V.reshape(BH, S, D)

    kernel = functools.partial(_sdpa_kernel, inv_sqrt_dk=1.0 / math.sqrt(d_k))

    flops = 4 * BH * S * S * D          # two batched matmuls, 2 flops per MAC each
    transcendentals = BH * S * S        # exp
    bytes_accessed = (3 * BH * S * D * jnp.dtype(Q.dtype).itemsize
                      + BH * S * D * jnp.dtype(out_dtype).itemsize
                      + BH * S * S * attn_out_dtype.itemsize)

    out, p_attn = pl.pallas_call(
        kernel,
        out_shape=(
            jax.ShapeDtypeStruct((BH, S, D), out_dtype),
            jax.ShapeDtypeStruct((BH, S, S), attn_out_dtype),
        ),
        grid_spec=pltpu.PrefetchScalarGridSpec(
            num_scalar_prefetch=0,
            grid=(n_groups, n_qtiles),
            in_specs=[
                # Q tile: double-buffered.
                pl.BlockSpec((g, tq, D), lambda i, j: (i, j, 0)),
                # K, V: constant block index over the inner query-tile axis ->
                # resident across j; single-buffer them to reclaim VMEM for bigger TQ.
                pl.BlockSpec((g, S, D), lambda i, j: (i, 0, 0),
                             pipeline_mode=pl.Buffered(1)),
                pl.BlockSpec((g, S, D), lambda i, j: (i, 0, 0),
                             pipeline_mode=pl.Buffered(1)),
            ],
            out_specs=[
                pl.BlockSpec((g, tq, D), lambda i, j: (i, j, 0)),   # context
                pl.BlockSpec((g, tq, S), lambda i, j: (i, j, 0)),   # p_attn (lane-dense)
            ],
            scratch_shapes=[pltpu.VMEM((g, tq, S), jnp.float32)],   # scores / exp slab
        ),
        compiler_params=pltpu.CompilerParams(
            # Both axes are independent -> v7x shards them across its 2 TensorCores
            # (n_groups preferred even so the split lands on the group axis).
            dimension_semantics=("parallel", "parallel"),
            vmem_limit_bytes=vmem_limit,
        ),
        cost_estimate=pl.CostEstimate(
            flops=flops,
            transcendentals=transcendentals,
            bytes_accessed=bytes_accessed,
        ),
    )(q, k, v)

    return out.reshape(B, H, S, D), p_attn.reshape(B, H, S, S)


def _reference(Q, K, V, d_k):
    scores = jnp.einsum("bhqd,bhkd->bhqk", Q, K) / math.sqrt(d_k)
    p = jax.nn.softmax(scores, axis=-1)
    return jnp.einsum("bhqk,bhkd->bhqd", p, V), p


if __name__ == "__main__":
    # Small 4-D (B, H, S, d_k) attention input.
    B, H, S, D = 2, 4, 256, 32
    key = jax.random.PRNGKey(0)
    kq, kk, kv = jax.random.split(key, 3)
    Q = jax.random.normal(kq, (B, H, S, D), dtype=jnp.float32)
    K = jax.random.normal(kk, (B, H, S, D), dtype=jnp.float32)
    V = jax.random.normal(kv, (B, H, S, D), dtype=jnp.float32)

    # Force a 2x2 grid (2 head-groups x 2 query tiles) so both grid axes, the
    # single-buffered resident K/V blocks, and all index maps are exercised even
    # at these small shapes.
    out, p_attn = scaled_dot_product_attention(
        Q, K, V, attn_mask=None, d_k=D, block_g=4, block_tq=128)
    out = jax.block_until_ready(out)
    p_attn = jax.block_until_ready(p_attn)

    ref_out, ref_p = _reference(Q, K, V, D)
    assert out.shape == (B, H, S, D) and p_attn.shape == (B, H, S, S)
    assert jnp.allclose(p_attn, ref_p, atol=2e-3, rtol=2e-3), \
        float(jnp.max(jnp.abs(p_attn - ref_p)))
    assert jnp.allclose(out, ref_out, atol=2e-3, rtol=2e-3), \
        float(jnp.max(jnp.abs(out - ref_out)))

    print("KERNEL_OK")
</pallas_src>

<mosaic_0001>
module attributes {stable_mosaic.version = 11 : i64} {
  func.func @_sdpa_kernel(%arg0: i32, %arg1: i32, %arg2: memref<4x128x32xf32, #tpu.memory_space<vmem>>, %arg3: memref<4x256x32xf32, #tpu.memory_space<vmem>>, %arg4: memref<4x256x32xf32, #tpu.memory_space<vmem>>, %arg5: memref<4x128x32xf32, #tpu.memory_space<vmem>>, %arg6: memref<4x128x256xf32, #tpu.memory_space<vmem>>, %arg7: memref<4x128x256xf32, #tpu.memory_space<vmem>>) attributes {dimension_semantics = [#tpu.dimension_semantics<parallel>, #tpu.dimension_semantics<parallel>], iteration_bounds = array<i64: 2, 2>, scalar_prefetch = 0 : i64, scratch_operands = 1 : i64, tpu.core_type = #tpu.core_type<tc>, window_params = [{transform_indices = @transform_0, window_bounds = array<i64: 4, 128, 32>}, {pipeline_mode = #tpu.pipeline_mode<synchronous>, transform_indices = @transform_1, window_bounds = array<i64: 4, 256, 32>}, {pipeline_mode = #tpu.pipeline_mode<synchronous>, transform_indices = @transform_2, window_bounds = array<i64: 4, 256, 32>}, {transform_indices = @transform_3, window_bounds = array<i64: 4, 128, 32>}, {transform_indices = @transform_4, window_bounds = array<i64: 4, 128, 256>}]} {
    %c0 = arith.constant 0 : index
    %c0_0 = arith.constant 0 : index
    %c0_1 = arith.constant 0 : index
    %0 = vector.load %arg2[%c0, %c0_0, %c0_1] : memref<4x128x32xf32, #tpu.memory_space<vmem>>, vector<4x128x32xf32>
    %cst = arith.constant 0.176776692 : f32
    %1 = vector.broadcast %cst : f32 to vector<4x128x32xf32>
    %2 = arith.mulf %0, %1 : vector<4x128x32xf32>
    %c0_2 = arith.constant 0 : index
    %c0_3 = arith.constant 0 : index
    %c0_4 = arith.constant 0 : index
    %3 = vector.load %arg3[%c0_2, %c0_3, %c0_4] : memref<4x256x32xf32, #tpu.memory_space<vmem>>, vector<4x256x32xf32>
    %cst_5 = arith.constant dense<0.000000e+00> : vector<4x128x256xf32>
    %4 = tpu.matmul %2, %3, %cst_5 {dimension_numbers = #tpu.dot_dimension_numbers<[2], [2], [1], [1], [0, 0, 0, 1, 1, 1], [0], [0]>} : vector<4x128x32xf32>, vector<4x256x32xf32>, vector<4x128x256xf32> -> vector<4x128x256xf32>
    %c0_6 = arith.constant 0 : index
    %c0_7 = arith.constant 0 : index
    %c0_8 = arith.constant 0 : index
    %5 = vector.load %arg7[%c0_6, %c0_7, %c0_8] : memref<4x128x256xf32, #tpu.memory_space<vmem>>, vector<4x128x256xf32>
    tpu.vector_store %arg7[%c0_6, %c0_7, %c0_8], %4 {strides = array<i32>} : memref<4x128x256xf32, #tpu.memory_space<vmem>>, vector<4x128x256xf32>,
    %c0_9 = arith.constant 0 : index
    %c0_10 = arith.constant 0 : index
    %c0_11 = arith.constant 0 : index
    %6 = vector.load %arg7[%c0_9, %c0_10, %c0_11] : memref<4x128x256xf32, #tpu.memory_space<vmem>>, vector<4x128x256xf32>
    %cst_12 = arith.constant dense<0xFF800000> : vector<4x128xf32>
    %7 = vector.multi_reduction <maximumf>, %6, %cst_12 [2] : vector<4x128x256xf32> to vector<4x128xf32>
    %8 = vector.shape_cast %7 : vector<4x128xf32> to vector<4x128x1xf32>
    %c0_13 = arith.constant 0 : index
    %c0_14 = arith.constant 0 : index
    %c0_15 = arith.constant 0 : index
    %9 = vector.load %arg7[%c0_13, %c0_14, %c0_15] : memref<4x128x256xf32, #tpu.memory_space<vmem>>, vector<4x128x256xf32>
    %10 = vector.broadcast %8 : vector<4x128x1xf32> to vector<4x128x256xf32>
    %11 = arith.subf %9, %10 : vector<4x128x256xf32>
    %12 = math.exp %11 : vector<4x128x256xf32>
    %c0_16 = arith.constant 0 : index
    %c0_17 = arith.constant 0 : index
    %c0_18 = arith.constant 0 : index
    %13 = vector.load %arg7[%c0_16, %c0_17, %c0_18] : memref<4x128x256xf32, #tpu.memory_space<vmem>>, vector<4x128x256xf32>
    tpu.vector_store %arg7[%c0_16, %c0_17, %c0_18], %12 {strides = array<i32>} : memref<4x128x256xf32, #tpu.memory_space<vmem>>, vector<4x128x256xf32>,
    %c0_19 = arith.constant 0 : index
    %c0_20 = arith.constant 0 : index
    %c0_21 = arith.constant 0 : index
    %14 = vector.load %arg7[%c0_19, %c0_20, %c0_21] : memref<4x128x256xf32, #tpu.memory_space<vmem>>, vector<4x128x256xf32>
    %cst_22 = arith.constant dense<0.000000e+00> : vector<4x128xf32>
    %15 = vector.multi_reduction <add>, %14, %cst_22 [2] : vector<4x128x256xf32> to vector<4x128xf32>
    %16 = vector.shape_cast %15 : vector<4x128xf32> to vector<4x128x1xf32>
    %c0_23 = arith.constant 0 : index
    %c0_24 = arith.constant 0 : index
    %c0_25 = arith.constant 0 : index
    %17 = vector.load %arg7[%c0_23, %c0_24, %c0_25] : memref<4x128x256xf32, #tpu.memory_space<vmem>>, vector<4x128x256xf32>
    %18 = vector.broadcast %16 : vector<4x128x1xf32> to vector<4x128x256xf32>
    %19 = arith.divf %17, %18 : vector<4x128x256xf32>
    %c0_26 = arith.constant 0 : index
    %c0_27 = arith.constant 0 : index
    %c0_28 = arith.constant 0 : index
    %20 = vector.load %arg6[%c0_26, %c0_27, %c0_28] : memref<4x128x256xf32, #tpu.memory_space<vmem>>, vector<4x128x256xf32>
    tpu.vector_store %arg6[%c0_26, %c0_27, %c0_28], %19 {strides = array<i32>} : memref<4x128x256xf32, #tpu.memory_space<vmem>>, vector<4x128x256xf32>,
    %c0_29 = arith.constant 0 : index
    %c0_30 = arith.constant 0 : index
    %c0_31 = arith.constant 0 : index
    %21 = vector.load %arg4[%c0_29, %c0_30, %c0_31] : memref<4x256x32xf32, #tpu.memory_space<vmem>>, vector<4x256x32xf32>
    %cst_32 = arith.constant dense<0.000000e+00> : vector<4x128x32xf32>
    %22 = tpu.matmul %19, %21, %cst_32 {dimension_numbers = #tpu.dot_dimension_numbers<[2], [1], [1], [2], [0, 0, 0, 1, 1, 2], [0], [0]>} : vector<4x128x256xf32>, vector<4x256x32xf32>, vector<4x128x32xf32> -> vector<4x128x32xf32>
    %c0_33 = arith.constant 0 : index
    %c0_34 = arith.constant 0 : index
    %c0_35 = arith.constant 0 : index
    %23 = vector.load %arg5[%c0_33, %c0_34, %c0_35] : memref<4x128x32xf32, #tpu.memory_space<vmem>>, vector<4x128x32xf32>
    tpu.vector_store %arg5[%c0_33, %c0_34, %c0_35], %22 {strides = array<i32>} : memref<4x128x32xf32, #tpu.memory_space<vmem>>, vector<4x128x32xf32>,
    return
  }
  func.func @transform_0(%arg0: i32, %arg1: i32) -> (i32, i32, i32) {
    %c0_i32 = arith.constant 0 : i32
    %c0_i32_0 = arith.constant 0 : i32
    return %arg0, %arg1, %c0_i32 : i32, i32, i32
  }
  func.func @transform_1(%arg0: i32, %arg1: i32) -> (i32, i32, i32) {
    %c0_i32 = arith.constant 0 : i32
    %c0_i32_0 = arith.constant 0 : i32
    %c0_i32_1 = arith.constant 0 : i32
    return %arg0, %c0_i32, %c0_i32_0 : i32, i32, i32
  }
  func.func @transform_2(%arg0: i32, %arg1: i32) -> (i32, i32, i32) {
    %c0_i32 = arith.constant 0 : i32
    %c0_i32_0 = arith.constant 0 : i32
    %c0_i32_1 = arith.constant 0 : i32
    return %arg0, %c0_i32, %c0_i32_0 : i32, i32, i32
  }
  func.func @transform_3(%arg0: i32, %arg1: i32) -> (i32, i32, i32) {
    %c0_i32 = arith.constant 0 : i32
    %c0_i32_0 = arith.constant 0 : i32
    return %arg0, %arg1, %c0_i32 : i32, i32, i32
  }
  func.func @transform_4(%arg0: i32, %arg1: i32) -> (i32, i32, i32) {
    %c0_i32 = arith.constant 0 : i32
    %c0_i32_0 = arith.constant 0 : i32
    return %arg0, %arg1, %c0_i32 : i32, i32, i32
  }
}

</mosaic_0001>

<llo_original>
// kernel: tpu_custom_call.1
$region0: #{tpu_custom_call.1}
  #allocation0 [shape = 'u32[]', space=smem, size = 0x4, offset = 0x4, fixed_abs, tag = 'smem constant byte address 0x4 - core index']
  #allocation1 [shape = 'u32[144,128]{1,0:T(1,128)}', space=vmem, size = 0x12000, scoped, tag = 'internal scratch']
  #allocation2 [shape = 'f32[4,128,256]{2,1,0:T(8,128)}', space=vmem, size = 0x80000, scoped, tag = 'scratch operand']
  #allocation7 [shape = 's32[]', space=sflag, size = 0x4, offset = 0, fixed_abs, tag = 'sflag constant byte address 0x0 - dummy sync flag']
  %s0 = inlined_call_operand.vmem [shape: f32[8,256,32], index: 0, kind: input, shape index: {}]
  %s1 = inlined_call_operand.vmem [shape: f32[8,256,32], index: 1, kind: input, shape index: {}]
  %s2 = inlined_call_operand.vmem [shape: f32[8,256,32], index: 2, kind: input, shape index: {}]
  %s3 = inlined_call_operand.vmem [shape: f32[8,256,32], index: 3, kind: output, shape index: {0}]
  %s4 = inlined_call_operand.hbm [shape: f32[8,256,256], index: 4, kind: output, shape index: {1}]
  %5 = xla_tuple %s3, %s4
  %s6 = sld [smem:[#allocation0]]
  $region125: #{tpu_custom_call.1} parent=0
    _
  %s8 = ssub.s32 1, %s6
  %s9 = scalar_select 0, %s8, %s6
  $region1: #{tpu_custom_call.1} parent=0
    #allocation3 [shape = 'u8[524288]{0}', space=vmem, size = 0x80000, scoped, tag = 'input window, operand 0']
    #allocation4 [shape = 'u8[524288]{0}', space=vmem, size = 0x80000, scoped, tag = 'output window, operand 0']
    #allocation5 [shape = 'u8[1048576]{0}', space=vmem, size = 0x100000, scoped, tag = 'output window, operand 1']
    #allocation6 [shape = 's32[2]{0}', space=sflag, size = 0x8, scoped, tag = 'scoped memory for tpu_custom_call.1']
    %10 = vsyncpa [#allocation6], 0
    %s11 = scalar_lea.sflag [#allocation6], 1
    %12 = vsyncpa %s11, 0
    loop: start=0, step=1, limit=6
    $region2: #{tpu_custom_call.1} parent=1 // loop_pre_header
      _
    $region3: #{tpu_custom_call.1} parent=1 // loop_header
      %s14 = sphi 0, %s18
      %p15 = scmp.ge.s32.totalorder %s14, 6
      %s21 = sphi 0, %s33
      %s22 = sphi 0, %s29
      %s23 = sphi 0, %s21
      %s24 = sphi 0, %s22
      %s25 = sphi 0, %s23
      %s26 = sphi 0, %s24
      %s38 = sphi 0, %s40
      %s41 = sphi 0, %s38
      %s42 = sphi 0, %s41
      %s58 = sphi 0, %s42
      %s64 = sphi 0, %s66
      %s67 = sphi 0, %s64
      %s68 = sphi 0, %s67
      %s84 = sphi 0, %s68
      %s90 = sphi 0, %s92
      %s93 = sphi 0, %s90
      %s94 = sphi 0, %s93
      %s110 = sphi 0, %s94
      %s118 = sphi 0, %s120
      %s121 = sphi 0, %s118
      %s122 = sphi 0, %s121
      %s138 = sphi 0, %s122
      %s146 = sphi 0, %s148
      %s149 = sphi 0, %s146
      %s150 = sphi 0, %s149
      %s166 = sphi 0, %s150
    $region4: #{tpu_custom_call.1} parent=1 // loop_header_branch
      %17 = sbr.rel (%p15) target = $region8
    $region5: #{tpu_custom_call.1} parent=1 // loop_body
      %s19 = ssub.s32 %s14, 1
      %s20 = ssub.s32 %s14, 2
      %s27 = sadd.s32 1, %s22
      %p28 = scmp.ge.s32.totalorder %s27, 2
      %s29 = scalar_select %p28, 0, %s27
      %s30 = sadd.s32 1, %s21
      %s31 = scalar_select %p28, %s30, %s21
      %p32 = scmp.ge.s32.totalorder %s31, 2
      %s33 = scalar_select %p32, 0, %s31
      %s34 = ssub.s32 %s21, %s33
      %s35 = ssub.s32 %s22, %s29
      %s36 = sor.u32 %s34, %s35
      %p37 = scmp.eq.s32.totalorder %s36, 0
      %s39 = sadd.s32 %s38, 1
      %s40 = scalar_select %p37, %s38, %s39
      %p43 = pneg %p37
      %p44 = scmp.eq.s32.totalorder %s14, 3
      %p45 = por %p43, %p44
      %p46 = scmp.ne.s32.totalorder %s38, %s41
      %p47 = scmp.eq.s32.totalorder %s14, 0
      %p48 = por %p46, %p47
      %p49 = scmp.ne.s32.totalorder %s38, %s41
      %p50 = scmp.eq.s32.totalorder %s19, 3
      %p51 = por %p49, %p50
      %p52 = scmp.ne.s32.totalorder %s41, %s42
      %p53 = scmp.eq.s32.totalorder %s19, 0
      %p54 = por %p52, %p53
      %p55 = scmp.ne.s32.totalorder %s41, %s42
      %p56 = scmp.eq.s32.totalorder %s20, 3
      %p57 = por %p55, %p56
      %p59 = scmp.ne.s32.totalorder %s42, %s58
      %p60 = scmp.eq.s32.totalorder %s20, 0
      %p61 = por %p59, %p60
      %s62 = ssub.s32 %s21, %s33
      %p63 = scmp.eq.s32.totalorder %s62, 0
      %s65 = sadd.s32 %s64, 1
      %s66 = scalar_select %p63, %s64, %s65
      %p69 = pneg %p63
      %p70 = scmp.eq.s32.totalorder %s14, 3
      %p71 = por %p69, %p70
      %p72 = scmp.ne.s32.totalorder %s64, %s67
      %p73 = scmp.eq.s32.totalorder %s14, 0
      %p74 = por %p72, %p73
      %p75 = scmp.ne.s32.totalorder %s64, %s67
      %p76 = scmp.eq.s32.totalorder %s19, 3
      %p77 = por %p75, %p76
      %p78 = scmp.ne.s32.totalorder %s67, %s68
      %p79 = scmp.eq.s32.totalorder %s19, 0
      %p80 = por %p78, %p79
      %p81 = scmp.ne.s32.totalorder %s67, %s68
      %p82 = scmp.eq.s32.totalorder %s20, 3
      %p83 = por %p81, %p82
      %p85 = scmp.ne.s32.totalorder %s68, %s84
      %p86 = scmp.eq.s32.totalorder %s20, 0
      %p87 = por %p85, %p86
      %s88 = ssub.s32 %s21, %s33
      %p89 = scmp.eq.s32.totalorder %s88, 0
      %s91 = sadd.s32 %s90, 1
      %s92 = scalar_select %p89, %s90, %s91
      %p95 = pneg %p89
      %p96 = scmp.eq.s32.totalorder %s14, 3
      %p97 = por %p95, %p96
      %p98 = scmp.ne.s32.totalorder %s90, %s93
      %p99 = scmp.eq.s32.totalorder %s14, 0
      %p100 = por %p98, %p99
      %p101 = scmp.ne.s32.totalorder %s90, %s93
      %p102 = scmp.eq.s32.totalorder %s19, 3
      %p103 = por %p101, %p102
      %p104 = scmp.ne.s32.totalorder %s93, %s94
      %p105 = scmp.eq.s32.totalorder %s19, 0
      %p106 = por %p104, %p105
      %p107 = scmp.ne.s32.totalorder %s93, %s94
      %p108 = scmp.eq.s32.totalorder %s20, 3
      %p109 = por %p107, %p108
      %p111 = scmp.ne.s32.totalorder %s94, %s110
      %p112 = scmp.eq.s32.totalorder %s20, 0
      %p113 = por %p111, %p112
      %s114 = ssub.s32 %s21, %s33
      %s115 = ssub.s32 %s22, %s29
      %s116 = sor.u32 %s114, %s115
      %p117 = scmp.eq.s32.totalorder %s116, 0
      %s119 = sadd.s32 %s118, 1
      %s120 = scalar_select %p117, %s118, %s119
      %p123 = pneg %p117
      %p124 = scmp.eq.s32.totalorder %s14, 3
      %p125 = por %p123, %p124
      %p126 = scmp.ne.s32.totalorder %s118, %s121
      %p127 = scmp.eq.s32.totalorder %s14, 0
      %p128 = por %p126, %p127
      %p129 = scmp.ne.s32.totalorder %s118, %s121
      %p130 = scmp.eq.s32.totalorder %s19, 3
      %p131 = por %p129, %p130
      %p132 = scmp.ne.s32.totalorder %s121, %s122
      %p133 = scmp.eq.s32.totalorder %s19, 0
      %p134 = por %p132, %p133
      %p135 = scmp.ne.s32.totalorder %s121, %s122
      %p136 = scmp.eq.s32.totalorder %s20, 3
      %p137 = por %p135, %p136
      %p139 = scmp.ne.s32.totalorder %s122, %s138
      %p140 = scmp.eq.s32.totalorder %s20, 0
      %p141 = por %p139, %p140
      %s142 = ssub.s32 %s21, %s33
      %s143 = ssub.s32 %s22, %s29
      %s144 = sor.u32 %s142, %s143
      %p145 = scmp.eq.s32.totalorder %s144, 0
      %s147 = sadd.s32 %s146, 1
      %s148 = scalar_select %p145, %s146, %s147
      %p151 = pneg %p145
      %p152 = scmp.eq.s32.totalorder %s14, 3
      %p153 = por %p151, %p152
      %p154 = scmp.ne.s32.totalorder %s146, %s149
      %p155 = scmp.eq.s32.totalorder %s14, 0
      %p156 = por %p154, %p155
      %p157 = scmp.ne.s32.totalorder %s146, %s149
      %p158 = scmp.eq.s32.totalorder %s19, 3
      %p159 = por %p157, %p158
      %p160 = scmp.ne.s32.totalorder %s149, %s150
      %p161 = scmp.eq.s32.totalorder %s19, 0
      %p162 = por %p160, %p161
      %p163 = scmp.ne.s32.totalorder %s149, %s150
      %p164 = scmp.eq.s32.totalorder %s20, 3
      %p165 = por %p163, %p164
      %p167 = scmp.ne.s32.totalorder %s150, %s166
      %p168 = scmp.eq.s32.totalorder %s20, 0
      %p169 = por %p167, %p168
      %p170 = scmp.le.s32.totalorder 1, %s14
      %p171 = scmp.lt.s32.totalorder %s14, 5
      %p172 = pnand %p170, %p171
      %p173 = pneg %p172
      // Predicated region
      $region9: #{tpu_custom_call.1} parent=5 // pred_check
        _
      $region10: #{tpu_custom_call.1} parent=5 // pred_check_branch
        %175 = sbr.rel (%p172) target = $region12
      $region11: #{tpu_custom_call.1} parent=5 // pred_region
        %s176 = ssub.s32 %s14, 1
        // Predicated region
        $region13: #{tpu_custom_call.1} parent=11 // pred_check
          %p177 = pneg %p80
        $region14: #{tpu_custom_call.1} parent=11 // pred_check_branch
          %179 = sbr.rel (%p177) target = $region16
        $region15: #{tpu_custom_call.1} parent=11 // pred_region
          %s180 = smul.u32 4, %s23
          %p181 = scmp.lt.s32.totalorder %s180, 7
          %s182 = scalar_select %p181, %s180, 7
          %s183 = smul.addr %s182, 32
          %s184 = smul.addr %s183, 8
          %s185 = scalar_lea.vmem %s1, %s184
          %s186 = smul.u32 4, %s23
        $region16: #{tpu_custom_call.1} parent=11 // pred_fallthru
          _
        // Predicated region
        $region17: #{tpu_custom_call.1} parent=11 // pred_check
          %p187 = pneg %p106
        $region18: #{tpu_custom_call.1} parent=11 // pred_check_branch
          %189 = sbr.rel (%p187) target = $region20
        $region19: #{tpu_custom_call.1} parent=11 // pred_region
          %s190 = smul.u32 4, %s23
          %p191 = scmp.lt.s32.totalorder %s190, 7
          %s192 = scalar_select %p191, %s190, 7
          %s193 = smul.addr %s192, 32
          %s194 = smul.addr %s193, 8
          %s195 = scalar_lea.vmem %s2, %s194
          %s196 = smul.u32 4, %s23
        $region20: #{tpu_custom_call.1} parent=11 // pred_fallthru
          _
      $region12: #{tpu_custom_call.1} parent=5 // pred_fallthru
        _
      %p197 = scmp.lt.s32.totalorder %s14, 4
      // Predicated region
      $region21: #{tpu_custom_call.1} parent=5 // pred_check
        %p198 = pneg %p197
      $region22: #{tpu_custom_call.1} parent=5 // pred_check_branch
        %200 = sbr.rel (%p198) target = $region24
      $region23: #{tpu_custom_call.1} parent=5 // pred_region
        // Predicated region
        $region25: #{tpu_custom_call.1} parent=23 // pred_check
          %p201 = pneg %p48
        $region26: #{tpu_custom_call.1} parent=23 // pred_check_branch
          %203 = sbr.rel (%p201) target = $region28
        $region27: #{tpu_custom_call.1} parent=23 // pred_region
          %s204 = sand.u32 %s38, 1
          %s205 = sand.u32 %s38, 1
          %s206 = smul.addr %s205, 512
          %s207 = scalar_lea.vmem [#allocation3], %s206
          %s208 = smul.u32 4, %s21
          %s209 = smul.u32 16, %s22
          %s210 = smul.addr %s208, 32
          %s211 = sadd.s32 %s209, %s210
          %s212 = smul.addr %s211, 8
          %s213 = scalar_lea.vmem %s0, %s212
          // Predicated region
          $region29: #{tpu_custom_call.1} parent=27 // pred_check
            _
          $region30: #{tpu_custom_call.1} parent=27 // pred_check_branch
            %215 = sbr.rel (0) target = $region32
          $region31: #{tpu_custom_call.1} parent=27 // pred_region
            // Predicated region
            $region33: #{tpu_custom_call.1} parent=31 // pred_check
              _
            $region34: #{tpu_custom_call.1} parent=31 // pred_check_branch
              %217 = sbr.rel (0) target = $region36
            $region35: #{tpu_custom_call.1} parent=31 // pred_region
              // Predicated region
              $region48: #{tpu_custom_call.1} parent=35 // pred_check
                _
              $region49: #{tpu_custom_call.1} parent=35 // pred_check_branch
                %359 = sbr.rel (0) target = $region51
              $region50: #{tpu_custom_call.1} parent=35 // pred_region
                loop: start=0, step=1, limit=1
                $region52: #{tpu_custom_call.1} parent=50 // loop_pre_header
                  _
                $region53: #{tpu_custom_call.1} parent=50 // loop_header
                  %s361 = sphi 0, %s365
                  %p362 = scmp.ge.s32.totalorder %s361, 1
                  %s366 = sphi %s213, %s213
                  %s367 = sphi %s207, %s207
                $region54: #{tpu_custom_call.1} parent=50 // loop_header_branch
                  %364 = sbr.rel (%p362) target = $region58
                $region55: #{tpu_custom_call.1} parent=50 // loop_body
                  %v368 = vld [vmem:[%s366] sm:$0xff]
                  %369 = vst [vmem:[%s367] sm:$0xff] %v368
                  %v370 = vld [vmem:[%s366 + $0x8] sm:$0xff]
                  %371 = vst [vmem:[%s367 + $0x8] sm:$0xff] %v370
                  %v372 = vld [vmem:[%s366 + $0x10] sm:$0xff]
                  %373 = vst [vmem:[%s367 + $0x10] sm:$0xff] %v372
                  %v374 = vld [vmem:[%s366 + $0x18] sm:$0xff]
                  %375 = vst [vmem:[%s367 + $0x18] sm:$0xff] %v374
                  %v376 = vld [vmem:[%s366 + $0x20] sm:$0xff]
                  %377 = vst [vmem:[%s367 + $0x20] sm:$0xff] %v376
                  %v378 = vld [vmem:[%s366 + $0x28] sm:$0xff]
                  %379 = vst [vmem:[%s367 + $0x28] sm:$0xff] %v378
                  %v380 = vld [vmem:[%s366 + $0x30] sm:$0xff]
                  %381 = vst [vmem:[%s367 + $0x30] sm:$0xff] %v380
                  %v382 = vld [vmem:[%s366 + $0x38] sm:$0xff]
                  %383 = vst [vmem:[%s367 + $0x38] sm:$0xff] %v382
                  %v384 = vld [vmem:[%s366 + $0x40] sm:$0xff]
                  %385 = vst [vmem:[%s367 + $0x40] sm:$0xff] %v384
                  %v386 = vld [vmem:[%s366 + $0x48] sm:$0xff]
                  %387 = vst [vmem:[%s367 + $0x48] sm:$0xff] %v386
                  %v388 = vld [vmem:[%s366 + $0x50] sm:$0xff]
                  %389 = vst [vmem:[%s367 + $0x50] sm:$0xff] %v388
                  %v390 = vld [vmem:[%s366 + $0x58] sm:$0xff]
                  %391 = vst [vmem:[%s367 + $0x58] sm:$0xff] %v390
                  %v392 = vld [vmem:[%s366 + $0x60] sm:$0xff]
                  %393 = vst [vmem:[%s367 + $0x60] sm:$0xff] %v392
                  %v394 = vld [vmem:[%s366 + $0x68] sm:$0xff]
                  %395 = vst [vmem:[%s367 + $0x68] sm:$0xff] %v394
                  %v396 = vld [vmem:[%s366 + $0x70] sm:$0xff]
                  %397 = vst [vmem:[%s367 + $0x70] sm:$0xff] %v396
                  %v398 = vld [vmem:[%s366 + $0x78] sm:$0xff]
                  %399 = vst [vmem:[%s367 + $0x78] sm:$0xff] %v398
                  %v400 = vld [vmem:[%s366 + $0x100] sm:$0xff]
                  %401 = vst [vmem:[%s367 + $0x80] sm:$0xff] %v400
                  %v402 = vld [vmem:[%s366 + $0x108] sm:$0xff]
                  %403 = vst [vmem:[%s367 + $0x88] sm:$0xff] %v402
                  %v404 = vld [vmem:[%s366 + $0x110] sm:$0xff]
                  %405 = vst [vmem:[%s367 + $0x90] sm:$0xff] %v404
                  %v406 = vld [vmem:[%s366 + $0x118] sm:$0xff]
                  %407 = vst [vmem:[%s367 + $0x98] sm:$0xff] %v406
                  %v408 = vld [vmem:[%s366 + $0x120] sm:$0xff]
                  %409 = vst [vmem:[%s367 + $0xa0] sm:$0xff] %v408
                  %v410 = vld [vmem:[%s366 + $0x128] sm:$0xff]
                  %411 = vst [vmem:[%s367 + $0xa8] sm:$0xff] %v410
                  %v412 = vld [vmem:[%s366 + $0x130] sm:$0xff]
                  %413 = vst [vmem:[%s367 + $0xb0] sm:$0xff] %v412
                  %v414 = vld [vmem:[%s366 + $0x138] sm:$0xff]
                  %415 = vst [vmem:[%s367 + $0xb8] sm:$0xff] %v414
                  %v416 = vld [vmem:[%s366 + $0x140] sm:$0xff]
                  %417 = vst [vmem:[%s367 + $0xc0] sm:$0xff] %v416
                  %v418 = vld [vmem:[%s366 + $0x148] sm:$0xff]
                  %419 = vst [vmem:[%s367 + $0xc8] sm:$0xff] %v418
                  %v420 = vld [vmem:[%s366 + $0x150] sm:$0xff]
                  %421 = vst [vmem:[%s367 + $0xd0] sm:$0xff] %v420
                  %v422 = vld [vmem:[%s366 + $0x158] sm:$0xff]
                  %423 = vst [vmem:[%s367 + $0xd8] sm:$0xff] %v422
                  %v424 = vld [vmem:[%s366 + $0x160] sm:$0xff]
                  %425 = vst [vmem:[%s367 + $0xe0] sm:$0xff] %v424
                  %v426 = vld [vmem:[%s366 + $0x168] sm:$0xff]
                  %427 = vst [vmem:[%s367 + $0xe8] sm:$0xff] %v426
                  %v428 = vld [vmem:[%s366 + $0x170] sm:$0xff]
                  %429 = vst [vmem:[%s367 + $0xf0] sm:$0xff] %v428
                  %v430 = vld [vmem:[%s366 + $0x178] sm:$0xff]
                  %431 = vst [vmem:[%s367 + $0xf8] sm:$0xff] %v430
                  %v432 = vld [vmem:[%s366 + $0x200] sm:$0xff]
                  %433 = vst [vmem:[%s367 + $0x100] sm:$0xff] %v432
                  %v434 = vld [vmem:[%s366 + $0x208] sm:$0xff]
                  %435 = vst [vmem:[%s367 + $0x108] sm:$0xff] %v434
                  %v436 = vld [vmem:[%s366 + $0x210] sm:$0xff]
                  %437 = vst [vmem:[%s367 + $0x110] sm:$0xff] %v436
                  %v438 = vld [vmem:[%s366 + $0x218] sm:$0xff]
                  %439 = vst [vmem:[%s367 + $0x118] sm:$0xff] %v438
                  %v440 = vld [vmem:[%s366 + $0x220] sm:$0xff]
                  %441 = vst [vmem:[%s367 + $0x120] sm:$0xff] %v440
                  %v442 = vld [vmem:[%s366 + $0x228] sm:$0xff]
                  %443 = vst [vmem:[%s367 + $0x128] sm:$0xff] %v442
                  %v444 = vld [vmem:[%s366 + $0x230] sm:$0xff]
                  %445 = vst [vmem:[%s367 + $0x130] sm:$0xff] %v444
                  %v446 = vld [vmem:[%s366 + $0x238] sm:$0xff]
                  %447 = vst [vmem:[%s367 + $0x138] sm:$0xff] %v446
                  %v448 = vld [vmem:[%s366 + $0x240] sm:$0xff]
                  %449 = vst [vmem:[%s367 + $0x140] sm:$0xff] %v448
                  %v450 = vld [vmem:[%s366 + $0x248] sm:$0xff]
                  %451 = vst [vmem:[%s367 + $0x148] sm:$0xff] %v450
                  %v452 = vld [vmem:[%s366 + $0x250] sm:$0xff]
                  %453 = vst [vmem:[%s367 + $0x150] sm:$0xff] %v452
                  %v454 = vld [vmem:[%s366 + $0x258] sm:$0xff]
                  %455 = vst [vmem:[%s367 + $0x158] sm:$0xff] %v454
                  %v456 = vld [vmem:[%s366 + $0x260] sm:$0xff]
                  %457 = vst [vmem:[%s367 + $0x160] sm:$0xff] %v456
                  %v458 = vld [vmem:[%s366 + $0x268] sm:$0xff]
                  %459 = vst [vmem:[%s367 + $0x168] sm:$0xff] %v458
                  %v460 = vld [vmem:[%s366 + $0x270] sm:$0xff]
                  %461 = vst [vmem:[%s367 + $0x170] sm:$0xff] %v460
                  %v462 = vld [vmem:[%s366 + $0x278] sm:$0xff]
                  %463 = vst [vmem:[%s367 + $0x178] sm:$0xff] %v462
                  %v464 = vld [vmem:[%s366 + $0x300] sm:$0xff]
                  %465 = vst [vmem:[%s367 + $0x180] sm:$0xff] %v464
                  %v466 = vld [vmem:[%s366 + $0x308] sm:$0xff]
                  %467 = vst [vmem:[%s367 + $0x188] sm:$0xff] %v466
                  %v468 = vld [vmem:[%s366 + $0x310] sm:$0xff]
                  %469 = vst [vmem:[%s367 + $0x190] sm:$0xff] %v468
                  %v470 = vld [vmem:[%s366 + $0x318] sm:$0xff]
                  %471 = vst [vmem:[%s367 + $0x198] sm:$0xff] %v470
                  %v472 = vld [vmem:[%s366 + $0x320] sm:$0xff]
                  %473 = vst [vmem:[%s367 + $0x1a0] sm:$0xff] %v472
                  %v474 = vld [vmem:[%s366 + $0x328] sm:$0xff]
                  %475 = vst [vmem:[%s367 + $0x1a8] sm:$0xff] %v474
                  %v476 = vld [vmem:[%s366 + $0x330] sm:$0xff]
                  %477 = vst [vmem:[%s367 + $0x1b0] sm:$0xff] %v476
                  %v478 = vld [vmem:[%s366 + $0x338] sm:$0xff]
                  %479 = vst [vmem:[%s367 + $0x1b8] sm:$0xff] %v478
                  %v480 = vld [vmem:[%s366 + $0x340] sm:$0xff]
                  %481 = vst [vmem:[%s367 + $0x1c0] sm:$0xff] %v480
                  %v482 = vld [vmem:[%s366 + $0x348] sm:$0xff]
                  %483 = vst [vmem:[%s367 + $0x1c8] sm:$0xff] %v482
                  %v484 = vld [vmem:[%s366 + $0x350] sm:$0xff]
                  %485 = vst [vmem:[%s367 + $0x1d0] sm:$0xff] %v484
                  %v486 = vld [vmem:[%s366 + $0x358] sm:$0xff]
                  %487 = vst [vmem:[%s367 + $0x1d8] sm:$0xff] %v486
                  %v488 = vld [vmem:[%s366 + $0x360] sm:$0xff]
                  %489 = vst [vmem:[%s367 + $0x1e0] sm:$0xff] %v488
                  %v490 = vld [vmem:[%s366 + $0x368] sm:$0xff]
                  %491 = vst [vmem:[%s367 + $0x1e8] sm:$0xff] %v490
                  %v492 = vld [vmem:[%s366 + $0x370] sm:$0xff]
                  %493 = vst [vmem:[%s367 + $0x1f0] sm:$0xff] %v492
                  %v494 = vld [vmem:[%s366 + $0x378] sm:$0xff]
                  %495 = vst [vmem:[%s367 + $0x1f8] sm:$0xff] %v494
                $region56: #{tpu_custom_call.1} parent=50 // loop_footer
                  %s365 = sadd.s32 1, %s361
                $region57: #{tpu_custom_call.1} parent=50 // loop_footer_branch
                  %360 = sbr.rel target = $region53
                $region58: #{tpu_custom_call.1} parent=50 // loop_exit
                  _
              $region51: #{tpu_custom_call.1} parent=35 // pred_fallthru
                _
              // Predicated region
              $region59: #{tpu_custom_call.1} parent=35 // pred_check
                _
              $region60: #{tpu_custom_call.1} parent=35 // pred_check_branch
                %497 = sbr.rel target = $region62
              $region61: #{tpu_custom_call.1} parent=35 // pred_region
                _
              $region62: #{tpu_custom_call.1} parent=35 // pred_fallthru
                _
            $region36: #{tpu_custom_call.1} parent=31 // pred_fallthru
              _
            // Predicated region
            $region37: #{tpu_custom_call.1} parent=31 // pred_check
              _
            $region38: #{tpu_custom_call.1} parent=31 // pred_check_branch
              %219 = sbr.rel target = $region40
            $region39: #{tpu_custom_call.1} parent=31 // pred_region
              %s221 = ssub.s32 256, 1
              loop: start=0, step=1, limit=1
              $region41: #{tpu_custom_call.1} parent=39 // loop_pre_header
                _
              $region42: #{tpu_custom_call.1} parent=39 // loop_header
                %s223 = sphi 0, %s227
                %p224 = scmp.ge.s32.totalorder %s223, 1
                %s228 = sphi %s213, %s213
                %s229 = sphi %s207, %s207
              $region43: #{tpu_custom_call.1} parent=39 // loop_header_branch
                %226 = sbr.rel (%p224) target = $region47
              $region44: #{tpu_custom_call.1} parent=39 // loop_body
                %v230 = vld [vmem:[%s228] sm:%s221]
                %231 = vst [vmem:[%s229] sm:%s221] %v230
                %v232 = vld [vmem:[%s228 + $0x8] sm:%s221]
                %233 = vst [vmem:[%s229 + $0x8] sm:%s221] %v232
                %v234 = vld [vmem:[%s228 + $0x10] sm:%s221]
                %235 = vst [vmem:[%s229 + $0x10] sm:%s221] %v234
                %v236 = vld [vmem:[%s228 + $0x18] sm:%s221]
                %237 = vst [vmem:[%s229 + $0x18] sm:%s221] %v236
                %v238 = vld [vmem:[%s228 + $0x20] sm:%s221]
                %239 = vst [vmem:[%s229 + $0x20] sm:%s221] %v238
                %v240 = vld [vmem:[%s228 + $0x28] sm:%s221]
                %241 = vst [vmem:[%s229 + $0x28] sm:%s221] %v240
                %v242 = vld [vmem:[%s228 + $0x30] sm:%s221]
                %243 = vst [vmem:[%s229 + $0x30] sm:%s221] %v242
                %v244 = vld [vmem:[%s228 + $0x38] sm:%s221]
                %245 = vst [vmem:[%s229 + $0x38] sm:%s221] %v244
                %v246 = vld [vmem:[%s228 + $0x40] sm:%s221]
                %247 = vst [vmem:[%s229 + $0x40] sm:%s221] %v246
                %v248 = vld [vmem:[%s228 + $0x48] sm:%s221]
                %249 = vst [vmem:[%s229 + $0x48] sm:%s221] %v248
                %v250 = vld [vmem:[%s228 + $0x50] sm:%s221]
                %251 = vst [vmem:[%s229 + $0x50] sm:%s221] %v250
                %v252 = vld [vmem:[%s228 + $0x58] sm:%s221]
                %253 = vst [vmem:[%s229 + $0x58] sm:%s221] %v252
                %v254 = vld [vmem:[%s228 + $0x60] sm:%s221]
                %255 = vst [vmem:[%s229 + $0x60] sm:%s221] %v254
                %v256 = vld [vmem:[%s228 + $0x68] sm:%s221]
                %257 = vst [vmem:[%s229 + $0x68] sm:%s221] %v256
                %v258 = vld [vmem:[%s228 + $0x70] sm:%s221]
                %259 = vst [vmem:[%s229 + $0x70] sm:%s221] %v258
                %v260 = vld [vmem:[%s228 + $0x78] sm:%s221]
                %261 = vst [vmem:[%s229 + $0x78] sm:%s221] %v260
                %v262 = vld [vmem:[%s228 + $0x100] sm:%s221]
                %263 = vst [vmem:[%s229 + $0x80] sm:%s221] %v262
                %v264 = vld [vmem:[%s228 + $0x108] sm:%s221]
                %265 = vst [vmem:[%s229 + $0x88] sm:%s221] %v264
                %v266 = vld [vmem:[%s228 + $0x110] sm:%s221]
                %267 = vst [vmem:[%s229 + $0x90] sm:%s221] %v266
                %v268 = vld [vmem:[%s228 + $0x118] sm:%s221]
                %269 = vst [vmem:[%s229 + $0x98] sm:%s221] %v268
                %v270 = vld [vmem:[%s228 + $0x120] sm:%s221]
                %271 = vst [vmem:[%s229 + $0xa0] sm:%s221] %v270
                %v272 = vld [vmem:[%s228 + $0x128] sm:%s221]
                %273 = vst [vmem:[%s229 + $0xa8] sm:%s221] %v272
                %v274 = vld [vmem:[%s228 + $0x130] sm:%s221]
                %275 = vst [vmem:[%s229 + $0xb0] sm:%s221] %v274
                %v276 = vld [vmem:[%s228 + $0x138] sm:%s221]
                %277 = vst [vmem:[%s229 + $0xb8] sm:%s221] %v276
                %v278 = vld [vmem:[%s228 + $0x140] sm:%s221]
                %279 = vst [vmem:[%s229 + $0xc0] sm:%s221] %v278
                %v280 = vld [vmem:[%s228 + $0x148] sm:%s221]
                %281 = vst [vmem:[%s229 + $0xc8] sm:%s221] %v280
                %v282 = vld [vmem:[%s228 + $0x150] sm:%s221]
                %283 = vst [vmem:[%s229 + $0xd0] sm:%s221] %v282
                %v284 = vld [vmem:[%s228 + $0x158] sm:%s221]
                %285 = vst [vmem:[%s229 + $0xd8] sm:%s221] %v284
                %v286 = vld [vmem:[%s228 + $0x160] sm:%s221]
                %287 = vst [vmem:[%s229 + $0xe0] sm:%s221] %v286
                %v288 = vld [vmem:[%s228 + $0x168] sm:%s221]
                %289 = vst [vmem:[%s229 + $0xe8] sm:%s221] %v288
                %v290 = vld [vmem:[%s228 + $0x170] sm:%s221]
                %291 = vst [vmem:[%s229 + $0xf0] sm:%s221] %v290
                %v292 = vld [vmem:[%s228 + $0x178] sm:%s221]
                %293 = vst [vmem:[%s229 + $0xf8] sm:%s221] %v292
                %v294 = vld [vmem:[%s228 + $0x200] sm:%s221]
                %295 = vst [vmem:[%s229 + $0x100] sm:%s221] %v294
                %v296 = vld [vmem:[%s228 + $0x208] sm:%s221]
                %297 = vst [vmem:[%s229 + $0x108] sm:%s221] %v296
                %v298 = vld [vmem:[%s228 + $0x210] sm:%s221]
                %299 = vst [vmem:[%s229 + $0x110] sm:%s221] %v298
                %v300 = vld [vmem:[%s228 + $0x218] sm:%s221]
                %301 = vst [vmem:[%s229 + $0x118] sm:%s221] %v300
                %v302 = vld [vmem:[%s228 + $0x220] sm:%s221]
                %303 = vst [vmem:[%s229 + $0x120] sm:%s221] %v302
                %v304 = vld [vmem:[%s228 + $0x228] sm:%s221]
                %305 = vst [vmem:[%s229 + $0x128] sm:%s221] %v304
                %v306 = vld [vmem:[%s228 + $0x230] sm:%s221]
                %307 = vst [vmem:[%s229 + $0x130] sm:%s221] %v306
                %v308 = vld [vmem:[%s228 + $0x238] sm:%s221]
                %309 = vst [vmem:[%s229 + $0x138] sm:%s221] %v308
                %v310 = vld [vmem:[%s228 + $0x240] sm:%s221]
                %311 = vst [vmem:[%s229 + $0x140] sm:%s221] %v310
                %v312 = vld [vmem:[%s228 + $0x248] sm:%s221]
                %313 = vst [vmem:[%s229 + $0x148] sm:%s221] %v312
                %v314 = vld [vmem:[%s228 + $0x250] sm:%s221]
                %315 = vst [vmem:[%s229 + $0x150] sm:%s221] %v314
                %v316 = vld [vmem:[%s228 + $0x258] sm:%s221]
                %317 = vst [vmem:[%s229 + $0x158] sm:%s221] %v316
                %v318 = vld [vmem:[%s228 + $0x260] sm:%s221]
                %319 = vst [vmem:[%s229 + $0x160] sm:%s221] %v318
                %v320 = vld [vmem:[%s228 + $0x268] sm:%s221]
                %321 = vst [vmem:[%s229 + $0x168] sm:%s221] %v320
                %v322 = vld [vmem:[%s228 + $0x270] sm:%s221]
                %323 = vst [vmem:[%s229 + $0x170] sm:%s221] %v322
                %v324 = vld [vmem:[%s228 + $0x278] sm:%s221]
                %325 = vst [vmem:[%s229 + $0x178] sm:%s221] %v324
                %v326 = vld [vmem:[%s228 + $0x300] sm:%s221]
                %327 = vst [vmem:[%s229 + $0x180] sm:%s221] %v326
                %v328 = vld [vmem:[%s228 + $0x308] sm:%s221]
                %329 = vst [vmem:[%s229 + $0x188] sm:%s221] %v328
                %v330 = vld [vmem:[%s228 + $0x310] sm:%s221]
                %331 = vst [vmem:[%s229 + $0x190] sm:%s221] %v330
                %v332 = vld [vmem:[%s228 + $0x318] sm:%s221]
                %333 = vst [vmem:[%s229 + $0x198] sm:%s221] %v332
                %v334 = vld [vmem:[%s228 + $0x320] sm:%s221]
                %335 = vst [vmem:[%s229 + $0x1a0] sm:%s221] %v334
                %v336 = vld [vmem:[%s228 + $0x328] sm:%s221]
                %337 = vst [vmem:[%s229 + $0x1a8] sm:%s221] %v336
                %v338 = vld [vmem:[%s228 + $0x330] sm:%s221]
                %339 = vst [vmem:[%s229 + $0x1b0] sm:%s221] %v338
                %v340 = vld [vmem:[%s228 + $0x338] sm:%s221]
                %341 = vst [vmem:[%s229 + $0x1b8] sm:%s221] %v340
                %v342 = vld [vmem:[%s228 + $0x340] sm:%s221]
                %343 = vst [vmem:[%s229 + $0x1c0] sm:%s221] %v342
                %v344 = vld [vmem:[%s228 + $0x348] sm:%s221]
                %345 = vst [vmem:[%s229 + $0x1c8] sm:%s221] %v344
                %v346 = vld [vmem:[%s228 + $0x350] sm:%s221]
                %347 = vst [vmem:[%s229 + $0x1d0] sm:%s221] %v346
                %v348 = vld [vmem:[%s228 + $0x358] sm:%s221]
                %349 = vst [vmem:[%s229 + $0x1d8] sm:%s221] %v348
                %v350 = vld [vmem:[%s228 + $0x360] sm:%s221]
                %351 = vst [vmem:[%s229 + $0x1e0] sm:%s221] %v350
                %v352 = vld [vmem:[%s228 + $0x368] sm:%s221]
                %353 = vst [vmem:[%s229 + $0x1e8] sm:%s221] %v352
                %v354 = vld [vmem:[%s228 + $0x370] sm:%s221]
                %355 = vst [vmem:[%s229 + $0x1f0] sm:%s221] %v354
                %v356 = vld [vmem:[%s228 + $0x378] sm:%s221]
                %357 = vst [vmem:[%s229 + $0x1f8] sm:%s221] %v356
              $region45: #{tpu_custom_call.1} parent=39 // loop_footer
                %s227 = sadd.s32 1, %s223
              $region46: #{tpu_custom_call.1} parent=39 // loop_footer_branch
                %222 = sbr.rel target = $region42
              $region47: #{tpu_custom_call.1} parent=39 // loop_exit
                _
            $region40: #{tpu_custom_call.1} parent=31 // pred_fallthru
              _
          $region32: #{tpu_custom_call.1} parent=27 // pred_fallthru
            _
          %498 = vnop
        $region28: #{tpu_custom_call.1} parent=23 // pred_fallthru
          _
      $region24: #{tpu_custom_call.1} parent=5 // pred_fallthru
        _
      %p499 = scmp.le.s32.totalorder 1, %s14
      %p500 = scmp.lt.s32.totalorder %s14, 5
      %p501 = pnand %p499, %p500
      %p502 = pneg %p501
      // Predicated region
      $region63: #{tpu_custom_call.1} parent=5 // pred_check
        _
      $region64: #{tpu_custom_call.1} parent=5 // pred_check_branch
        %504 = sbr.rel (%p501) target = $region66
      $region65: #{tpu_custom_call.1} parent=5 // pred_region
        %s505 = ssub.s32 %s14, 1
        %s506 = sand.u32 %s41, 1
        %s507 = sand.u32 %s41, 1
        %s508 = smul.addr %s507, 512
        %s509 = scalar_lea.vmem [#allocation3], %s508
        // Predicated region
        $region67: #{tpu_custom_call.1} parent=65 // pred_check
          %p510 = pneg %p54
        $region68: #{tpu_custom_call.1} parent=65 // pred_check_branch
          %512 = sbr.rel (%p510) target = $region70
        $region69: #{tpu_custom_call.1} parent=65 // pred_region
          _
        $region70: #{tpu_custom_call.1} parent=65 // pred_fallthru
          _
        %s513 = sand.u32 %s41, 1
        %s514 = sand.u32 %s41, 1
        %s515 = smul.addr %s514, 512
        %s516 = scalar_lea.vmem [#allocation3], %s515
        %p517 = pneg %p54
        %p518 = pneg %p51
        %s519 = smul.u32 4, %s23
        %p520 = scmp.lt.s32.totalorder %s519, 7
        %s521 = scalar_select %p520, %s519, 7
        %s522 = smul.addr %s521, 32
        %s523 = smul.addr %s522, 8
        %s524 = scalar_lea.vmem %s1, %s523
        %p525 = pneg %p80
        %p526 = pneg %p77
        %s527 = smul.u32 4, %s23
        %p528 = scmp.lt.s32.totalorder %s527, 7
        %s529 = scalar_select %p528, %s527, 7
        %s530 = smul.addr %s529, 32
        %s531 = smul.addr %s530, 8
        %s532 = scalar_lea.vmem %s2, %s531
        %p533 = pneg %p106
        %p534 = pneg %p103
        %p535 = pneg %p134
        %p536 = pneg %p131
        %s537 = sand.u32 %s121, 1
        %s538 = sand.u32 %s121, 1
        %s539 = smul.addr %s538, 512
        %s540 = scalar_lea.vmem [#allocation4], %s539
        %p541 = pneg %p162
        %p542 = pneg %p159
        %s543 = sand.u32 %s149, 1
        %s544 = scalar_lea.sflag [#allocation6], %s543
        %s545 = sand.u32 %s149, 1
        %s546 = smul.addr %s545, 1024
        %s547 = scalar_lea.vmem [#allocation5], %s546
        %s548 = smul.u32 4, %s23
        %s549 = smul.u32 16, %s24
        %s550 = smul.u32 4, %s23
        %p551 = scmp.lt.s32.totalorder %s550, 7
        %s552 = scalar_select %p551, %s550, 7
        %s553 = smul.addr %s552, 32
        %s554 = smul.addr %s553, 8
        %s555 = scalar_lea.vmem %s1, %s554
        %s556 = smul.u32 4, %s23
        %s557 = smul.u32 4, %s23
        %p558 = scmp.lt.s32.totalorder %s557, 7
        %s559 = scalar_select %p558, %s557, 7
        %s560 = smul.addr %s559, 32
        %s561 = smul.addr %s560, 8
        %s562 = scalar_lea.vmem %s2, %s561
        %s563 = smul.u32 4, %s23
        %s564 = smul.u32 4, %s23
        %s565 = smul.u32 16, %s24
        %s566 = smul.u32 4, %s23
        %s567 = smul.u32 16, %s24
        %v568 = vld [vmem:[%s509] sm:$0xff]
        %v569 = vld [vmem:[%s509 + $0x8] sm:$0xff]
        %v570 = vld [vmem:[%s509 + $0x10] sm:$0xff]
        %v571 = vld [vmem:[%s509 + $0x18] sm:$0xff]
        %v572 = vld [vmem:[%s509 + $0x20] sm:$0xff]
        %v573 = vld [vmem:[%s509 + $0x28] sm:$0xff]
        %v574 = vld [vmem:[%s509 + $0x30] sm:$0xff]
        %v575 = vld [vmem:[%s509 + $0x38] sm:$0xff]
        %v576 = vld [vmem:[%s509 + $0x40] sm:$0xff]
        %v577 = vld [vmem:[%s509 + $0x48] sm:$0xff]
        %v578 = vld [vmem:[%s509 + $0x50] sm:$0xff]
        %v579 = vld [vmem:[%s509 + $0x58] sm:$0xff]
        %v580 = vld [vmem:[%s509 + $0x60] sm:$0xff]
        %v581 = vld [vmem:[%s509 + $0x68] sm:$0xff]
        %v582 = vld [vmem:[%s509 + $0x70] sm:$0xff]
        %v583 = vld [vmem:[%s509 + $0x78] sm:$0xff]
        %v584 = vld [vmem:[%s509 + $0x80] sm:$0xff]
        %v585 = vld [vmem:[%s509 + $0x88] sm:$0xff]
        %v586 = vld [vmem:[%s509 + $0x90] sm:$0xff]
        %v587 = vld [vmem:[%s509 + $0x98] sm:$0xff]
        %v588 = vld [vmem:[%s509 + $0xa0] sm:$0xff]
        %v589 = vld [vmem:[%s509 + $0xa8] sm:$0xff]
        %v590 = vld [vmem:[%s509 + $0xb0] sm:$0xff]
        %v591 = vld [vmem:[%s509 + $0xb8] sm:$0xff]
        %v592 = vld [vmem:[%s509 + $0xc0] sm:$0xff]
        %v593 = vld [vmem:[%s509 + $0xc8] sm:$0xff]
        %v594 = vld [vmem:[%s509 + $0xd0] sm:$0xff]
        %v595 = vld [vmem:[%s509 + $0xd8] sm:$0xff]
        %v596 = vld [vmem:[%s509 + $0xe0] sm:$0xff]
        %v597 = vld [vmem:[%s509 + $0xe8] sm:$0xff]
        %v598 = vld [vmem:[%s509 + $0xf0] sm:$0xff]
        %v599 = vld [vmem:[%s509 + $0xf8] sm:$0xff]
        %v600 = vld [vmem:[%s509 + $0x100] sm:$0xff]
        %v601 = vld [vmem:[%s509 + $0x108] sm:$0xff]
        %v602 = vld [vmem:[%s509 + $0x110] sm:$0xff]
        %v603 = vld [vmem:[%s509 + $0x118] sm:$0xff]
        %v604 = vld [vmem:[%s509 + $0x120] sm:$0xff]
        %v605 = vld [vmem:[%s509 + $0x128] sm:$0xff]
        %v606 = vld [vmem:[%s509 + $0x130] sm:$0xff]
        %v607 = vld [vmem:[%s509 + $0x138] sm:$0xff]
        %v608 = vld [vmem:[%s509 + $0x140] sm:$0xff]
        %v609 = vld [vmem:[%s509 + $0x148] sm:$0xff]
        %v610 = vld [vmem:[%s509 + $0x150] sm:$0xff]
        %v611 = vld [vmem:[%s509 + $0x158] sm:$0xff]
        %v612 = vld [vmem:[%s509 + $0x160] sm:$0xff]
        %v613 = vld [vmem:[%s509 + $0x168] sm:$0xff]
        %v614 = vld [vmem:[%s509 + $0x170] sm:$0xff]
        %v615 = vld [vmem:[%s509 + $0x178] sm:$0xff]
        %v616 = vld [vmem:[%s509 + $0x180] sm:$0xff]
        %v617 = vld [vmem:[%s509 + $0x188] sm:$0xff]
        %v618 = vld [vmem:[%s509 + $0x190] sm:$0xff]
        %v619 = vld [vmem:[%s509 + $0x198] sm:$0xff]
        %v620 = vld [vmem:[%s509 + $0x1a0] sm:$0xff]
        %v621 = vld [vmem:[%s509 + $0x1a8] sm:$0xff]
        %v622 = vld [vmem:[%s509 + $0x1b0] sm:$0xff]
        %v623 = vld [vmem:[%s509 + $0x1b8] sm:$0xff]
        %v624 = vld [vmem:[%s509 + $0x1c0] sm:$0xff]
        %v625 = vld [vmem:[%s509 + $0x1c8] sm:$0xff]
        %v626 = vld [vmem:[%s509 + $0x1d0] sm:$0xff]
        %v627 = vld [vmem:[%s509 + $0x1d8] sm:$0xff]
        %v628 = vld [vmem:[%s509 + $0x1e0] sm:$0xff]
        %v629 = vld [vmem:[%s509 + $0x1e8] sm:$0xff]
        %v630 = vld [vmem:[%s509 + $0x1f0] sm:$0xff]
        %v631 = vld [vmem:[%s509 + $0x1f8] sm:$0xff]
        %v632 = vmul.f32 %v568, 0.17677669
        %v633 = vmul.f32 %v569, 0.17677669
        %v634 = vmul.f32 %v570, 0.17677669
        %v635 = vmul.f32 %v571, 0.17677669
        %v636 = vmul.f32 %v572, 0.17677669
        %v637 = vmul.f32 %v573, 0.17677669
        %v638 = vmul.f32 %v574, 0.17677669
        %v639 = vmul.f32 %v575, 0.17677669
        %v640 = vmul.f32 %v576, 0.17677669
        %v641 = vmul.f32 %v577, 0.17677669
        %v642 = vmul.f32 %v578, 0.17677669
        %v643 = vmul.f32 %v579, 0.17677669
        %v644 = vmul.f32 %v580, 0.17677669
        %v645 = vmul.f32 %v581, 0.17677669
        %v646 = vmul.f32 %v582, 0.17677669
        %v647 = vmul.f32 %v583, 0.17677669
        %v648 = vmul.f32 %v584, 0.17677669
        %v649 = vmul.f32 %v585, 0.17677669
        %v650 = vmul.f32 %v586, 0.17677669
        %v651 = vmul.f32 %v587, 0.17677669
        %v652 = vmul.f32 %v588, 0.17677669
        %v653 = vmul.f32 %v589, 0.17677669
        %v654 = vmul.f32 %v590, 0.17677669
        %v655 = vmul.f32 %v591, 0.17677669
        %v656 = vmul.f32 %v592, 0.17677669
        %v657 = vmul.f32 %v593, 0.17677669
        %v658 = vmul.f32 %v594, 0.17677669
        %v659 = vmul.f32 %v595, 0.17677669
        %v660 = vmul.f32 %v596, 0.17677669
        %v661 = vmul.f32 %v597, 0.17677669
        %v662 = vmul.f32 %v598, 0.17677669
        %v663 = vmul.f32 %v599, 0.17677669
        %v664 = vmul.f32 %v600, 0.17677669
        %v665 = vmul.f32 %v601, 0.17677669
        %v666 = vmul.f32 %v602, 0.17677669
        %v667 = vmul.f32 %v603, 0.17677669
        %v668 = vmul.f32 %v604, 0.17677669
        %v669 = vmul.f32 %v605, 0.17677669
        %v670 = vmul.f32 %v606, 0.17677669
        %v671 = vmul.f32 %v607, 0.17677669
        %v672 = vmul.f32 %v608, 0.17677669
        %v673 = vmul.f32 %v609, 0.17677669
        %v674 = vmul.f32 %v610, 0.17677669
        %v675 = vmul.f32 %v611, 0.17677669
        %v676 = vmul.f32 %v612, 0.17677669
        %v677 = vmul.f32 %v613, 0.17677669
        %v678 = vmul.f32 %v614, 0.17677669
        %v679 = vmul.f32 %v615, 0.17677669
        %v680 = vmul.f32 %v616, 0.17677669
        %v681 = vmul.f32 %v617, 0.17677669
        %v682 = vmul.f32 %v618, 0.17677669
        %v683 = vmul.f32 %v619, 0.17677669
        %v684 = vmul.f32 %v620, 0.17677669
        %v685 = vmul.f32 %v621, 0.17677669
        %v686 = vmul.f32 %v622, 0.17677669
        %v687 = vmul.f32 %v623, 0.17677669
        %v688 = vmul.f32 %v624, 0.17677669
        %v689 = vmul.f32 %v625, 0.17677669
        %v690 = vmul.f32 %v626, 0.17677669
        %v691 = vmul.f32 %v627, 0.17677669
        %v692 = vmul.f32 %v628, 0.17677669
        %v693 = vmul.f32 %v629, 0.17677669
        %v694 = vmul.f32 %v630, 0.17677669
        %v695 = vmul.f32 %v631, 0.17677669
        %v696 = vld [vmem:[%s555] sm:$0xff]
        %v697 = vld [vmem:[%s555 + $0x8] sm:$0xff]
        %v698 = vld [vmem:[%s555 + $0x10] sm:$0xff]
        %v699 = vld [vmem:[%s555 + $0x18] sm:$0xff]
        %v700 = vld [vmem:[%s555 + $0x20] sm:$0xff]
        %v701 = vld [vmem:[%s555 + $0x28] sm:$0xff]
        %v702 = vld [vmem:[%s555 + $0x30] sm:$0xff]
        %v703 = vld [vmem:[%s555 + $0x38] sm:$0xff]
        %v704 = vld [vmem:[%s555 + $0x40] sm:$0xff]
        %v705 = vld [vmem:[%s555 + $0x48] sm:$0xff]
        %v706 = vld [vmem:[%s555 + $0x50] sm:$0xff]
        %v707 = vld [vmem:[%s555 + $0x58] sm:$0xff]
        %v708 = vld [vmem:[%s555 + $0x60] sm:$0xff]
        %v709 = vld [vmem:[%s555 + $0x68] sm:$0xff]
        %v710 = vld [vmem:[%s555 + $0x70] sm:$0xff]
        %v711 = vld [vmem:[%s555 + $0x78] sm:$0xff]
        %v712 = vld [vmem:[%s555 + $0x80] sm:$0xff]
        %v713 = vld [vmem:[%s555 + $0x88] sm:$0xff]
        %v714 = vld [vmem:[%s555 + $0x90] sm:$0xff]
        %v715 = vld [vmem:[%s555 + $0x98] sm:$0xff]
        %v716 = vld [vmem:[%s555 + $0xa0] sm:$0xff]
        %v717 = vld [vmem:[%s555 + $0xa8] sm:$0xff]
        %v718 = vld [vmem:[%s555 + $0xb0] sm:$0xff]
        %v719 = vld [vmem:[%s555 + $0xb8] sm:$0xff]
        %v720 = vld [vmem:[%s555 + $0xc0] sm:$0xff]
        %v721 = vld [vmem:[%s555 + $0xc8] sm:$0xff]
        %v722 = vld [vmem:[%s555 + $0xd0] sm:$0xff]
        %v723 = vld [vmem:[%s555 + $0xd8] sm:$0xff]
        %v724 = vld [vmem:[%s555 + $0xe0] sm:$0xff]
        %v725 = vld [vmem:[%s555 + $0xe8] sm:$0xff]
        %v726 = vld [vmem:[%s555 + $0xf0] sm:$0xff]
        %v727 = vld [vmem:[%s555 + $0xf8] sm:$0xff]
        %v728 = vld [vmem:[%s555 + $0x100] sm:$0xff]
        %v729 = vld [vmem:[%s555 + $0x108] sm:$0xff]
        %v730 = vld [vmem:[%s555 + $0x110] sm:$0xff]
        %v731 = vld [vmem:[%s555 + $0x118] sm:$0xff]
        %v732 = vld [vmem:[%s555 + $0x120] sm:$0xff]
        %v733 = vld [vmem:[%s555 + $0x128] sm:$0xff]
        %v734 = vld [vmem:[%s555 + $0x130] sm:$0xff]
        %v735 = vld [vmem:[%s555 + $0x138] sm:$0xff]
        %v736 = vld [vmem:[%s555 + $0x140] sm:$0xff]
        %v737 = vld [vmem:[%s555 + $0x148] sm:$0xff]
        %v738 = vld [vmem:[%s555 + $0x150] sm:$0xff]
        %v739 = vld [vmem:[%s555 + $0x158] sm:$0xff]
        %v740 = vld [vmem:[%s555 + $0x160] sm:$0xff]
        %v741 = vld [vmem:[%s555 + $0x168] sm:$0xff]
        %v742 = vld [vmem:[%s555 + $0x170] sm:$0xff]
        %v743 = vld [vmem:[%s555 + $0x178] sm:$0xff]
        %v744 = vld [vmem:[%s555 + $0x180] sm:$0xff]
        %v745 = vld [vmem:[%s555 + $0x188] sm:$0xff]
        %v746 = vld [vmem:[%s555 + $0x190] sm:$0xff]
        %v747 = vld [vmem:[%s555 + $0x198] sm:$0xff]
        %v748 = vld [vmem:[%s555 + $0x1a0] sm:$0xff]
        %v749 = vld [vmem:[%s555 + $0x1a8] sm:$0xff]
        %v750 = vld [vmem:[%s555 + $0x1b0] sm:$0xff]
        %v751 = vld [vmem:[%s555 + $0x1b8] sm:$0xff]
        %v752 = vld [vmem:[%s555 + $0x1c0] sm:$0xff]
        %v753 = vld [vmem:[%s555 + $0x1c8] sm:$0xff]
        %v754 = vld [vmem:[%s555 + $0x1d0] sm:$0xff]
        %v755 = vld [vmem:[%s555 + $0x1d8] sm:$0xff]
        %v756 = vld [vmem:[%s555 + $0x1e0] sm:$0xff]
        %v757 = vld [vmem:[%s555 + $0x1e8] sm:$0xff]
        %v758 = vld [vmem:[%s555 + $0x1f0] sm:$0xff]
        %v759 = vld [vmem:[%s555 + $0x1f8] sm:$0xff]
        %v760 = vld [vmem:[%s555 + $0x200] sm:$0xff]
        %v761 = vld [vmem:[%s555 + $0x208] sm:$0xff]
        %v762 = vld [vmem:[%s555 + $0x210] sm:$0xff]
        %v763 = vld [vmem:[%s555 + $0x218] sm:$0xff]
        %v764 = vld [vmem:[%s555 + $0x220] sm:$0xff]
        %v765 = vld [vmem:[%s555 + $0x228] sm:$0xff]
        %v766 = vld [vmem:[%s555 + $0x230] sm:$0xff]
        %v767 = vld [vmem:[%s555 + $0x238] sm:$0xff]
        %v768 = vld [vmem:[%s555 + $0x240] sm:$0xff]
        %v769 = vld [vmem:[%s555 + $0x248] sm:$0xff]
        %v770 = vld [vmem:[%s555 + $0x250] sm:$0xff]
        %v771 = vld [vmem:[%s555 + $0x258] sm:$0xff]
        %v772 = vld [vmem:[%s555 + $0x260] sm:$0xff]
        %v773 = vld [vmem:[%s555 + $0x268] sm:$0xff]
        %v774 = vld [vmem:[%s555 + $0x270] sm:$0xff]
        %v775 = vld [vmem:[%s555 + $0x278] sm:$0xff]
        %v776 = vld [vmem:[%s555 + $0x280] sm:$0xff]
        %v777 = vld [vmem:[%s555 + $0x288] sm:$0xff]
        %v778 = vld [vmem:[%s555 + $0x290] sm:$0xff]
        %v779 = vld [vmem:[%s555 + $0x298] sm:$0xff]
        %v780 = vld [vmem:[%s555 + $0x2a0] sm:$0xff]
        %v781 = vld [vmem:[%s555 + $0x2a8] sm:$0xff]
        %v782 = vld [vmem:[%s555 + $0x2b0] sm:$0xff]
        %v783 = vld [vmem:[%s555 + $0x2b8] sm:$0xff]
        %v784 = vld [vmem:[%s555 + $0x2c0] sm:$0xff]
        %v785 = vld [vmem:[%s555 + $0x2c8] sm:$0xff]
        %v786 = vld [vmem:[%s555 + $0x2d0] sm:$0xff]
        %v787 = vld [vmem:[%s555 + $0x2d8] sm:$0xff]
        %v788 = vld [vmem:[%s555 + $0x2e0] sm:$0xff]
        %v789 = vld [vmem:[%s555 + $0x2e8] sm:$0xff]
        %v790 = vld [vmem:[%s555 + $0x2f0] sm:$0xff]
        %v791 = vld [vmem:[%s555 + $0x2f8] sm:$0xff]
        %v792 = vld [vmem:[%s555 + $0x300] sm:$0xff]
        %v793 = vld [vmem:[%s555 + $0x308] sm:$0xff]
        %v794 = vld [vmem:[%s555 + $0x310] sm:$0xff]
        %v795 = vld [vmem:[%s555 + $0x318] sm:$0xff]
        %v796 = vld [vmem:[%s555 + $0x320] sm:$0xff]
        %v797 = vld [vmem:[%s555 + $0x328] sm:$0xff]
        %v798 = vld [vmem:[%s555 + $0x330] sm:$0xff]
        %v799 = vld [vmem:[%s555 + $0x338] sm:$0xff]
        %v800 = vld [vmem:[%s555 + $0x340] sm:$0xff]
        %v801 = vld [vmem:[%s555 + $0x348] sm:$0xff]
        %v802 = vld [vmem:[%s555 + $0x350] sm:$0xff]
        %v803 = vld [vmem:[%s555 + $0x358] sm:$0xff]
        %v804 = vld [vmem:[%s555 + $0x360] sm:$0xff]
        %v805 = vld [vmem:[%s555 + $0x368] sm:$0xff]
        %v806 = vld [vmem:[%s555 + $0x370] sm:$0xff]
        %v807 = vld [vmem:[%s555 + $0x378] sm:$0xff]
        %v808 = vld [vmem:[%s555 + $0x380] sm:$0xff]
        %v809 = vld [vmem:[%s555 + $0x388] sm:$0xff]
        %v810 = vld [vmem:[%s555 + $0x390] sm:$0xff]
        %v811 = vld [vmem:[%s555 + $0x398] sm:$0xff]
        %v812 = vld [vmem:[%s555 + $0x3a0] sm:$0xff]
        %v813 = vld [vmem:[%s555 + $0x3a8] sm:$0xff]
        %v814 = vld [vmem:[%s555 + $0x3b0] sm:$0xff]
        %v815 = vld [vmem:[%s555 + $0x3b8] sm:$0xff]
        %v816 = vld [vmem:[%s555 + $0x3c0] sm:$0xff]
        %v817 = vld [vmem:[%s555 + $0x3c8] sm:$0xff]
        %v818 = vld [vmem:[%s555 + $0x3d0] sm:$0xff]
        %v819 = vld [vmem:[%s555 + $0x3d8] sm:$0xff]
        %v820 = vld [vmem:[%s555 + $0x3e0] sm:$0xff]
        %v821 = vld [vmem:[%s555 + $0x3e8] sm:$0xff]
        %v822 = vld [vmem:[%s555 + $0x3f0] sm:$0xff]
        %v823 = vld [vmem:[%s555 + $0x3f8] sm:$0xff]
        %vm824 = vcmask 261120
        %v826 = vsel %vm824, %v632, 0
        %v829 = vsel %vm824, %v633, 0
        %v832 = vsel %vm824, %v634, 0
        %v835 = vsel %vm824, %v635, 0
        %v838 = vsel %vm824, %v636, 0
        %v841 = vsel %vm824, %v637, 0
        %v844 = vsel %vm824, %v638, 0
        %v847 = vsel %vm824, %v639, 0
        %v850 = vsel %vm824, %v640, 0
        %v853 = vsel %vm824, %v641, 0
        %v856 = vsel %vm824, %v642, 0
        %v859 = vsel %vm824, %v643, 0
        %v862 = vsel %vm824, %v644, 0
        %v865 = vsel %vm824, %v645, 0
        %v868 = vsel %vm824, %v646, 0
        %v871 = vsel %vm824, %v647, 0
        %v874 = vsel %vm824, %v696, 0
        %v877 = vsel %vm824, %v697, 0
        %v880 = vsel %vm824, %v698, 0
        %v883 = vsel %vm824, %v699, 0
        %v886 = vsel %vm824, %v700, 0
        %v889 = vsel %vm824, %v701, 0
        %v892 = vsel %vm824, %v702, 0
        %v895 = vsel %vm824, %v703, 0
        %v898 = vsel %vm824, %v704, 0
        %v901 = vsel %vm824, %v705, 0
        %v904 = vsel %vm824, %v706, 0
        %v907 = vsel %vm824, %v707, 0
        %v910 = vsel %vm824, %v708, 0
        %v913 = vsel %vm824, %v709, 0
        %v916 = vsel %vm824, %v710, 0
        %v919 = vsel %vm824, %v711, 0
        %v922 = vsel %vm824, %v712, 0
        %v925 = vsel %vm824, %v713, 0
        %v928 = vsel %vm824, %v714, 0
        %v931 = vsel %vm824, %v715, 0
        %v934 = vsel %vm824, %v716, 0
        %v937 = vsel %vm824, %v717, 0
        %v940 = vsel %vm824, %v718, 0
        %v943 = vsel %vm824, %v719, 0
        %v946 = vsel %vm824, %v720, 0
        %v949 = vsel %vm824, %v721, 0
        %v952 = vsel %vm824, %v722, 0
        %v955 = vsel %vm824, %v723, 0
        %v958 = vsel %vm824, %v724, 0
        %v961 = vsel %vm824, %v725, 0
        %v964 = vsel %vm824, %v726, 0
        %v967 = vsel %vm824, %v727, 0
        %969 = vmatprep.subr.mxu0 0.0
        %970 = vmatpush1.xpose.msra.mxu0 %v919
        %971 = vmatprep.subr.mxu0 0.0
        %972 = vmatpush1.xpose.msra.mxu0 %v916
        %973 = vmatprep.subr.mxu0 0.0
        %974 = vmatpush1.xpose.msra.mxu0 %v913
        %975 = vmatprep.subr.mxu0 0.0
        %976 = vmatpush1.xpose.msra.mxu0 %v910
        %977 = vmatprep.subr.mxu0 0.0
        %978 = vmatpush1.xpose.msra.mxu0 %v907
        %979 = vmatprep.subr.mxu0 0.0
        %980 = vmatpush1.xpose.msra.mxu0 %v904
        %981 = vmatprep.subr.mxu0 0.0
        %982 = vmatpush1.xpose.msra.mxu0 %v901
        %983 = vmatprep.subr.mxu0 0.0
        %984 = vmatpush1.xpose.msra.mxu0 %v898
        %985 = vmatprep.subr.mxu0 0.0
        %986 = vmatpush1.xpose.msra.mxu0 %v895
        %987 = vmatprep.subr.mxu0 0.0
        %988 = vmatpush1.xpose.msra.mxu0 %v892
        %989 = vmatprep.subr.mxu0 0.0
        %990 = vmatpush1.xpose.msra.mxu0 %v889
        %991 = vmatprep.subr.mxu0 0.0
        %992 = vmatpush1.xpose.msra.mxu0 %v886
        %993 = vmatprep.subr.mxu0 0.0
        %994 = vmatpush1.xpose.msra.mxu0 %v883
        %995 = vmatprep.subr.mxu0 0.0
        %996 = vmatpush1.xpose.msra.mxu0 %v880
        %997 = vmatprep.subr.mxu0 0.0
        %998 = vmatpush1.xpose.msra.mxu0 %v877
        %999 = vmatprep.subr.mxu0 0.0
        %1000 = vmatpush1.xpose.msra.mxu0 %v874
        %1001 = vmatprep.subr.mxu0 0.0
        %1002 = vmatpush2.xpose.msra.mxu0 %v967
        %1003 = vmatprep.subr.mxu0 0.0
        %1004 = vmatpush2.xpose.msra.mxu0 %v964
        %1005 = vmatprep.subr.mxu0 0.0
        %1006 = vmatpush2.xpose.msra.mxu0 %v961
        %1007 = vmatprep.subr.mxu0 0.0
        %1008 = vmatpush2.xpose.msra.mxu0 %v958
        %1009 = vmatprep.subr.mxu0 0.0
        %1010 = vmatpush2.xpose.msra.mxu0 %v955
        %1011 = vmatprep.subr.mxu0 0.0
        %1012 = vmatpush2.xpose.msra.mxu0 %v952
        %1013 = vmatprep.subr.mxu0 0.0
        %1014 = vmatpush2.xpose.msra.mxu0 %v949
        %1015 = vmatprep.subr.mxu0 0.0
        %1016 = vmatpush2.xpose.msra.mxu0 %v946
        %1017 = vmatprep.subr.mxu0 0.0
        %1018 = vmatpush2.xpose.msra.mxu0 %v943
        %1019 = vmatprep.subr.mxu0 0.0
        %1020 = vmatpush2.xpose.msra.mxu0 %v940
        %1021 = vmatprep.subr.mxu0 0.0
        %1022 = vmatpush2.xpose.msra.mxu0 %v937
        %1023 = vmatprep.subr.mxu0 0.0
        %1024 = vmatpush2.xpose.msra.mxu0 %v934
        %1025 = vmatprep.subr.mxu0 0.0
        %1026 = vmatpush2.xpose.msra.mxu0 %v931
        %1027 = vmatprep.subr.mxu0 0.0
        %1028 = vmatpush2.xpose.msra.mxu0 %v928
        %1029 = vmatprep.subr.mxu0 0.0
        %1030 = vmatpush2.xpose.msra.mxu0 %v925
        %1031 = vmatprep.subr.mxu0 0.0
        %1032 = vmatpush2.xpose.msra.mxu0 %v922
        %1033 = vmatprep.mubr.f32.mxu0 0.0
        %1034 = vmatmul.mubr.f32.gmra.mxu0 %v826
        %v1035 = vpop.f32.mrf.mxu0
        %v1036 = vadd.f32 0.0, %v1035
        %v1037 = vpop.f32.mrf.mxu0
        %v1038 = vadd.f32 0.0, %v1037
        %1039 = vmatprep.mubr.f32.mxu0 0.0
        %1040 = vmatmul.mubr.f32.gmra.mxu0 %v829
        %v1041 = vpop.f32.mrf.mxu0
        %v1042 = vadd.f32 0.0, %v1041
        %v1043 = vpop.f32.mrf.mxu0
        %v1044 = vadd.f32 0.0, %v1043
        %1045 = vmatprep.mubr.f32.mxu0 0.0
        %1046 = vmatmul.mubr.f32.gmra.mxu0 %v832
        %v1047 = vpop.f32.mrf.mxu0
        %v1048 = vadd.f32 0.0, %v1047
        %v1049 = vpop.f32.mrf.mxu0
        %v1050 = vadd.f32 0.0, %v1049
        %1051 = vmatprep.mubr.f32.mxu0 0.0
        %1052 = vmatmul.mubr.f32.gmra.mxu0 %v835
        %v1053 = vpop.f32.mrf.mxu0
        %v1054 = vadd.f32 0.0, %v1053
        %v1055 = vpop.f32.mrf.mxu0
        %v1056 = vadd.f32 0.0, %v1055
        %1057 = vmatprep.mubr.f32.mxu0 0.0
        %1058 = vmatmul.mubr.f32.gmra.mxu0 %v838
        %v1059 = vpop.f32.mrf.mxu0
        %v1060 = vadd.f32 0.0, %v1059
        %v1061 = vpop.f32.mrf.mxu0
        %v1062 = vadd.f32 0.0, %v1061
        %1063 = vmatprep.mubr.f32.mxu0 0.0
        %1064 = vmatmul.mubr.f32.gmra.mxu0 %v841
        %v1065 = vpop.f32.mrf.mxu0
        %v1066 = vadd.f32 0.0, %v1065
        %v1067 = vpop.f32.mrf.mxu0
        %v1068 = vadd.f32 0.0, %v1067
        %1069 = vmatprep.mubr.f32.mxu0 0.0
        %1070 = vmatmul.mubr.f32.gmra.mxu0 %v844
        %v1071 = vpop.f32.mrf.mxu0
        %v1072 = vadd.f32 0.0, %v1071
        %v1073 = vpop.f32.mrf.mxu0
        %v1074 = vadd.f32 0.0, %v1073
        %1075 = vmatprep.mubr.f32.mxu0 0.0
        %1076 = vmatmul.mubr.f32.gmra.mxu0 %v847
        %v1077 = vpop.f32.mrf.mxu0
        %v1078 = vadd.f32 0.0, %v1077
        %v1079 = vpop.f32.mrf.mxu0
        %v1080 = vadd.f32 0.0, %v1079
        %1081 = vmatprep.mubr.f32.mxu0 0.0
        %1082 = vmatmul.mubr.f32.gmra.mxu0 %v850
        %v1083 = vpop.f32.mrf.mxu0
        %v1084 = vadd.f32 0.0, %v1083
        %v1085 = vpop.f32.mrf.mxu0
        %v1086 = vadd.f32 0.0, %v1085
        %1087 = vmatprep.mubr.f32.mxu0 0.0
        %1088 = vmatmul.mubr.f32.gmra.mxu0 %v853
        %v1089 = vpop.f32.mrf.mxu0
        %v1090 = vadd.f32 0.0, %v1089
        %v1091 = vpop.f32.mrf.mxu0
        %v1092 = vadd.f32 0.0, %v1091
        %1093 = vmatprep.mubr.f32.mxu0 0.0
        %1094 = vmatmul.mubr.f32.gmra.mxu0 %v856
        %v1095 = vpop.f32.mrf.mxu0
        %v1096 = vadd.f32 0.0, %v1095
        %v1097 = vpop.f32.mrf.mxu0
        %v1098 = vadd.f32 0.0, %v1097
        %1099 = vmatprep.mubr.f32.mxu0 0.0
        %1100 = vmatmul.mubr.f32.gmra.mxu0 %v859
        %v1101 = vpop.f32.mrf.mxu0
        %v1102 = vadd.f32 0.0, %v1101
        %v1103 = vpop.f32.mrf.mxu0
        %v1104 = vadd.f32 0.0, %v1103
        %1105 = vmatprep.mubr.f32.mxu0 0.0
        %1106 = vmatmul.mubr.f32.gmra.mxu0 %v862
        %v1107 = vpop.f32.mrf.mxu0
        %v1108 = vadd.f32 0.0, %v1107
        %v1109 = vpop.f32.mrf.mxu0
        %v1110 = vadd.f32 0.0, %v1109
        %1111 = vmatprep.mubr.f32.mxu0 0.0
        %1112 = vmatmul.mubr.f32.gmra.mxu0 %v865
        %v1113 = vpop.f32.mrf.mxu0
        %v1114 = vadd.f32 0.0, %v1113
        %v1115 = vpop.f32.mrf.mxu0
        %v1116 = vadd.f32 0.0, %v1115
        %1117 = vmatprep.mubr.f32.mxu0 0.0
        %1118 = vmatmul.mubr.f32.gmra.mxu0 %v868
        %v1119 = vpop.f32.mrf.mxu0
        %v1120 = vadd.f32 0.0, %v1119
        %v1121 = vpop.f32.mrf.mxu0
        %v1122 = vadd.f32 0.0, %v1121
        %1123 = vmatprep.mubr.f32.mxu0 0.0
        %1124 = vmatmul.mubr.f32.gmra.mxu0 %v871
        %v1125 = vpop.f32.mrf.mxu0
        %v1126 = vadd.f32 0.0, %v1125
        %v1127 = vpop.f32.mrf.mxu0
        %v1128 = vadd.f32 0.0, %v1127
        %1129 = vdwg.mxu0
        %v1131 = vsel %vm824, %v648, 0
        %v1134 = vsel %vm824, %v649, 0
        %v1137 = vsel %vm824, %v650, 0
        %v1140 = vsel %vm824, %v651, 0
        %v1143 = vsel %vm824, %v652, 0
        %v1146 = vsel %vm824, %v653, 0
        %v1149 = vsel %vm824, %v654, 0
        %v1152 = vsel %vm824, %v655, 0
        %v1155 = vsel %vm824, %v656, 0
        %v1158 = vsel %vm824, %v657, 0
        %v1161 = vsel %vm824, %v658, 0
        %v1164 = vsel %vm824, %v659, 0
        %v1167 = vsel %vm824, %v660, 0
        %v1170 = vsel %vm824, %v661, 0
        %v1173 = vsel %vm824, %v662, 0
        %v1176 = vsel %vm824, %v663, 0
        %v1179 = vsel %vm824, %v728, 0
        %v1182 = vsel %vm824, %v729, 0
        %v1185 = vsel %vm824, %v730, 0
        %v1188 = vsel %vm824, %v731, 0
        %v1191 = vsel %vm824, %v732, 0
        %v1194 = vsel %vm824, %v733, 0
        %v1197 = vsel %vm824, %v734, 0
        %v1200 = vsel %vm824, %v735, 0
        %v1203 = vsel %vm824, %v736, 0
        %v1206 = vsel %vm824, %v737, 0
        %v1209 = vsel %vm824, %v738, 0
        %v1212 = vsel %vm824, %v739, 0
        %v1215 = vsel %vm824, %v740, 0
        %v1218 = vsel %vm824, %v741, 0
        %v1221 = vsel %vm824, %v742, 0
        %v1224 = vsel %vm824, %v743, 0
        %v1227 = vsel %vm824, %v744, 0
        %v1230 = vsel %vm824, %v745, 0
        %v1233 = vsel %vm824, %v746, 0
        %v1236 = vsel %vm824, %v747, 0
        %v1239 = vsel %vm824, %v748, 0
        %v1242 = vsel %vm824, %v749, 0
        %v1245 = vsel %vm824, %v750, 0
        %v1248 = vsel %vm824, %v751, 0
        %v1251 = vsel %vm824, %v752, 0
        %v1254 = vsel %vm824, %v753, 0
        %v1257 = vsel %vm824, %v754, 0
        %v1260 = vsel %vm824, %v755, 0
        %v1263 = vsel %vm824, %v756, 0
        %v1266 = vsel %vm824, %v757, 0
        %v1269 = vsel %vm824, %v758, 0
        %v1272 = vsel %vm824, %v759, 0
        %1274 = vmatprep.subr.mxu0 0.0
        %1275 = vmatpush1.xpose.msra.mxu0 %v1224
        %1276 = vmatprep.subr.mxu0 0.0
        %1277 = vmatpush1.xpose.msra.mxu0 %v1221
        %1278 = vmatprep.subr.mxu0 0.0
        %1279 = vmatpush1.xpose.msra.mxu0 %v1218
        %1280 = vmatprep.subr.mxu0 0.0
        %1281 = vmatpush1.xpose.msra.mxu0 %v1215
        %1282 = vmatprep.subr.mxu0 0.0
        %1283 = vmatpush1.xpose.msra.mxu0 %v1212
        %1284 = vmatprep.subr.mxu0 0.0
        %1285 = vmatpush1.xpose.msra.mxu0 %v1209
        %1286 = vmatprep.subr.mxu0 0.0
        %1287 = vmatpush1.xpose.msra.mxu0 %v1206
        %1288 = vmatprep.subr.mxu0 0.0
        %1289 = vmatpush1.xpose.msra.mxu0 %v1203
        %1290 = vmatprep.subr.mxu0 0.0
        %1291 = vmatpush1.xpose.msra.mxu0 %v1200
        %1292 = vmatprep.subr.mxu0 0.0
        %1293 = vmatpush1.xpose.msra.mxu0 %v1197
        %1294 = vmatprep.subr.mxu0 0.0
        %1295 = vmatpush1.xpose.msra.mxu0 %v1194
        %1296 = vmatprep.subr.mxu0 0.0
        %1297 = vmatpush1.xpose.msra.mxu0 %v1191
        %1298 = vmatprep.subr.mxu0 0.0
        %1299 = vmatpush1.xpose.msra.mxu0 %v1188
        %1300 = vmatprep.subr.mxu0 0.0
        %1301 = vmatpush1.xpose.msra.mxu0 %v1185
        %1302 = vmatprep.subr.mxu0 0.0
        %1303 = vmatpush1.xpose.msra.mxu0 %v1182
        %1304 = vmatprep.subr.mxu0 0.0
        %1305 = vmatpush1.xpose.msra.mxu0 %v1179
        %1306 = vmatprep.subr.mxu0 0.0
        %1307 = vmatpush2.xpose.msra.mxu0 %v1272
        %1308 = vmatprep.subr.mxu0 0.0
        %1309 = vmatpush2.xpose.msra.mxu0 %v1269
        %1310 = vmatprep.subr.mxu0 0.0
        %1311 = vmatpush2.xpose.msra.mxu0 %v1266
        %1312 = vmatprep.subr.mxu0 0.0
        %1313 = vmatpush2.xpose.msra.mxu0 %v1263
        %1314 = vmatprep.subr.mxu0 0.0
        %1315 = vmatpush2.xpose.msra.mxu0 %v1260
        %1316 = vmatprep.subr.mxu0 0.0
        %1317 = vmatpush2.xpose.msra.mxu0 %v1257
        %1318 = vmatprep.subr.mxu0 0.0
        %1319 = vmatpush2.xpose.msra.mxu0 %v1254
        %1320 = vmatprep.subr.mxu0 0.0
        %1321 = vmatpush2.xpose.msra.mxu0 %v1251
        %1322 = vmatprep.subr.mxu0 0.0
        %1323 = vmatpush2.xpose.msra.mxu0 %v1248
        %1324 = vmatprep.subr.mxu0 0.0
        %1325 = vmatpush2.xpose.msra.mxu0 %v1245
        %1326 = vmatprep.subr.mxu0 0.0
        %1327 = vmatpush2.xpose.msra.mxu0 %v1242
        %1328 = vmatprep.subr.mxu0 0.0
        %1329 = vmatpush2.xpose.msra.mxu0 %v1239
        %1330 = vmatprep.subr.mxu0 0.0
        %1331 = vmatpush2.xpose.msra.mxu0 %v1236
        %1332 = vmatprep.subr.mxu0 0.0
        %1333 = vmatpush2.xpose.msra.mxu0 %v1233
        %1334 = vmatprep.subr.mxu0 0.0
        %1335 = vmatpush2.xpose.msra.mxu0 %v1230
        %1336 = vmatprep.subr.mxu0 0.0
        %1337 = vmatpush2.xpose.msra.mxu0 %v1227
        %1338 = vmatprep.mubr.f32.mxu0 0.0
        %1339 = vmatmul.mubr.f32.gmra.mxu0 %v1131
        %v1340 = vpop.f32.mrf.mxu0
        %v1341 = vadd.f32 0.0, %v1340
        %v1342 = vpop.f32.mrf.mxu0
        %v1343 = vadd.f32 0.0, %v1342
        %1344 = vmatprep.mubr.f32.mxu0 0.0
        %1345 = vmatmul.mubr.f32.gmra.mxu0 %v1134
        %v1346 = vpop.f32.mrf.mxu0
        %v1347 = vadd.f32 0.0, %v1346
        %v1348 = vpop.f32.mrf.mxu0
        %v1349 = vadd.f32 0.0, %v1348
        %1350 = vmatprep.mubr.f32.mxu0 0.0
        %1351 = vmatmul.mubr.f32.gmra.mxu0 %v1137
        %v1352 = vpop.f32.mrf.mxu0
        %v1353 = vadd.f32 0.0, %v1352
        %v1354 = vpop.f32.mrf.mxu0
        %v1355 = vadd.f32 0.0, %v1354
        %1356 = vmatprep.mubr.f32.mxu0 0.0
        %1357 = vmatmul.mubr.f32.gmra.mxu0 %v1140
        %v1358 = vpop.f32.mrf.mxu0
        %v1359 = vadd.f32 0.0, %v1358
        %v1360 = vpop.f32.mrf.mxu0
        %v1361 = vadd.f32 0.0, %v1360
        %1362 = vmatprep.mubr.f32.mxu0 0.0
        %1363 = vmatmul.mubr.f32.gmra.mxu0 %v1143
        %v1364 = vpop.f32.mrf.mxu0
        %v1365 = vadd.f32 0.0, %v1364
        %v1366 = vpop.f32.mrf.mxu0
        %v1367 = vadd.f32 0.0, %v1366
        %1368 = vmatprep.mubr.f32.mxu0 0.0
        %1369 = vmatmul.mubr.f32.gmra.mxu0 %v1146
        %v1370 = vpop.f32.mrf.mxu0
        %v1371 = vadd.f32 0.0, %v1370
        %v1372 = vpop.f32.mrf.mxu0
        %v1373 = vadd.f32 0.0, %v1372
        %1374 = vmatprep.mubr.f32.mxu0 0.0
        %1375 = vmatmul.mubr.f32.gmra.mxu0 %v1149
        %v1376 = vpop.f32.mrf.mxu0
        %v1377 = vadd.f32 0.0, %v1376
        %v1378 = vpop.f32.mrf.mxu0
        %v1379 = vadd.f32 0.0, %v1378
        %1380 = vmatprep.mubr.f32.mxu0 0.0
        %1381 = vmatmul.mubr.f32.gmra.mxu0 %v1152
        %v1382 = vpop.f32.mrf.mxu0
        %v1383 = vadd.f32 0.0, %v1382
        %v1384 = vpop.f32.mrf.mxu0
        %v1385 = vadd.f32 0.0, %v1384
        %1386 = vmatprep.mubr.f32.mxu0 0.0
        %1387 = vmatmul.mubr.f32.gmra.mxu0 %v1155
        %v1388 = vpop.f32.mrf.mxu0
        %v1389 = vadd.f32 0.0, %v1388
        %v1390 = vpop.f32.mrf.mxu0
        %v1391 = vadd.f32 0.0, %v1390
        %1392 = vmatprep.mubr.f32.mxu0 0.0
        %1393 = vmatmul.mubr.f32.gmra.mxu0 %v1158
        %v1394 = vpop.f32.mrf.mxu0
        %v1395 = vadd.f32 0.0, %v1394
        %v1396 = vpop.f32.mrf.mxu0
        %v1397 = vadd.f32 0.0, %v1396
        %1398 = vmatprep.mubr.f32.mxu0 0.0
        %1399 = vmatmul.mubr.f32.gmra.mxu0 %v1161
        %v1400 = vpop.f32.mrf.mxu0
        %v1401 = vadd.f32 0.0, %v1400
        %v1402 = vpop.f32.mrf.mxu0
        %v1403 = vadd.f32 0.0, %v1402
        %1404 = vmatprep.mubr.f32.mxu0 0.0
        %1405 = vmatmul.mubr.f32.gmra.mxu0 %v1164
        %v1406 = vpop.f32.mrf.mxu0
        %v1407 = vadd.f32 0.0, %v1406
        %v1408 = vpop.f32.mrf.mxu0
        %v1409 = vadd.f32 0.0, %v1408
        %1410 = vmatprep.mubr.f32.mxu0 0.0
        %1411 = vmatmul.mubr.f32.gmra.mxu0 %v1167
        %v1412 = vpop.f32.mrf.mxu0
        %v1413 = vadd.f32 0.0, %v1412
        %v1414 = vpop.f32.mrf.mxu0
        %v1415 = vadd.f32 0.0, %v1414
        %1416 = vmatprep.mubr.f32.mxu0 0.0
        %1417 = vmatmul.mubr.f32.gmra.mxu0 %v1170
        %v1418 = vpop.f32.mrf.mxu0
        %v1419 = vadd.f32 0.0, %v1418
        %v1420 = vpop.f32.mrf.mxu0
        %v1421 = vadd.f32 0.0, %v1420
        %1422 = vmatprep.mubr.f32.mxu0 0.0
        %1423 = vmatmul.mubr.f32.gmra.mxu0 %v1173
        %v1424 = vpop.f32.mrf.mxu0
        %v1425 = vadd.f32 0.0, %v1424
        %v1426 = vpop.f32.mrf.mxu0
        %v1427 = vadd.f32 0.0, %v1426
        %1428 = vmatprep.mubr.f32.mxu0 0.0
        %1429 = vmatmul.mubr.f32.gmra.mxu0 %v1176
        %v1430 = vpop.f32.mrf.mxu0
        %v1431 = vadd.f32 0.0, %v1430
        %v1432 = vpop.f32.mrf.mxu0
        %v1433 = vadd.f32 0.0, %v1432
        %1434 = vdwg.mxu0
        %v1436 = vsel %vm824, %v664, 0
        %v1439 = vsel %vm824, %v665, 0
        %v1442 = vsel %vm824, %v666, 0
        %v1445 = vsel %vm824, %v667, 0
        %v1448 = vsel %vm824, %v668, 0
        %v1451 = vsel %vm824, %v669, 0
        %v1454 = vsel %vm824, %v670, 0
        %v1457 = vsel %vm824, %v671, 0
        %v1460 = vsel %vm824, %v672, 0
        %v1463 = vsel %vm824, %v673, 0
        %v1466 = vsel %vm824, %v674, 0
        %v1469 = vsel %vm824, %v675, 0
        %v1472 = vsel %vm824, %v676, 0
        %v1475 = vsel %vm824, %v677, 0
        %v1478 = vsel %vm824, %v678, 0
        %v1481 = vsel %vm824, %v679, 0
        %v1484 = vsel %vm824, %v760, 0
        %v1487 = vsel %vm824, %v761, 0
        %v1490 = vsel %vm824, %v762, 0
        %v1493 = vsel %vm824, %v763, 0
        %v1496 = vsel %vm824, %v764, 0
        %v1499 = vsel %vm824, %v765, 0
        %v1502 = vsel %vm824, %v766, 0
        %v1505 = vsel %vm824, %v767, 0
        %v1508 = vsel %vm824, %v768, 0
        %v1511 = vsel %vm824, %v769, 0
        %v1514 = vsel %vm824, %v770, 0
        %v1517 = vsel %vm824, %v771, 0
        %v1520 = vsel %vm824, %v772, 0
        %v1523 = vsel %vm824, %v773, 0
        %v1526 = vsel %vm824, %v774, 0
        %v1529 = vsel %vm824, %v775, 0
        %v1532 = vsel %vm824, %v776, 0
        %v1535 = vsel %vm824, %v777, 0
        %v1538 = vsel %vm824, %v778, 0
        %v1541 = vsel %vm824, %v779, 0
        %v1544 = vsel %vm824, %v780, 0
        %v1547 = vsel %vm824, %v781, 0
        %v1550 = vsel %vm824, %v782, 0
        %v1553 = vsel %vm824, %v783, 0
        %v1556 = vsel %vm824, %v784, 0
        %v1559 = vsel %vm824, %v785, 0
        %v1562 = vsel %vm824, %v786, 0
        %v1565 = vsel %vm824, %v787, 0
        %v1568 = vsel %vm824, %v788, 0
        %v1571 = vsel %vm824, %v789, 0
        %v1574 = vsel %vm824, %v790, 0
        %v1577 = vsel %vm824, %v791, 0
        %1579 = vmatprep.subr.mxu0 0.0
        %1580 = vmatpush1.xpose.msra.mxu0 %v1529
        %1581 = vmatprep.subr.mxu0 0.0
        %1582 = vmatpush1.xpose.msra.mxu0 %v1526
        %1583 = vmatprep.subr.mxu0 0.0
        %1584 = vmatpush1.xpose.msra.mxu0 %v1523
        %1585 = vmatprep.subr.mxu0 0.0
        %1586 = vmatpush1.xpose.msra.mxu0 %v1520
        %1587 = vmatprep.subr.mxu0 0.0
        %1588 = vmatpush1.xpose.msra.mxu0 %v1517
        %1589 = vmatprep.subr.mxu0 0.0
        %1590 = vmatpush1.xpose.msra.mxu0 %v1514
        %1591 = vmatprep.subr.mxu0 0.0
        %1592 = vmatpush1.xpose.msra.mxu0 %v1511
        %1593 = vmatprep.subr.mxu0 0.0
        %1594 = vmatpush1.xpose.msra.mxu0 %v1508
        %1595 = vmatprep.subr.mxu0 0.0
        %1596 = vmatpush1.xpose.msra.mxu0 %v1505
        %1597 = vmatprep.subr.mxu0 0.0
        %1598 = vmatpush1.xpose.msra.mxu0 %v1502
        %1599 = vmatprep.subr.mxu0 0.0
        %1600 = vmatpush1.xpose.msra.mxu0 %v1499
        %1601 = vmatprep.subr.mxu0 0.0
        %1602 = vmatpush1.xpose.msra.mxu0 %v1496
        %1603 = vmatprep.subr.mxu0 0.0
        %1604 = vmatpush1.xpose.msra.mxu0 %v1493
        %1605 = vmatprep.subr.mxu0 0.0
        %1606 = vmatpush1.xpose.msra.mxu0 %v1490
        %1607 = vmatprep.subr.mxu0 0.0
        %1608 = vmatpush1.xpose.msra.mxu0 %v1487
        %1609 = vmatprep.subr.mxu0 0.0
        %1610 = vmatpush1.xpose.msra.mxu0 %v1484
        %1611 = vmatprep.subr.mxu0 0.0
        %1612 = vmatpush2.xpose.msra.mxu0 %v1577
        %1613 = vmatprep.subr.mxu0 0.0
        %1614 = vmatpush2.xpose.msra.mxu0 %v1574
        %1615 = vmatprep.subr.mxu0 0.0
        %1616 = vmatpush2.xpose.msra.mxu0 %v1571
        %1617 = vmatprep.subr.mxu0 0.0
        %1618 = vmatpush2.xpose.msra.mxu0 %v1568
        %1619 = vmatprep.subr.mxu0 0.0
        %1620 = vmatpush2.xpose.msra.mxu0 %v1565
        %1621 = vmatprep.subr.mxu0 0.0
        %1622 = vmatpush2.xpose.msra.mxu0 %v1562
        %1623 = vmatprep.subr.mxu0 0.0
        %1624 = vmatpush2.xpose.msra.mxu0 %v1559
        %1625 = vmatprep.subr.mxu0 0.0
        %1626 = vmatpush2.xpose.msra.mxu0 %v1556
        %1627 = vmatprep.subr.mxu0 0.0
        %1628 = vmatpush2.xpose.msra.mxu0 %v1553
        %1629 = vmatprep.subr.mxu0 0.0
        %1630 = vmatpush2.xpose.msra.mxu0 %v1550
        %1631 = vmatprep.subr.mxu0 0.0
        %1632 = vmatpush2.xpose.msra.mxu0 %v1547
        %1633 = vmatprep.subr.mxu0 0.0
        %1634 = vmatpush2.xpose.msra.mxu0 %v1544
        %1635 = vmatprep.subr.mxu0 0.0
        %1636 = vmatpush2.xpose.msra.mxu0 %v1541
        %1637 = vmatprep.subr.mxu0 0.0
        %1638 = vmatpush2.xpose.msra.mxu0 %v1538
        %1639 = vmatprep.subr.mxu0 0.0
        %1640 = vmatpush2.xpose.msra.mxu0 %v1535
        %1641 = vmatprep.subr.mxu0 0.0
        %1642 = vmatpush2.xpose.msra.mxu0 %v1532
        %1643 = vmatprep.mubr.f32.mxu0 0.0
        %1644 = vmatmul.mubr.f32.gmra.mxu0 %v1436
        %v1645 = vpop.f32.mrf.mxu0
        %v1646 = vadd.f32 0.0, %v1645
        %v1647 = vpop.f32.mrf.mxu0
        %v1648 = vadd.f32 0.0, %v1647
        %1649 = vmatprep.mubr.f32.mxu0 0.0
        %1650 = vmatmul.mubr.f32.gmra.mxu0 %v1439
        %v1651 = vpop.f32.mrf.mxu0
        %v1652 = vadd.f32 0.0, %v1651
        %v1653 = vpop.f32.mrf.mxu0
        %v1654 = vadd.f32 0.0, %v1653
        %1655 = vmatprep.mubr.f32.mxu0 0.0
        %1656 = vmatmul.mubr.f32.gmra.mxu0 %v1442
        %v1657 = vpop.f32.mrf.mxu0
        %v1658 = vadd.f32 0.0, %v1657
        %v1659 = vpop.f32.mrf.mxu0
        %v1660 = vadd.f32 0.0, %v1659
        %1661 = vmatprep.mubr.f32.mxu0 0.0
        %1662 = vmatmul.mubr.f32.gmra.mxu0 %v1445
        %v1663 = vpop.f32.mrf.mxu0
        %v1664 = vadd.f32 0.0, %v1663
        %v1665 = vpop.f32.mrf.mxu0
        %v1666 = vadd.f32 0.0, %v1665
        %1667 = vmatprep.mubr.f32.mxu0 0.0
        %1668 = vmatmul.mubr.f32.gmra.mxu0 %v1448
        %v1669 = vpop.f32.mrf.mxu0
        %v1670 = vadd.f32 0.0, %v1669
        %v1671 = vpop.f32.mrf.mxu0
        %v1672 = vadd.f32 0.0, %v1671
        %1673 = vmatprep.mubr.f32.mxu0 0.0
        %1674 = vmatmul.mubr.f32.gmra.mxu0 %v1451
        %v1675 = vpop.f32.mrf.mxu0
        %v1676 = vadd.f32 0.0, %v1675
        %v1677 = vpop.f32.mrf.mxu0
        %v1678 = vadd.f32 0.0, %v1677
        %1679 = vmatprep.mubr.f32.mxu0 0.0
        %1680 = vmatmul.mubr.f32.gmra.mxu0 %v1454
        %v1681 = vpop.f32.mrf.mxu0
        %v1682 = vadd.f32 0.0, %v1681
        %v1683 = vpop.f32.mrf.mxu0
        %v1684 = vadd.f32 0.0, %v1683
        %1685 = vmatprep.mubr.f32.mxu0 0.0
        %1686 = vmatmul.mubr.f32.gmra.mxu0 %v1457
        %v1687 = vpop.f32.mrf.mxu0
        %v1688 = vadd.f32 0.0, %v1687
        %v1689 = vpop.f32.mrf.mxu0
        %v1690 = vadd.f32 0.0, %v1689
        %1691 = vmatprep.mubr.f32.mxu0 0.0
        %1692 = vmatmul.mubr.f32.gmra.mxu0 %v1460
        %v1693 = vpop.f32.mrf.mxu0
        %v1694 = vadd.f32 0.0, %v1693
        %v1695 = vpop.f32.mrf.mxu0
        %v1696 = vadd.f32 0.0, %v1695
        %1697 = vmatprep.mubr.f32.mxu0 0.0
        %1698 = vmatmul.mubr.f32.gmra.mxu0 %v1463
        %v1699 = vpop.f32.mrf.mxu0
        %v1700 = vadd.f32 0.0, %v1699
        %v1701 = vpop.f32.mrf.mxu0
        %v1702 = vadd.f32 0.0, %v1701
        %1703 = vmatprep.mubr.f32.mxu0 0.0
        %1704 = vmatmul.mubr.f32.gmra.mxu0 %v1466
        %v1705 = vpop.f32.mrf.mxu0
        %v1706 = vadd.f32 0.0, %v1705
        %v1707 = vpop.f32.mrf.mxu0
        %v1708 = vadd.f32 0.0, %v1707
        %1709 = vmatprep.mubr.f32.mxu0 0.0
        %1710 = vmatmul.mubr.f32.gmra.mxu0 %v1469
        %v1711 = vpop.f32.mrf.mxu0
        %v1712 = vadd.f32 0.0, %v1711
        %v1713 = vpop.f32.mrf.mxu0
        %v1714 = vadd.f32 0.0, %v1713
        %1715 = vmatprep.mubr.f32.mxu0 0.0
        %1716 = vmatmul.mubr.f32.gmra.mxu0 %v1472
        %v1717 = vpop.f32.mrf.mxu0
        %v1718 = vadd.f32 0.0, %v1717
        %v1719 = vpop.f32.mrf.mxu0
        %v1720 = vadd.f32 0.0, %v1719
        %1721 = vmatprep.mubr.f32.mxu0 0.0
        %1722 = vmatmul.mubr.f32.gmra.mxu0 %v1475
        %v1723 = vpop.f32.mrf.mxu0
        %v1724 = vadd.f32 0.0, %v1723
        %v1725 = vpop.f32.mrf.mxu0
        %v1726 = vadd.f32 0.0, %v1725
        %1727 = vmatprep.mubr.f32.mxu0 0.0
        %1728 = vmatmul.mubr.f32.gmra.mxu0 %v1478
        %v1729 = vpop.f32.mrf.mxu0
        %v1730 = vadd.f32 0.0, %v1729
        %v1731 = vpop.f32.mrf.mxu0
        %v1732 = vadd.f32 0.0, %v1731
        %1733 = vmatprep.mubr.f32.mxu0 0.0
        %1734 = vmatmul.mubr.f32.gmra.mxu0 %v1481
        %v1735 = vpop.f32.mrf.mxu0
        %v1736 = vadd.f32 0.0, %v1735
        %v1737 = vpop.f32.mrf.mxu0
        %v1738 = vadd.f32 0.0, %v1737
        %1739 = vdwg.mxu0
        %v1741 = vsel %vm824, %v680, 0
        %v1744 = vsel %vm824, %v681, 0
        %v1747 = vsel %vm824, %v682, 0
        %v1750 = vsel %vm824, %v683, 0
        %v1753 = vsel %vm824, %v684, 0
        %v1756 = vsel %vm824, %v685, 0
        %v1759 = vsel %vm824, %v686, 0
        %v1762 = vsel %vm824, %v687, 0
        %v1765 = vsel %vm824, %v688, 0
        %v1768 = vsel %vm824, %v689, 0
        %v1771 = vsel %vm824, %v690, 0
        %v1774 = vsel %vm824, %v691, 0
        %v1777 = vsel %vm824, %v692, 0
        %v1780 = vsel %vm824, %v693, 0
        %v1783 = vsel %vm824, %v694, 0
        %v1786 = vsel %vm824, %v695, 0
        %v1789 = vsel %vm824, %v792, 0
        %v1792 = vsel %vm824, %v793, 0
        %v1795 = vsel %vm824, %v794, 0
        %v1798 = vsel %vm824, %v795, 0
        %v1801 = vsel %vm824, %v796, 0
        %v1804 = vsel %vm824, %v797, 0
        %v1807 = vsel %vm824, %v798, 0
        %v1810 = vsel %vm824, %v799, 0
        %v1813 = vsel %vm824, %v800, 0
        %v1816 = vsel %vm824, %v801, 0
        %v1819 = vsel %vm824, %v802, 0
        %v1822 = vsel %vm824, %v803, 0
        %v1825 = vsel %vm824, %v804, 0
        %v1828 = vsel %vm824, %v805, 0
        %v1831 = vsel %vm824, %v806, 0
        %v1834 = vsel %vm824, %v807, 0
        %v1837 = vsel %vm824, %v808, 0
        %v1840 = vsel %vm824, %v809, 0
        %v1843 = vsel %vm824, %v810, 0
        %v1846 = vsel %vm824, %v811, 0
        %v1849 = vsel %vm824, %v812, 0
        %v1852 = vsel %vm824, %v813, 0
        %v1855 = vsel %vm824, %v814, 0
        %v1858 = vsel %vm824, %v815, 0
        %v1861 = vsel %vm824, %v816, 0
        %v1864 = vsel %vm824, %v817, 0
        %v1867 = vsel %vm824, %v818, 0
        %v1870 = vsel %vm824, %v819, 0
        %v1873 = vsel %vm824, %v820, 0
        %v1876 = vsel %vm824, %v821, 0
        %v1879 = vsel %vm824, %v822, 0
        %v1882 = vsel %vm824, %v823, 0
        %1884 = vmatprep.subr.mxu0 0.0
        %1885 = vmatpush1.xpose.msra.mxu0 %v1834
        %1886 = vmatprep.subr.mxu0 0.0
        %1887 = vmatpush1.xpose.msra.mxu0 %v1831
        %1888 = vmatprep.subr.mxu0 0.0
        %1889 = vmatpush1.xpose.msra.mxu0 %v1828
        %1890 = vmatprep.subr.mxu0 0.0
        %1891 = vmatpush1.xpose.msra.mxu0 %v1825
        %1892 = vmatprep.subr.mxu0 0.0
        %1893 = vmatpush1.xpose.msra.mxu0 %v1822
        %1894 = vmatprep.subr.mxu0 0.0
        %1895 = vmatpush1.xpose.msra.mxu0 %v1819
        %1896 = vmatprep.subr.mxu0 0.0
        %1897 = vmatpush1.xpose.msra.mxu0 %v1816
        %1898 = vmatprep.subr.mxu0 0.0
        %1899 = vmatpush1.xpose.msra.mxu0 %v1813
        %1900 = vmatprep.subr.mxu0 0.0
        %1901 = vmatpush1.xpose.msra.mxu0 %v1810
        %1902 = vmatprep.subr.mxu0 0.0
        %1903 = vmatpush1.xpose.msra.mxu0 %v1807
        %1904 = vmatprep.subr.mxu0 0.0
        %1905 = vmatpush1.xpose.msra.mxu0 %v1804
        %1906 = vmatprep.subr.mxu0 0.0
        %1907 = vmatpush1.xpose.msra.mxu0 %v1801
        %1908 = vmatprep.subr.mxu0 0.0
        %1909 = vmatpush1.xpose.msra.mxu0 %v1798
        %1910 = vmatprep.subr.mxu0 0.0
        %1911 = vmatpush1.xpose.msra.mxu0 %v1795
        %1912 = vmatprep.subr.mxu0 0.0
        %1913 = vmatpush1.xpose.msra.mxu0 %v1792
        %1914 = vmatprep.subr.mxu0 0.0
        %1915 = vmatpush1.xpose.msra.mxu0 %v1789
        %1916 = vmatprep.subr.mxu0 0.0
        %1917 = vmatpush2.xpose.msra.mxu0 %v1882
        %1918 = vmatprep.subr.mxu0 0.0
        %1919 = vmatpush2.xpose.msra.mxu0 %v1879
        %1920 = vmatprep.subr.mxu0 0.0
        %1921 = vmatpush2.xpose.msra.mxu0 %v1876
        %1922 = vmatprep.subr.mxu0 0.0
        %1923 = vmatpush2.xpose.msra.mxu0 %v1873
        %1924 = vmatprep.subr.mxu0 0.0
        %1925 = vmatpush2.xpose.msra.mxu0 %v1870
        %1926 = vmatprep.subr.mxu0 0.0
        %1927 = vmatpush2.xpose.msra.mxu0 %v1867
        %1928 = vmatprep.subr.mxu0 0.0
        %1929 = vmatpush2.xpose.msra.mxu0 %v1864
        %1930 = vmatprep.subr.mxu0 0.0
        %1931 = vmatpush2.xpose.msra.mxu0 %v1861
        %1932 = vmatprep.subr.mxu0 0.0
        %1933 = vmatpush2.xpose.msra.mxu0 %v1858
        %1934 = vmatprep.subr.mxu0 0.0
        %1935 = vmatpush2.xpose.msra.mxu0 %v1855
        %1936 = vmatprep.subr.mxu0 0.0
        %1937 = vmatpush2.xpose.msra.mxu0 %v1852
        %1938 = vmatprep.subr.mxu0 0.0
        %1939 = vmatpush2.xpose.msra.mxu0 %v1849
        %1940 = vmatprep.subr.mxu0 0.0
        %1941 = vmatpush2.xpose.msra.mxu0 %v1846
        %1942 = vmatprep.subr.mxu0 0.0
        %1943 = vmatpush2.xpose.msra.mxu0 %v1843
        %1944 = vmatprep.subr.mxu0 0.0
        %1945 = vmatpush2.xpose.msra.mxu0 %v1840
        %1946 = vmatprep.subr.mxu0 0.0
        %1947 = vmatpush2.xpose.msra.mxu0 %v1837
        %1948 = vmatprep.mubr.f32.mxu0 0.0
        %1949 = vmatmul.mubr.f32.gmra.mxu0 %v1741
        %v1950 = vpop.f32.mrf.mxu0
        %v1951 = vadd.f32 0.0, %v1950
        %v1952 = vpop.f32.mrf.mxu0
        %v1953 = vadd.f32 0.0, %v1952
        %1954 = vmatprep.mubr.f32.mxu0 0.0
        %1955 = vmatmul.mubr.f32.gmra.mxu0 %v1744
        %v1956 = vpop.f32.mrf.mxu0
        %v1957 = vadd.f32 0.0, %v1956
        %v1958 = vpop.f32.mrf.mxu0
        %v1959 = vadd.f32 0.0, %v1958
        %1960 = vmatprep.mubr.f32.mxu0 0.0
        %1961 = vmatmul.mubr.f32.gmra.mxu0 %v1747
        %v1962 = vpop.f32.mrf.mxu0
        %v1963 = vadd.f32 0.0, %v1962
        %v1964 = vpop.f32.mrf.mxu0
        %v1965 = vadd.f32 0.0, %v1964
        %1966 = vmatprep.mubr.f32.mxu0 0.0
        %1967 = vmatmul.mubr.f32.gmra.mxu0 %v1750
        %v1968 = vpop.f32.mrf.mxu0
        %v1969 = vadd.f32 0.0, %v1968
        %v1970 = vpop.f32.mrf.mxu0
        %v1971 = vadd.f32 0.0, %v1970
        %1972 = vmatprep.mubr.f32.mxu0 0.0
        %1973 = vmatmul.mubr.f32.gmra.mxu0 %v1753
        %v1974 = vpop.f32.mrf.mxu0
        %v1975 = vadd.f32 0.0, %v1974
        %v1976 = vpop.f32.mrf.mxu0
        %v1977 = vadd.f32 0.0, %v1976
        %1978 = vmatprep.mubr.f32.mxu0 0.0
        %1979 = vmatmul.mubr.f32.gmra.mxu0 %v1756
        %v1980 = vpop.f32.mrf.mxu0
        %v1981 = vadd.f32 0.0, %v1980
        %v1982 = vpop.f32.mrf.mxu0
        %v1983 = vadd.f32 0.0, %v1982
        %1984 = vmatprep.mubr.f32.mxu0 0.0
        %1985 = vmatmul.mubr.f32.gmra.mxu0 %v1759
        %v1986 = vpop.f32.mrf.mxu0
        %v1987 = vadd.f32 0.0, %v1986
        %v1988 = vpop.f32.mrf.mxu0
        %v1989 = vadd.f32 0.0, %v1988
        %1990 = vmatprep.mubr.f32.mxu0 0.0
        %1991 = vmatmul.mubr.f32.gmra.mxu0 %v1762
        %v1992 = vpop.f32.mrf.mxu0
        %v1993 = vadd.f32 0.0, %v1992
        %v1994 = vpop.f32.mrf.mxu0
        %v1995 = vadd.f32 0.0, %v1994
        %1996 = vmatprep.mubr.f32.mxu0 0.0
        %1997 = vmatmul.mubr.f32.gmra.mxu0 %v1765
        %v1998 = vpop.f32.mrf.mxu0
        %v1999 = vadd.f32 0.0, %v1998
        %v2000 = vpop.f32.mrf.mxu0
        %v2001 = vadd.f32 0.0, %v2000
        %2002 = vmatprep.mubr.f32.mxu0 0.0
        %2003 = vmatmul.mubr.f32.gmra.mxu0 %v1768
        %v2004 = vpop.f32.mrf.mxu0
        %v2005 = vadd.f32 0.0, %v2004
        %v2006 = vpop.f32.mrf.mxu0
        %v2007 = vadd.f32 0.0, %v2006
        %2008 = vmatprep.mubr.f32.mxu0 0.0
        %2009 = vmatmul.mubr.f32.gmra.mxu0 %v1771
        %v2010 = vpop.f32.mrf.mxu0
        %v2011 = vadd.f32 0.0, %v2010
        %v2012 = vpop.f32.mrf.mxu0
        %v2013 = vadd.f32 0.0, %v2012
        %2014 = vmatprep.mubr.f32.mxu0 0.0
        %2015 = vmatmul.mubr.f32.gmra.mxu0 %v1774
        %v2016 = vpop.f32.mrf.mxu0
        %v2017 = vadd.f32 0.0, %v2016
        %v2018 = vpop.f32.mrf.mxu0
        %v2019 = vadd.f32 0.0, %v2018
        %2020 = vmatprep.mubr.f32.mxu0 0.0
        %2021 = vmatmul.mubr.f32.gmra.mxu0 %v1777
        %v2022 = vpop.f32.mrf.mxu0
        %v2023 = vadd.f32 0.0, %v2022
        %v2024 = vpop.f32.mrf.mxu0
        %v2025 = vadd.f32 0.0, %v2024
        %2026 = vmatprep.mubr.f32.mxu0 0.0
        %2027 = vmatmul.mubr.f32.gmra.mxu0 %v1780
        %v2028 = vpop.f32.mrf.mxu0
        %v2029 = vadd.f32 0.0, %v2028
        %v2030 = vpop.f32.mrf.mxu0
        %v2031 = vadd.f32 0.0, %v2030
        %2032 = vmatprep.mubr.f32.mxu0 0.0
        %2033 = vmatmul.mubr.f32.gmra.mxu0 %v1783
        %v2034 = vpop.f32.mrf.mxu0
        %v2035 = vadd.f32 0.0, %v2034
        %v2036 = vpop.f32.mrf.mxu0
        %v2037 = vadd.f32 0.0, %v2036
        %2038 = vmatprep.mubr.f32.mxu0 0.0
        %2039 = vmatmul.mubr.f32.gmra.mxu0 %v1786
        %v2040 = vpop.f32.mrf.mxu0
        %v2041 = vadd.f32 0.0, %v2040
        %v2042 = vpop.f32.mrf.mxu0
        %v2043 = vadd.f32 0.0, %v2042
        %2044 = vdwg.mxu0
        %2045 = vst [vmem:[#allocation2] sm:$0xff] %v1036
        %2046 = vst [vmem:[#allocation2 + $0x8] sm:$0xff] %v1038
        %2047 = vst [vmem:[#allocation2 + $0x10] sm:$0xff] %v1042
        %2048 = vst [vmem:[#allocation2 + $0x18] sm:$0xff] %v1044
        %2049 = vst [vmem:[#allocation2 + $0x20] sm:$0xff] %v1048
        %2050 = vst [vmem:[#allocation2 + $0x28] sm:$0xff] %v1050
        %2051 = vst [vmem:[#allocation2 + $0x30] sm:$0xff] %v1054
        %2052 = vst [vmem:[#allocation2 + $0x38] sm:$0xff] %v1056
        %2053 = vst [vmem:[#allocation2 + $0x40] sm:$0xff] %v1060
        %2054 = vst [vmem:[#allocation2 + $0x48] sm:$0xff] %v1062
        %2055 = vst [vmem:[#allocation2 + $0x50] sm:$0xff] %v1066
        %2056 = vst [vmem:[#allocation2 + $0x58] sm:$0xff] %v1068
        %2057 = vst [vmem:[#allocation2 + $0x60] sm:$0xff] %v1072
        %2058 = vst [vmem:[#allocation2 + $0x68] sm:$0xff] %v1074
        %2059 = vst [vmem:[#allocation2 + $0x70] sm:$0xff] %v1078
        %2060 = vst [vmem:[#allocation2 + $0x78] sm:$0xff] %v1080
        %2061 = vst [vmem:[#allocation2 + $0x80] sm:$0xff] %v1084
        %2062 = vst [vmem:[#allocation2 + $0x88] sm:$0xff] %v1086
        %2063 = vst [vmem:[#allocation2 + $0x90] sm:$0xff] %v1090
        %2064 = vst [vmem:[#allocation2 + $0x98] sm:$0xff] %v1092
        %2065 = vst [vmem:[#allocation2 + $0xa0] sm:$0xff] %v1096
        %2066 = vst [vmem:[#allocation2 + $0xa8] sm:$0xff] %v1098
        %2067 = vst [vmem:[#allocation2 + $0xb0] sm:$0xff] %v1102
        %2068 = vst [vmem:[#allocation2 + $0xb8] sm:$0xff] %v1104
        %2069 = vst [vmem:[#allocation2 + $0xc0] sm:$0xff] %v1108
        %2070 = vst [vmem:[#allocation2 + $0xc8] sm:$0xff] %v1110
        %2071 = vst [vmem:[#allocation2 + $0xd0] sm:$0xff] %v1114
        %2072 = vst [vmem:[#allocation2 + $0xd8] sm:$0xff] %v1116
        %2073 = vst [vmem:[#allocation2 + $0xe0] sm:$0xff] %v1120
        %2074 = vst [vmem:[#allocation2 + $0xe8] sm:$0xff] %v1122
        %2075 = vst [vmem:[#allocation2 + $0xf0] sm:$0xff] %v1126
        %2076 = vst [vmem:[#allocation2 + $0xf8] sm:$0xff] %v1128
        %2077 = vst [vmem:[#allocation2 + $0x100] sm:$0xff] %v1341
        %2078 = vst [vmem:[#allocation2 + $0x108] sm:$0xff] %v1343
        %2079 = vst [vmem:[#allocation2 + $0x110] sm:$0xff] %v1347
        %2080 = vst [vmem:[#allocation2 + $0x118] sm:$0xff] %v1349
        %2081 = vst [vmem:[#allocation2 + $0x120] sm:$0xff] %v1353
        %2082 = vst [vmem:[#allocation2 + $0x128] sm:$0xff] %v1355
        %2083 = vst [vmem:[#allocation2 + $0x130] sm:$0xff] %v1359
        %2084 = vst [vmem:[#allocation2 + $0x138] sm:$0xff] %v1361
        %2085 = vst [vmem:[#allocation2 + $0x140] sm:$0xff] %v1365
        %2086 = vst [vmem:[#allocation2 + $0x148] sm:$0xff] %v1367
        %2087 = vst [vmem:[#allocation2 + $0x150] sm:$0xff] %v1371
        %2088 = vst [vmem:[#allocation2 + $0x158] sm:$0xff] %v1373
        %2089 = vst [vmem:[#allocation2 + $0x160] sm:$0xff] %v1377
        %2090 = vst [vmem:[#allocation2 + $0x168] sm:$0xff] %v1379
        %2091 = vst [vmem:[#allocation2 + $0x170] sm:$0xff] %v1383
        %2092 = vst [vmem:[#allocation2 + $0x178] sm:$0xff] %v1385
        %2093 = vst [vmem:[#allocation2 + $0x180] sm:$0xff] %v1389
        %2094 = vst [vmem:[#allocation2 + $0x188] sm:$0xff] %v1391
        %2095 = vst [vmem:[#allocation2 + $0x190] sm:$0xff] %v1395
        %2096 = vst [vmem:[#allocation2 + $0x198] sm:$0xff] %v1397
        %2097 = vst [vmem:[#allocation2 + $0x1a0] sm:$0xff] %v1401
        %2098 = vst [vmem:[#allocation2 + $0x1a8] sm:$0xff] %v1403
        %2099 = vst [vmem:[#allocation2 + $0x1b0] sm:$0xff] %v1407
        %2100 = vst [vmem:[#allocation2 + $0x1b8] sm:$0xff] %v1409
        %2101 = vst [vmem:[#allocation2 + $0x1c0] sm:$0xff] %v1413
        %2102 = vst [vmem:[#allocation2 + $0x1c8] sm:$0xff] %v1415
        %2103 = vst [vmem:[#allocation2 + $0x1d0] sm:$0xff] %v1419
        %2104 = vst [vmem:[#allocation2 + $0x1d8] sm:$0xff] %v1421
        %2105 = vst [vmem:[#allocation2 + $0x1e0] sm:$0xff] %v1425
        %2106 = vst [vmem:[#allocation2 + $0x1e8] sm:$0xff] %v1427
        %2107 = vst [vmem:[#allocation2 + $0x1f0] sm:$0xff] %v1431
        %2108 = vst [vmem:[#allocation2 + $0x1f8] sm:$0xff] %v1433
        %2109 = vst [vmem:[#allocation2 + $0x200] sm:$0xff] %v1646
        %2110 = vst [vmem:[#allocation2 + $0x208] sm:$0xff] %v1648
        %2111 = vst [vmem:[#allocation2 + $0x210] sm:$0xff] %v1652
        %2112 = vst [vmem:[#allocation2 + $0x218] sm:$0xff] %v1654
        %2113 = vst [vmem:[#allocation2 + $0x220] sm:$0xff] %v1658
        %2114 = vst [vmem:[#allocation2 + $0x228] sm:$0xff] %v1660
        %2115 = vst [vmem:[#allocation2 + $0x230] sm:$0xff] %v1664
        %2116 = vst [vmem:[#allocation2 + $0x238] sm:$0xff] %v1666
        %2117 = vst [vmem:[#allocation2 + $0x240] sm:$0xff] %v1670
        %2118 = vst [vmem:[#allocation2 + $0x248] sm:$0xff] %v1672
        %2119 = vst [vmem:[#allocation2 + $0x250] sm:$0xff] %v1676
        %2120 = vst [vmem:[#allocation2 + $0x258] sm:$0xff] %v1678
        %2121 = vst [vmem:[#allocation2 + $0x260] sm:$0xff] %v1682
        %2122 = vst [vmem:[#allocation2 + $0x268] sm:$0xff] %v1684
        %2123 = vst [vmem:[#allocation2 + $0x270] sm:$0xff] %v1688
        %2124 = vst [vmem:[#allocation2 + $0x278] sm:$0xff] %v1690
        %2125 = vst [vmem:[#allocation2 + $0x280] sm:$0xff] %v1694
        %2126 = vst [vmem:[#allocation2 + $0x288] sm:$0xff] %v1696
        %2127 = vst [vmem:[#allocation2 + $0x290] sm:$0xff] %v1700
        %2128 = vst [vmem:[#allocation2 + $0x298] sm:$0xff] %v1702
        %2129 = vst [vmem:[#allocation2 + $0x2a0] sm:$0xff] %v1706
        %2130 = vst [vmem:[#allocation2 + $0x2a8] sm:$0xff] %v1708
        %2131 = vst [vmem:[#allocation2 + $0x2b0] sm:$0xff] %v1712
        %2132 = vst [vmem:[#allocation2 + $0x2b8] sm:$0xff] %v1714
        %2133 = vst [vmem:[#allocation2 + $0x2c0] sm:$0xff] %v1718
        %2134 = vst [vmem:[#allocation2 + $0x2c8] sm:$0xff] %v1720
        %2135 = vst [vmem:[#allocation2 + $0x2d0] sm:$0xff] %v1724
        %2136 = vst [vmem:[#allocation2 + $0x2d8] sm:$0xff] %v1726
        %2137 = vst [vmem:[#allocation2 + $0x2e0] sm:$0xff] %v1730
        %2138 = vst [vmem:[#allocation2 + $0x2e8] sm:$0xff] %v1732
        %2139 = vst [vmem:[#allocation2 + $0x2f0] sm:$0xff] %v1736
        %2140 = vst [vmem:[#allocation2 + $0x2f8] sm:$0xff] %v1738
        %2141 = vst [vmem:[#allocation2 + $0x300] sm:$0xff] %v1951
        %2142 = vst [vmem:[#allocation2 + $0x308] sm:$0xff] %v1953
        %2143 = vst [vmem:[#allocation2 + $0x310] sm:$0xff] %v1957
        %2144 = vst [vmem:[#allocation2 + $0x318] sm:$0xff] %v1959
        %2145 = vst [vmem:[#allocation2 + $0x320] sm:$0xff] %v1963
        %2146 = vst [vmem:[#allocation2 + $0x328] sm:$0xff] %v1965
        %2147 = vst [vmem:[#allocation2 + $0x330] sm:$0xff] %v1969
        %2148 = vst [vmem:[#allocation2 + $0x338] sm:$0xff] %v1971
        %2149 = vst [vmem:[#allocation2 + $0x340] sm:$0xff] %v1975
        %2150 = vst [vmem:[#allocation2 + $0x348] sm:$0xff] %v1977
        %2151 = vst [vmem:[#allocation2 + $0x350] sm:$0xff] %v1981
        %2152 = vst [vmem:[#allocation2 + $0x358] sm:$0xff] %v1983
        %2153 = vst [vmem:[#allocation2 + $0x360] sm:$0xff] %v1987
        %2154 = vst [vmem:[#allocation2 + $0x368] sm:$0xff] %v1989
        %2155 = vst [vmem:[#allocation2 + $0x370] sm:$0xff] %v1993
        %2156 = vst [vmem:[#allocation2 + $0x378] sm:$0xff] %v1995
        %2157 = vst [vmem:[#allocation2 + $0x380] sm:$0xff] %v1999
        %2158 = vst [vmem:[#allocation2 + $0x388] sm:$0xff] %v2001
        %2159 = vst [vmem:[#allocation2 + $0x390] sm:$0xff] %v2005
        %2160 = vst [vmem:[#allocation2 + $0x398] sm:$0xff] %v2007
        %2161 = vst [vmem:[#allocation2 + $0x3a0] sm:$0xff] %v2011
        %2162 = vst [vmem:[#allocation2 + $0x3a8] sm:$0xff] %v2013
        %2163 = vst [vmem:[#allocation2 + $0x3b0] sm:$0xff] %v2017
        %2164 = vst [vmem:[#allocation2 + $0x3b8] sm:$0xff] %v2019
        %2165 = vst [vmem:[#allocation2 + $0x3c0] sm:$0xff] %v2023
        %2166 = vst [vmem:[#allocation2 + $0x3c8] sm:$0xff] %v2025
        %2167 = vst [vmem:[#allocation2 + $0x3d0] sm:$0xff] %v2029
        %2168 = vst [vmem:[#allocation2 + $0x3d8] sm:$0xff] %v2031
        %2169 = vst [vmem:[#allocation2 + $0x3e0] sm:$0xff] %v2035
        %2170 = vst [vmem:[#allocation2 + $0x3e8] sm:$0xff] %v2037
        %2171 = vst [vmem:[#allocation2 + $0x3f0] sm:$0xff] %v2041
        %2172 = vst [vmem:[#allocation2 + $0x3f8] sm:$0xff] %v2043
        %v2173 = vld [vmem:[#allocation2] sm:$0xff]
        %v2174 = vld [vmem:[#allocation2 + $0x8] sm:$0xff]
        %v2175 = vld [vmem:[#allocation2 + $0x10] sm:$0xff]
        %v2176 = vld [vmem:[#allocation2 + $0x18] sm:$0xff]
        %v2177 = vld [vmem:[#allocation2 + $0x20] sm:$0xff]
        %v2178 = vld [vmem:[#allocation2 + $0x28] sm:$0xff]
        %v2179 = vld [vmem:[#allocation2 + $0x30] sm:$0xff]
        %v2180 = vld [vmem:[#allocation2 + $0x38] sm:$0xff]
        %v2181 = vld [vmem:[#allocation2 + $0x40] sm:$0xff]
        %v2182 = vld [vmem:[#allocation2 + $0x48] sm:$0xff]
        %v2183 = vld [vmem:[#allocation2 + $0x50] sm:$0xff]
        %v2184 = vld [vmem:[#allocation2 + $0x58] sm:$0xff]
        %v2185 = vld [vmem:[#allocation2 + $0x60] sm:$0xff]
        %v2186 = vld [vmem:[#allocation2 + $0x68] sm:$0xff]
        %v2187 = vld [vmem:[#allocation2 + $0x70] sm:$0xff]
        %v2188 = vld [vmem:[#allocation2 + $0x78] sm:$0xff]
        %v2189 = vld [vmem:[#allocation2 + $0x80] sm:$0xff]
        %v2190 = vld [vmem:[#allocation2 + $0x88] sm:$0xff]
        %v2191 = vld [vmem:[#allocation2 + $0x90] sm:$0xff]
        %v2192 = vld [vmem:[#allocation2 + $0x98] sm:$0xff]
        %v2193 = vld [vmem:[#allocation2 + $0xa0] sm:$0xff]
        %v2194 = vld [vmem:[#allocation2 + $0xa8] sm:$0xff]
        %v2195 = vld [vmem:[#allocation2 + $0xb0] sm:$0xff]
        %v2196 = vld [vmem:[#allocation2 + $0xb8] sm:$0xff]
        %v2197 = vld [vmem:[#allocation2 + $0xc0] sm:$0xff]
        %v2198 = vld [vmem:[#allocation2 + $0xc8] sm:$0xff]
        %v2199 = vld [vmem:[#allocation2 + $0xd0] sm:$0xff]
        %v2200 = vld [vmem:[#allocation2 + $0xd8] sm:$0xff]
        %v2201 = vld [vmem:[#allocation2 + $0xe0] sm:$0xff]
        %v2202 = vld [vmem:[#allocation2 + $0xe8] sm:$0xff]
        %v2203 = vld [vmem:[#allocation2 + $0xf0] sm:$0xff]
        %v2204 = vld [vmem:[#allocation2 + $0xf8] sm:$0xff]
        %v2205 = vld [vmem:[#allocation2 + $0x100] sm:$0xff]
        %v2206 = vld [vmem:[#allocation2 + $0x108] sm:$0xff]
        %v2207 = vld [vmem:[#allocation2 + $0x110] sm:$0xff]
        %v2208 = vld [vmem:[#allocation2 + $0x118] sm:$0xff]
        %v2209 = vld [vmem:[#allocation2 + $0x120] sm:$0xff]
        %v2210 = vld [vmem:[#allocation2 + $0x128] sm:$0xff]
        %v2211 = vld [vmem:[#allocation2 + $0x130] sm:$0xff]
        %v2212 = vld [vmem:[#allocation2 + $0x138] sm:$0xff]
        %v2213 = vld [vmem:[#allocation2 + $0x140] sm:$0xff]
        %v2214 = vld [vmem:[#allocation2 + $0x148] sm:$0xff]
        %v2215 = vld [vmem:[#allocation2 + $0x150] sm:$0xff]
        %v2216 = vld [vmem:[#allocation2 + $0x158] sm:$0xff]
        %v2217 = vld [vmem:[#allocation2 + $0x160] sm:$0xff]
        %v2218 = vld [vmem:[#allocation2 + $0x168] sm:$0xff]
        %v2219 = vld [vmem:[#allocation2 + $0x170] sm:$0xff]
        %v2220 = vld [vmem:[#allocation2 + $0x178] sm:$0xff]
        %v2221 = vld [vmem:[#allocation2 + $0x180] sm:$0xff]
        %v2222 = vld [vmem:[#allocation2 + $0x188] sm:$0xff]
        %v2223 = vld [vmem:[#allocation2 + $0x190] sm:$0xff]
        %v2224 = vld [vmem:[#allocation2 + $0x198] sm:$0xff]
        %v2225 = vld [vmem:[#allocation2 + $0x1a0] sm:$0xff]
        %v2226 = vld [vmem:[#allocation2 + $0x1a8] sm:$0xff]
        %v2227 = vld [vmem:[#allocation2 + $0x1b0] sm:$0xff]
        %v2228 = vld [vmem:[#allocation2 + $0x1b8] sm:$0xff]
        %v2229 = vld [vmem:[#allocation2 + $0x1c0] sm:$0xff]
        %v2230 = vld [vmem:[#allocation2 + $0x1c8] sm:$0xff]
        %v2231 = vld [vmem:[#allocation2 + $0x1d0] sm:$0xff]
        %v2232 = vld [vmem:[#allocation2 + $0x1d8] sm:$0xff]
        %v2233 = vld [vmem:[#allocation2 + $0x1e0] sm:$0xff]
        %v2234 = vld [vmem:[#allocation2 + $0x1e8] sm:$0xff]
        %v2235 = vld [vmem:[#allocation2 + $0x1f0] sm:$0xff]
        %v2236 = vld [vmem:[#allocation2 + $0x1f8] sm:$0xff]
        %v2237 = vld [vmem:[#allocation2 + $0x200] sm:$0xff]
        %v2238 = vld [vmem:[#allocation2 + $0x208] sm:$0xff]
        %v2239 = vld [vmem:[#allocation2 + $0x210] sm:$0xff]
        %v2240 = vld [vmem:[#allocation2 + $0x218] sm:$0xff]
        %v2241 = vld [vmem:[#allocation2 + $0x220] sm:$0xff]
        %v2242 = vld [vmem:[#allocation2 + $0x228] sm:$0xff]
        %v2243 = vld [vmem:[#allocation2 + $0x230] sm:$0xff]
        %v2244 = vld [vmem:[#allocation2 + $0x238] sm:$0xff]
        %v2245 = vld [vmem:[#allocation2 + $0x240] sm:$0xff]
        %v2246 = vld [vmem:[#allocation2 + $0x248] sm:$0xff]
        %v2247 = vld [vmem:[#allocation2 + $0x250] sm:$0xff]
        %v2248 = vld [vmem:[#allocation2 + $0x258] sm:$0xff]
        %v2249 = vld [vmem:[#allocation2 + $0x260] sm:$0xff]
        %v2250 = vld [vmem:[#allocation2 + $0x268] sm:$0xff]
        %v2251 = vld [vmem:[#allocation2 + $0x270] sm:$0xff]
        %v2252 = vld [vmem:[#allocation2 + $0x278] sm:$0xff]
        %v2253 = vld [vmem:[#allocation2 + $0x280] sm:$0xff]
        %v2254 = vld [vmem:[#allocation2 + $0x288] sm:$0xff]
        %v2255 = vld [vmem:[#allocation2 + $0x290] sm:$0xff]
        %v2256 = vld [vmem:[#allocation2 + $0x298] sm:$0xff]
        %v2257 = vld [vmem:[#allocation2 + $0x2a0] sm:$0xff]
        %v2258 = vld [vmem:[#allocation2 + $0x2a8] sm:$0xff]
        %v2259 = vld [vmem:[#allocation2 + $0x2b0] sm:$0xff]
        %v2260 = vld [vmem:[#allocation2 + $0x2b8] sm:$0xff]
        %v2261 = vld [vmem:[#allocation2 + $0x2c0] sm:$0xff]
        %v2262 = vld [vmem:[#allocation2 + $0x2c8] sm:$0xff]
        %v2263 = vld [vmem:[#allocation2 + $0x2d0] sm:$0xff]
        %v2264 = vld [vmem:[#allocation2 + $0x2d8] sm:$0xff]
        %v2265 = vld [vmem:[#allocation2 + $0x2e0] sm:$0xff]
        %v2266 = vld [vmem:[#allocation2 + $0x2e8] sm:$0xff]
        %v2267 = vld [vmem:[#allocation2 + $0x2f0] sm:$0xff]
        %v2268 = vld [vmem:[#allocation2 + $0x2f8] sm:$0xff]
        %v2269 = vld [vmem:[#allocation2 + $0x300] sm:$0xff]
        %v2270 = vld [vmem:[#allocation2 + $0x308] sm:$0xff]
        %v2271 = vld [vmem:[#allocation2 + $0x310] sm:$0xff]
        %v2272 = vld [vmem:[#allocation2 + $0x318] sm:$0xff]
        %v2273 = vld [vmem:[#allocation2 + $0x320] sm:$0xff]
        %v2274 = vld [vmem:[#allocation2 + $0x328] sm:$0xff]
        %v2275 = vld [vmem:[#allocation2 + $0x330] sm:$0xff]
        %v2276 = vld [vmem:[#allocation2 + $0x338] sm:$0xff]
        %v2277 = vld [vmem:[#allocation2 + $0x340] sm:$0xff]
        %v2278 = vld [vmem:[#allocation2 + $0x348] sm:$0xff]
        %v2279 = vld [vmem:[#allocation2 + $0x350] sm:$0xff]
        %v2280 = vld [vmem:[#allocation2 + $0x358] sm:$0xff]
        %v2281 = vld [vmem:[#allocation2 + $0x360] sm:$0xff]
        %v2282 = vld [vmem:[#allocation2 + $0x368] sm:$0xff]
        %v2283 = vld [vmem:[#allocation2 + $0x370] sm:$0xff]
        %v2284 = vld [vmem:[#allocation2 + $0x378] sm:$0xff]
        %v2285 = vld [vmem:[#allocation2 + $0x380] sm:$0xff]
        %v2286 = vld [vmem:[#allocation2 + $0x388] sm:$0xff]
        %v2287 = vld [vmem:[#allocation2 + $0x390] sm:$0xff]
        %v2288 = vld [vmem:[#allocation2 + $0x398] sm:$0xff]
        %v2289 = vld [vmem:[#allocation2 + $0x3a0] sm:$0xff]
        %v2290 = vld [vmem:[#allocation2 + $0x3a8] sm:$0xff]
        %v2291 = vld [vmem:[#allocation2 + $0x3b0] sm:$0xff]
        %v2292 = vld [vmem:[#allocation2 + $0x3b8] sm:$0xff]
        %v2293 = vld [vmem:[#allocation2 + $0x3c0] sm:$0xff]
        %v2294 = vld [vmem:[#allocation2 + $0x3c8] sm:$0xff]
        %v2295 = vld [vmem:[#allocation2 + $0x3d0] sm:$0xff]
        %v2296 = vld [vmem:[#allocation2 + $0x3d8] sm:$0xff]
        %v2297 = vld [vmem:[#allocation2 + $0x3e0] sm:$0xff]
        %v2298 = vld [vmem:[#allocation2 + $0x3e8] sm:$0xff]
        %v2299 = vld [vmem:[#allocation2 + $0x3f0] sm:$0xff]
        %v2300 = vld [vmem:[#allocation2 + $0x3f8] sm:$0xff]
        %v2301 = vmax.f32 %v2173, %v2174
        %2302 = vmax.xlane.f32.xlu0 %v2301
        %v2303 = vpop.xlane.xlu0 %2302
        %v2304 = vmax.f32 %v2175, %v2176
        %2305 = vmax.xlane.f32.xlu0 %v2304
        %v2306 = vpop.xlane.xlu0 %2305
        %v2307 = vmax.f32 %v2177, %v2178
        %2308 = vmax.xlane.f32.xlu0 %v2307
        %v2309 = vpop.xlane.xlu0 %2308
        %v2310 = vmax.f32 %v2179, %v2180
        %2311 = vmax.xlane.f32.xlu0 %v2310
        %v2312 = vpop.xlane.xlu0 %2311
        %v2313 = vmax.f32 %v2181, %v2182
        %2314 = vmax.xlane.f32.xlu0 %v2313
        %v2315 = vpop.xlane.xlu0 %2314
        %v2316 = vmax.f32 %v2183, %v2184
        %2317 = vmax.xlane.f32.xlu0 %v2316
        %v2318 = vpop.xlane.xlu0 %2317
        %v2319 = vmax.f32 %v2185, %v2186
        %2320 = vmax.xlane.f32.xlu0 %v2319
        %v2321 = vpop.xlane.xlu0 %2320
        %v2322 = vmax.f32 %v2187, %v2188
        %2323 = vmax.xlane.f32.xlu0 %v2322
        %v2324 = vpop.xlane.xlu0 %2323
        %v2325 = vmax.f32 %v2189, %v2190
        %2326 = vmax.xlane.f32.xlu0 %v2325
        %v2327 = vpop.xlane.xlu0 %2326
        %v2328 = vmax.f32 %v2191, %v2192
        %2329 = vmax.xlane.f32.xlu0 %v2328
        %v2330 = vpop.xlane.xlu0 %2329
        %v2331 = vmax.f32 %v2193, %v2194
        %2332 = vmax.xlane.f32.xlu0 %v2331
        %v2333 = vpop.xlane.xlu0 %2332
        %v2334 = vmax.f32 %v2195, %v2196
        %2335 = vmax.xlane.f32.xlu0 %v2334
        %v2336 = vpop.xlane.xlu0 %2335
        %v2337 = vmax.f32 %v2197, %v2198
        %2338 = vmax.xlane.f32.xlu0 %v2337
        %v2339 = vpop.xlane.xlu0 %2338
        %v2340 = vmax.f32 %v2199, %v2200
        %2341 = vmax.xlane.f32.xlu0 %v2340
        %v2342 = vpop.xlane.xlu0 %2341
        %v2343 = vmax.f32 %v2201, %v2202
        %2344 = vmax.xlane.f32.xlu0 %v2343
        %v2345 = vpop.xlane.xlu0 %2344
        %v2346 = vmax.f32 %v2203, %v2204
        %2347 = vmax.xlane.f32.xlu0 %v2346
        %v2348 = vpop.xlane.xlu0 %2347
        %v2349 = vmax.f32 %v2205, %v2206
        %2350 = vmax.xlane.f32.xlu0 %v2349
        %v2351 = vpop.xlane.xlu0 %2350
        %v2352 = vmax.f32 %v2207, %v2208
        %2353 = vmax.xlane.f32.xlu0 %v2352
        %v2354 = vpop.xlane.xlu0 %2353
        %v2355 = vmax.f32 %v2209, %v2210
        %2356 = vmax.xlane.f32.xlu0 %v2355
        %v2357 = vpop.xlane.xlu0 %2356
        %v2358 = vmax.f32 %v2211, %v2212
        %2359 = vmax.xlane.f32.xlu0 %v2358
        %v2360 = vpop.xlane.xlu0 %2359
        %v2361 = vmax.f32 %v2213, %v2214
        %2362 = vmax.xlane.f32.xlu0 %v2361
        %v2363 = vpop.xlane.xlu0 %2362
        %v2364 = vmax.f32 %v2215, %v2216
        %2365 = vmax.xlane.f32.xlu0 %v2364
        %v2366 = vpop.xlane.xlu0 %2365
        %v2367 = vmax.f32 %v2217, %v2218
        %2368 = vmax.xlane.f32.xlu0 %v2367
        %v2369 = vpop.xlane.xlu0 %2368
        %v2370 = vmax.f32 %v2219, %v2220
        %2371 = vmax.xlane.f32.xlu0 %v2370
        %v2372 = vpop.xlane.xlu0 %2371
        %v2373 = vmax.f32 %v2221, %v2222
        %2374 = vmax.xlane.f32.xlu0 %v2373
        %v2375 = vpop.xlane.xlu0 %2374
        %v2376 = vmax.f32 %v2223, %v2224
        %2377 = vmax.xlane.f32.xlu0 %v2376
        %v2378 = vpop.xlane.xlu0 %2377
        %v2379 = vmax.f32 %v2225, %v2226
        %2380 = vmax.xlane.f32.xlu0 %v2379
        %v2381 = vpop.xlane.xlu0 %2380
        %v2382 = vmax.f32 %v2227, %v2228
        %2383 = vmax.xlane.f32.xlu0 %v2382
        %v2384 = vpop.xlane.xlu0 %2383
        %v2385 = vmax.f32 %v2229, %v2230
        %2386 = vmax.xlane.f32.xlu0 %v2385
        %v2387 = vpop.xlane.xlu0 %2386
        %v2388 = vmax.f32 %v2231, %v2232
        %2389 = vmax.xlane.f32.xlu0 %v2388
        %v2390 = vpop.xlane.xlu0 %2389
        %v2391 = vmax.f32 %v2233, %v2234
        %2392 = vmax.xlane.f32.xlu0 %v2391
        %v2393 = vpop.xlane.xlu0 %2392
        %v2394 = vmax.f32 %v2235, %v2236
        %2395 = vmax.xlane.f32.xlu0 %v2394
        %v2396 = vpop.xlane.xlu0 %2395
        %v2397 = vmax.f32 %v2237, %v2238
        %2398 = vmax.xlane.f32.xlu0 %v2397
        %v2399 = vpop.xlane.xlu0 %2398
        %v2400 = vmax.f32 %v2239, %v2240
        %2401 = vmax.xlane.f32.xlu0 %v2400
        %v2402 = vpop.xlane.xlu0 %2401
        %v2403 = vmax.f32 %v2241, %v2242
        %2404 = vmax.xlane.f32.xlu0 %v2403
        %v2405 = vpop.xlane.xlu0 %2404
        %v2406 = vmax.f32 %v2243, %v2244
        %2407 = vmax.xlane.f32.xlu0 %v2406
        %v2408 = vpop.xlane.xlu0 %2407
        %v2409 = vmax.f32 %v2245, %v2246
        %2410 = vmax.xlane.f32.xlu0 %v2409
        %v2411 = vpop.xlane.xlu0 %2410
        %v2412 = vmax.f32 %v2247, %v2248
        %2413 = vmax.xlane.f32.xlu0 %v2412
        %v2414 = vpop.xlane.xlu0 %2413
        %v2415 = vmax.f32 %v2249, %v2250
        %2416 = vmax.xlane.f32.xlu0 %v2415
        %v2417 = vpop.xlane.xlu0 %2416
        %v2418 = vmax.f32 %v2251, %v2252
        %2419 = vmax.xlane.f32.xlu0 %v2418
        %v2420 = vpop.xlane.xlu0 %2419
        %v2421 = vmax.f32 %v2253, %v2254
        %2422 = vmax.xlane.f32.xlu0 %v2421
        %v2423 = vpop.xlane.xlu0 %2422
        %v2424 = vmax.f32 %v2255, %v2256
        %2425 = vmax.xlane.f32.xlu0 %v2424
        %v2426 = vpop.xlane.xlu0 %2425
        %v2427 = vmax.f32 %v2257, %v2258
        %2428 = vmax.xlane.f32.xlu0 %v2427
        %v2429 = vpop.xlane.xlu0 %2428
        %v2430 = vmax.f32 %v2259, %v2260
        %2431 = vmax.xlane.f32.xlu0 %v2430
        %v2432 = vpop.xlane.xlu0 %2431
        %v2433 = vmax.f32 %v2261, %v2262
        %2434 = vmax.xlane.f32.xlu0 %v2433
        %v2435 = vpop.xlane.xlu0 %2434
        %v2436 = vmax.f32 %v2263, %v2264
        %2437 = vmax.xlane.f32.xlu0 %v2436
        %v2438 = vpop.xlane.xlu0 %2437
        %v2439 = vmax.f32 %v2265, %v2266
        %2440 = vmax.xlane.f32.xlu0 %v2439
        %v2441 = vpop.xlane.xlu0 %2440
        %v2442 = vmax.f32 %v2267, %v2268
        %2443 = vmax.xlane.f32.xlu0 %v2442
        %v2444 = vpop.xlane.xlu0 %2443
        %v2445 = vmax.f32 %v2269, %v2270
        %2446 = vmax.xlane.f32.xlu0 %v2445
        %v2447 = vpop.xlane.xlu0 %2446
        %v2448 = vmax.f32 %v2271, %v2272
        %2449 = vmax.xlane.f32.xlu0 %v2448
        %v2450 = vpop.xlane.xlu0 %2449
        %v2451 = vmax.f32 %v2273, %v2274
        %2452 = vmax.xlane.f32.xlu0 %v2451
        %v2453 = vpop.xlane.xlu0 %2452
        %v2454 = vmax.f32 %v2275, %v2276
        %2455 = vmax.xlane.f32.xlu0 %v2454
        %v2456 = vpop.xlane.xlu0 %2455
        %v2457 = vmax.f32 %v2277, %v2278
        %2458 = vmax.xlane.f32.xlu0 %v2457
        %v2459 = vpop.xlane.xlu0 %2458
        %v2460 = vmax.f32 %v2279, %v2280
        %2461 = vmax.xlane.f32.xlu0 %v2460
        %v2462 = vpop.xlane.xlu0 %2461
        %v2463 = vmax.f32 %v2281, %v2282
        %2464 = vmax.xlane.f32.xlu0 %v2463
        %v2465 = vpop.xlane.xlu0 %2464
        %v2466 = vmax.f32 %v2283, %v2284
        %2467 = vmax.xlane.f32.xlu0 %v2466
        %v2468 = vpop.xlane.xlu0 %2467
        %v2469 = vmax.f32 %v2285, %v2286
        %2470 = vmax.xlane.f32.xlu0 %v2469
        %v2471 = vpop.xlane.xlu0 %2470
        %v2472 = vmax.f32 %v2287, %v2288
        %2473 = vmax.xlane.f32.xlu0 %v2472
        %v2474 = vpop.xlane.xlu0 %2473
        %v2475 = vmax.f32 %v2289, %v2290
        %2476 = vmax.xlane.f32.xlu0 %v2475
        %v2477 = vpop.xlane.xlu0 %2476
        %v2478 = vmax.f32 %v2291, %v2292
        %2479 = vmax.xlane.f32.xlu0 %v2478
        %v2480 = vpop.xlane.xlu0 %2479
        %v2481 = vmax.f32 %v2293, %v2294
        %2482 = vmax.xlane.f32.xlu0 %v2481
        %v2483 = vpop.xlane.xlu0 %2482
        %v2484 = vmax.f32 %v2295, %v2296
        %2485 = vmax.xlane.f32.xlu0 %v2484
        %v2486 = vpop.xlane.xlu0 %2485
        %v2487 = vmax.f32 %v2297, %v2298
        %2488 = vmax.xlane.f32.xlu0 %v2487
        %v2489 = vpop.xlane.xlu0 %2488
        %v2490 = vmax.f32 %v2299, %v2300
        %2491 = vmax.xlane.f32.xlu0 %v2490
        %v2492 = vpop.xlane.xlu0 %2491
        %v2493 = vsub.f32 %v2173, %v2303
        %v2494 = vsub.f32 %v2174, %v2303
        %v2495 = vsub.f32 %v2175, %v2306
        %v2496 = vsub.f32 %v2176, %v2306
        %v2497 = vsub.f32 %v2177, %v2309
        %v2498 = vsub.f32 %v2178, %v2309
        %v2499 = vsub.f32 %v2179, %v2312
        %v2500 = vsub.f32 %v2180, %v2312
        %v2501 = vsub.f32 %v2181, %v2315
        %v2502 = vsub.f32 %v2182, %v2315
        %v2503 = vsub.f32 %v2183, %v2318
        %v2504 = vsub.f32 %v2184, %v2318
        %v2505 = vsub.f32 %v2185, %v2321
        %v2506 = vsub.f32 %v2186, %v2321
        %v2507 = vsub.f32 %v2187, %v2324
        %v2508 = vsub.f32 %v2188, %v2324
        %v2509 = vsub.f32 %v2189, %v2327
        %v2510 = vsub.f32 %v2190, %v2327
        %v2511 = vsub.f32 %v2191, %v2330
        %v2512 = vsub.f32 %v2192, %v2330
        %v2513 = vsub.f32 %v2193, %v2333
        %v2514 = vsub.f32 %v2194, %v2333
        %v2515 = vsub.f32 %v2195, %v2336
        %v2516 = vsub.f32 %v2196, %v2336
        %v2517 = vsub.f32 %v2197, %v2339
        %v2518 = vsub.f32 %v2198, %v2339
        %v2519 = vsub.f32 %v2199, %v2342
        %v2520 = vsub.f32 %v2200, %v2342
        %v2521 = vsub.f32 %v2201, %v2345
        %v2522 = vsub.f32 %v2202, %v2345
        %v2523 = vsub.f32 %v2203, %v2348
        %v2524 = vsub.f32 %v2204, %v2348
        %v2525 = vsub.f32 %v2205, %v2351
        %v2526 = vsub.f32 %v2206, %v2351
        %v2527 = vsub.f32 %v2207, %v2354
        %v2528 = vsub.f32 %v2208, %v2354
        %v2529 = vsub.f32 %v2209, %v2357
        %v2530 = vsub.f32 %v2210, %v2357
        %v2531 = vsub.f32 %v2211, %v2360
        %v2532 = vsub.f32 %v2212, %v2360
        %v2533 = vsub.f32 %v2213, %v2363
        %v2534 = vsub.f32 %v2214, %v2363
        %v2535 = vsub.f32 %v2215, %v2366
        %v2536 = vsub.f32 %v2216, %v2366
        %v2537 = vsub.f32 %v2217, %v2369
        %v2538 = vsub.f32 %v2218, %v2369
        %v2539 = vsub.f32 %v2219, %v2372
        %v2540 = vsub.f32 %v2220, %v2372
        %v2541 = vsub.f32 %v2221, %v2375
        %v2542 = vsub.f32 %v2222, %v2375
        %v2543 = vsub.f32 %v2223, %v2378
        %v2544 = vsub.f32 %v2224, %v2378
        %v2545 = vsub.f32 %v2225, %v2381
        %v2546 = vsub.f32 %v2226, %v2381
        %v2547 = vsub.f32 %v2227, %v2384
        %v2548 = vsub.f32 %v2228, %v2384
        %v2549 = vsub.f32 %v2229, %v2387
        %v2550 = vsub.f32 %v2230, %v2387
        %v2551 = vsub.f32 %v2231, %v2390
        %v2552 = vsub.f32 %v2232, %v2390
        %v2553 = vsub.f32 %v2233, %v2393
        %v2554 = vsub.f32 %v2234, %v2393
        %v2555 = vsub.f32 %v2235, %v2396
        %v2556 = vsub.f32 %v2236, %v2396
        %v2557 = vsub.f32 %v2237, %v2399
        %v2558 = vsub.f32 %v2238, %v2399
        %v2559 = vsub.f32 %v2239, %v2402
        %v2560 = vsub.f32 %v2240, %v2402
        %v2561 = vsub.f32 %v2241, %v2405
        %v2562 = vsub.f32 %v2242, %v2405
        %v2563 = vsub.f32 %v2243, %v2408
        %v2564 = vsub.f32 %v2244, %v2408
        %v2565 = vsub.f32 %v2245, %v2411
        %v2566 = vsub.f32 %v2246, %v2411
        %v2567 = vsub.f32 %v2247, %v2414
        %v2568 = vsub.f32 %v2248, %v2414
        %v2569 = vsub.f32 %v2249, %v2417
        %v2570 = vsub.f32 %v2250, %v2417
        %v2571 = vsub.f32 %v2251, %v2420
        %v2572 = vsub.f32 %v2252, %v2420
        %v2573 = vsub.f32 %v2253, %v2423
        %v2574 = vsub.f32 %v2254, %v2423
        %v2575 = vsub.f32 %v2255, %v2426
        %v2576 = vsub.f32 %v2256, %v2426
        %v2577 = vsub.f32 %v2257, %v2429
        %v2578 = vsub.f32 %v2258, %v2429
        %v2579 = vsub.f32 %v2259, %v2432
        %v2580 = vsub.f32 %v2260, %v2432
        %v2581 = vsub.f32 %v2261, %v2435
        %v2582 = vsub.f32 %v2262, %v2435
        %v2583 = vsub.f32 %v2263, %v2438
        %v2584 = vsub.f32 %v2264, %v2438
        %v2585 = vsub.f32 %v2265, %v2441
        %v2586 = vsub.f32 %v2266, %v2441
        %v2587 = vsub.f32 %v2267, %v2444
        %v2588 = vsub.f32 %v2268, %v2444
        %v2589 = vsub.f32 %v2269, %v2447
        %v2590 = vsub.f32 %v2270, %v2447
        %v2591 = vsub.f32 %v2271, %v2450
        %v2592 = vsub.f32 %v2272, %v2450
        %v2593 = vsub.f32 %v2273, %v2453
        %v2594 = vsub.f32 %v2274, %v2453
        %v2595 = vsub.f32 %v2275, %v2456
        %v2596 = vsub.f32 %v2276, %v2456
        %v2597 = vsub.f32 %v2277, %v2459
        %v2598 = vsub.f32 %v2278, %v2459
        %v2599 = vsub.f32 %v2279, %v2462
        %v2600 = vsub.f32 %v2280, %v2462
        %v2601 = vsub.f32 %v2281, %v2465
        %v2602 = vsub.f32 %v2282, %v2465
        %v2603 = vsub.f32 %v2283, %v2468
        %v2604 = vsub.f32 %v2284, %v2468
        %v2605 = vsub.f32 %v2285, %v2471
        %v2606 = vsub.f32 %v2286, %v2471
        %v2607 = vsub.f32 %v2287, %v2474
        %v2608 = vsub.f32 %v2288, %v2474
        %v2609 = vsub.f32 %v2289, %v2477
        %v2610 = vsub.f32 %v2290, %v2477
        %v2611 = vsub.f32 %v2291, %v2480
        %v2612 = vsub.f32 %v2292, %v2480
        %v2613 = vsub.f32 %v2293, %v2483
        %v2614 = vsub.f32 %v2294, %v2483
        %v2615 = vsub.f32 %v2295, %v2486
        %v2616 = vsub.f32 %v2296, %v2486
        %v2617 = vsub.f32 %v2297, %v2489
        %v2618 = vsub.f32 %v2298, %v2489
        %v2619 = vsub.f32 %v2299, %v2492
        %v2620 = vsub.f32 %v2300, %v2492
        %v2621 = vmul.f32 %v2493, 1.442695
        %v2622 = vpow.pop %v2621
        %v2623 = vmul.f32 %v2494, 1.442695
        %v2624 = vpow.pop %v2623
        %v2625 = vmul.f32 %v2495, 1.442695
        %v2626 = vpow.pop %v2625
        %v2627 = vmul.f32 %v2496, 1.442695
        %v2628 = vpow.pop %v2627
        %v2629 = vmul.f32 %v2497, 1.442695
        %v2630 = vpow.pop %v2629
        %v2631 = vmul.f32 %v2498, 1.442695
        %v2632 = vpow.pop %v2631
        %v2633 = vmul.f32 %v2499, 1.442695
        %v2634 = vpow.pop %v2633
        %v2635 = vmul.f32 %v2500, 1.442695
        %v2636 = vpow.pop %v2635
        %v2637 = vmul.f32 %v2501, 1.442695
        %v2638 = vpow.pop %v2637
        %v2639 = vmul.f32 %v2502, 1.442695
        %v2640 = vpow.pop %v2639
        %v2641 = vmul.f32 %v2503, 1.442695
        %v2642 = vpow.pop %v2641
        %v2643 = vmul.f32 %v2504, 1.442695
        %v2644 = vpow.pop %v2643
        %v2645 = vmul.f32 %v2505, 1.442695
        %v2646 = vpow.pop %v2645
        %v2647 = vmul.f32 %v2506, 1.442695
        %v2648 = vpow.pop %v2647
        %v2649 = vmul.f32 %v2507, 1.442695
        %v2650 = vpow.pop %v2649
        %v2651 = vmul.f32 %v2508, 1.442695
        %v2652 = vpow.pop %v2651
        %v2653 = vmul.f32 %v2509, 1.442695
        %v2654 = vpow.pop %v2653
        %v2655 = vmul.f32 %v2510, 1.442695
        %v2656 = vpow.pop %v2655
        %v2657 = vmul.f32 %v2511, 1.442695
        %v2658 = vpow.pop %v2657
        %v2659 = vmul.f32 %v2512, 1.442695
        %v2660 = vpow.pop %v2659
        %v2661 = vmul.f32 %v2513, 1.442695
        %v2662 = vpow.pop %v2661
        %v2663 = vmul.f32 %v2514, 1.442695
        %v2664 = vpow.pop %v2663
        %v2665 = vmul.f32 %v2515, 1.442695
        %v2666 = vpow.pop %v2665
        %v2667 = vmul.f32 %v2516, 1.442695
        %v2668 = vpow.pop %v2667
        %v2669 = vmul.f32 %v2517, 1.442695
        %v2670 = vpow.pop %v2669
        %v2671 = vmul.f32 %v2518, 1.442695
        %v2672 = vpow.pop %v2671
        %v2673 = vmul.f32 %v2519, 1.442695
        %v2674 = vpow.pop %v2673
        %v2675 = vmul.f32 %v2520, 1.442695
        %v2676 = vpow.pop %v2675
        %v2677 = vmul.f32 %v2521, 1.442695
        %v2678 = vpow.pop %v2677
        %v2679 = vmul.f32 %v2522, 1.442695
        %v2680 = vpow.pop %v2679
        %v2681 = vmul.f32 %v2523, 1.442695
        %v2682 = vpow.pop %v2681
        %v2683 = vmul.f32 %v2524, 1.442695
        %v2684 = vpow.pop %v2683
        %v2685 = vmul.f32 %v2525, 1.442695
        %v2686 = vpow.pop %v2685
        %v2687 = vmul.f32 %v2526, 1.442695
        %v2688 = vpow.pop %v2687
        %v2689 = vmul.f32 %v2527, 1.442695
        %v2690 = vpow.pop %v2689
        %v2691 = vmul.f32 %v2528, 1.442695
        %v2692 = vpow.pop %v2691
        %v2693 = vmul.f32 %v2529, 1.442695
        %v2694 = vpow.pop %v2693
        %v2695 = vmul.f32 %v2530, 1.442695
        %v2696 = vpow.pop %v2695
        %v2697 = vmul.f32 %v2531, 1.442695
        %v2698 = vpow.pop %v2697
        %v2699 = vmul.f32 %v2532, 1.442695
        %v2700 = vpow.pop %v2699
        %v2701 = vmul.f32 %v2533, 1.442695
        %v2702 = vpow.pop %v2701
        %v2703 = vmul.f32 %v2534, 1.442695
        %v2704 = vpow.pop %v2703
        %v2705 = vmul.f32 %v2535, 1.442695
        %v2706 = vpow.pop %v2705
        %v2707 = vmul.f32 %v2536, 1.442695
        %v2708 = vpow.pop %v2707
        %v2709 = vmul.f32 %v2537, 1.442695
        %v2710 = vpow.pop %v2709
        %v2711 = vmul.f32 %v2538, 1.442695
        %v2712 = vpow.pop %v2711
        %v2713 = vmul.f32 %v2539, 1.442695
        %v2714 = vpow.pop %v2713
        %v2715 = vmul.f32 %v2540, 1.442695
        %v2716 = vpow.pop %v2715
        %v2717 = vmul.f32 %v2541, 1.442695
        %v2718 = vpow.pop %v2717
        %v2719 = vmul.f32 %v2542, 1.442695
        %v2720 = vpow.pop %v2719
        %v2721 = vmul.f32 %v2543, 1.442695
        %v2722 = vpow.pop %v2721
        %v2723 = vmul.f32 %v2544, 1.442695
        %v2724 = vpow.pop %v2723
        %v2725 = vmul.f32 %v2545, 1.442695
        %v2726 = vpow.pop %v2725
        %v2727 = vmul.f32 %v2546, 1.442695
        %v2728 = vpow.pop %v2727
        %v2729 = vmul.f32 %v2547, 1.442695
        %v2730 = vpow.pop %v2729
        %v2731 = vmul.f32 %v2548, 1.442695
        %v2732 = vpow.pop %v2731
        %v2733 = vmul.f32 %v2549, 1.442695
        %v2734 = vpow.pop %v2733
        %v2735 = vmul.f32 %v2550, 1.442695
        %v2736 = vpow.pop %v2735
        %v2737 = vmul.f32 %v2551, 1.442695
        %v2738 = vpow.pop %v2737
        %v2739 = vmul.f32 %v2552, 1.442695
        %v2740 = vpow.pop %v2739
        %v2741 = vmul.f32 %v2553, 1.442695
        %v2742 = vpow.pop %v2741
        %v2743 = vmul.f32 %v2554, 1.442695
        %v2744 = vpow.pop %v2743
        %v2745 = vmul.f32 %v2555, 1.442695
        %v2746 = vpow.pop %v2745
        %v2747 = vmul.f32 %v2556, 1.442695
        %v2748 = vpow.pop %v2747
        %v2749 = vmul.f32 %v2557, 1.442695
        %v2750 = vpow.pop %v2749
        %v2751 = vmul.f32 %v2558, 1.442695
        %v2752 = vpow.pop %v2751
        %v2753 = vmul.f32 %v2559, 1.442695
        %v2754 = vpow.pop %v2753
        %v2755 = vmul.f32 %v2560, 1.442695
        %v2756 = vpow.pop %v2755
        %v2757 = vmul.f32 %v2561, 1.442695
        %v2758 = vpow.pop %v2757
        %v2759 = vmul.f32 %v2562, 1.442695
        %v2760 = vpow.pop %v2759
        %v2761 = vmul.f32 %v2563, 1.442695
        %v2762 = vpow.pop %v2761
        %v2763 = vmul.f32 %v2564, 1.442695
        %v2764 = vpow.pop %v2763
        %v2765 = vmul.f32 %v2565, 1.442695
        %v2766 = vpow.pop %v2765
        %v2767 = vmul.f32 %v2566, 1.442695
        %v2768 = vpow.pop %v2767
        %v2769 = vmul.f32 %v2567, 1.442695
        %v2770 = vpow.pop %v2769
        %v2771 = vmul.f32 %v2568, 1.442695
        %v2772 = vpow.pop %v2771
        %v2773 = vmul.f32 %v2569, 1.442695
        %v2774 = vpow.pop %v2773
        %v2775 = vmul.f32 %v2570, 1.442695
        %v2776 = vpow.pop %v2775
        %v2777 = vmul.f32 %v2571, 1.442695
        %v2778 = vpow.pop %v2777
        %v2779 = vmul.f32 %v2572, 1.442695
        %v2780 = vpow.pop %v2779
        %v2781 = vmul.f32 %v2573, 1.442695
        %v2782 = vpow.pop %v2781
        %v2783 = vmul.f32 %v2574, 1.442695
        %v2784 = vpow.pop %v2783
        %v2785 = vmul.f32 %v2575, 1.442695
        %v2786 = vpow.pop %v2785
        %v2787 = vmul.f32 %v2576, 1.442695
        %v2788 = vpow.pop %v2787
        %v2789 = vmul.f32 %v2577, 1.442695
        %v2790 = vpow.pop %v2789
        %v2791 = vmul.f32 %v2578, 1.442695
        %v2792 = vpow.pop %v2791
        %v2793 = vmul.f32 %v2579, 1.442695
        %v2794 = vpow.pop %v2793
        %v2795 = vmul.f32 %v2580, 1.442695
        %v2796 = vpow.pop %v2795
        %v2797 = vmul.f32 %v2581, 1.442695
        %v2798 = vpow.pop %v2797
        %v2799 = vmul.f32 %v2582, 1.442695
        %v2800 = vpow.pop %v2799
        %v2801 = vmul.f32 %v2583, 1.442695
        %v2802 = vpow.pop %v2801
        %v2803 = vmul.f32 %v2584, 1.442695
        %v2804 = vpow.pop %v2803
        %v2805 = vmul.f32 %v2585, 1.442695
        %v2806 = vpow.pop %v2805
        %v2807 = vmul.f32 %v2586, 1.442695
        %v2808 = vpow.pop %v2807
        %v2809 = vmul.f32 %v2587, 1.442695
        %v2810 = vpow.pop %v2809
        %v2811 = vmul.f32 %v2588, 1.442695
        %v2812 = vpow.pop %v2811
        %v2813 = vmul.f32 %v2589, 1.442695
        %v2814 = vpow.pop %v2813
        %v2815 = vmul.f32 %v2590, 1.442695
        %v2816 = vpow.pop %v2815
        %v2817 = vmul.f32 %v2591, 1.442695
        %v2818 = vpow.pop %v2817
        %v2819 = vmul.f32 %v2592, 1.442695
        %v2820 = vpow.pop %v2819
        %v2821 = vmul.f32 %v2593, 1.442695
        %v2822 = vpow.pop %v2821
        %v2823 = vmul.f32 %v2594, 1.442695
        %v2824 = vpow.pop %v2823
        %v2825 = vmul.f32 %v2595, 1.442695
        %v2826 = vpow.pop %v2825
        %v2827 = vmul.f32 %v2596, 1.442695
        %v2828 = vpow.pop %v2827
        %v2829 = vmul.f32 %v2597, 1.442695
        %v2830 = vpow.pop %v2829
        %v2831 = vmul.f32 %v2598, 1.442695
        %v2832 = vpow.pop %v2831
        %v2833 = vmul.f32 %v2599, 1.442695
        %v2834 = vpow.pop %v2833
        %v2835 = vmul.f32 %v2600, 1.442695
        %v2836 = vpow.pop %v2835
        %v2837 = vmul.f32 %v2601, 1.442695
        %v2838 = vpow.pop %v2837
        %v2839 = vmul.f32 %v2602, 1.442695
        %v2840 = vpow.pop %v2839
        %v2841 = vmul.f32 %v2603, 1.442695
        %v2842 = vpow.pop %v2841
        %v2843 = vmul.f32 %v2604, 1.442695
        %v2844 = vpow.pop %v2843
        %v2845 = vmul.f32 %v2605, 1.442695
        %v2846 = vpow.pop %v2845
        %v2847 = vmul.f32 %v2606, 1.442695
        %v2848 = vpow.pop %v2847
        %v2849 = vmul.f32 %v2607, 1.442695
        %v2850 = vpow.pop %v2849
        %v2851 = vmul.f32 %v2608, 1.442695
        %v2852 = vpow.pop %v2851
        %v2853 = vmul.f32 %v2609, 1.442695
        %v2854 = vpow.pop %v2853
        %v2855 = vmul.f32 %v2610, 1.442695
        %v2856 = vpow.pop %v2855
        %v2857 = vmul.f32 %v2611, 1.442695
        %v2858 = vpow.pop %v2857
        %v2859 = vmul.f32 %v2612, 1.442695
        %v2860 = vpow.pop %v2859
        %v2861 = vmul.f32 %v2613, 1.442695
        %v2862 = vpow.pop %v2861
        %v2863 = vmul.f32 %v2614, 1.442695
        %v2864 = vpow.pop %v2863
        %v2865 = vmul.f32 %v2615, 1.442695
        %v2866 = vpow.pop %v2865
        %v2867 = vmul.f32 %v2616, 1.442695
        %v2868 = vpow.pop %v2867
        %v2869 = vmul.f32 %v2617, 1.442695
        %v2870 = vpow.pop %v2869
        %v2871 = vmul.f32 %v2618, 1.442695
        %v2872 = vpow.pop %v2871
        %v2873 = vmul.f32 %v2619, 1.442695
        %v2874 = vpow.pop %v2873
        %v2875 = vmul.f32 %v2620, 1.442695
        %v2876 = vpow.pop %v2875
        %2877 = vst [vmem:[#allocation2] sm:$0xff] %v2622
        %2878 = vst [vmem:[#allocation2 + $0x8] sm:$0xff] %v2624
        %2879 = vst [vmem:[#allocation2 + $0x10] sm:$0xff] %v2626
        %2880 = vst [vmem:[#allocation2 + $0x18] sm:$0xff] %v2628
        %2881 = vst [vmem:[#allocation2 + $0x20] sm:$0xff] %v2630
        %2882 = vst [vmem:[#allocation2 + $0x28] sm:$0xff] %v2632
        %2883 = vst [vmem:[#allocation2 + $0x30] sm:$0xff] %v2634
        %2884 = vst [vmem:[#allocation2 + $0x38] sm:$0xff] %v2636
        %2885 = vst [vmem:[#allocation2 + $0x40] sm:$0xff] %v2638
        %2886 = vst [vmem:[#allocation2 + $0x48] sm:$0xff] %v2640
        %2887 = vst [vmem:[#allocation2 + $0x50] sm:$0xff] %v2642
        %2888 = vst [vmem:[#allocation2 + $0x58] sm:$0xff] %v2644
        %2889 = vst [vmem:[#allocation2 + $0x60] sm:$0xff] %v2646
        %2890 = vst [vmem:[#allocation2 + $0x68] sm:$0xff] %v2648
        %2891 = vst [vmem:[#allocation2 + $0x70] sm:$0xff] %v2650
        %2892 = vst [vmem:[#allocation2 + $0x78] sm:$0xff] %v2652
        %2893 = vst [vmem:[#allocation2 + $0x80] sm:$0xff] %v2654
        %2894 = vst [vmem:[#allocation2 + $0x88] sm:$0xff] %v2656
        %2895 = vst [vmem:[#allocation2 + $0x90] sm:$0xff] %v2658
        %2896 = vst [vmem:[#allocation2 + $0x98] sm:$0xff] %v2660
        %2897 = vst [vmem:[#allocation2 + $0xa0] sm:$0xff] %v2662
        %2898 = vst [vmem:[#allocation2 + $0xa8] sm:$0xff] %v2664
        %2899 = vst [vmem:[#allocation2 + $0xb0] sm:$0xff] %v2666
        %2900 = vst [vmem:[#allocation2 + $0xb8] sm:$0xff] %v2668
        %2901 = vst [vmem:[#allocation2 + $0xc0] sm:$0xff] %v2670
        %2902 = vst [vmem:[#allocation2 + $0xc8] sm:$0xff] %v2672
        %2903 = vst [vmem:[#allocation2 + $0xd0] sm:$0xff] %v2674
        %2904 = vst [vmem:[#allocation2 + $0xd8] sm:$0xff] %v2676
        %2905 = vst [vmem:[#allocation2 + $0xe0] sm:$0xff] %v2678
        %2906 = vst [vmem:[#allocation2 + $0xe8] sm:$0xff] %v2680
        %2907 = vst [vmem:[#allocation2 + $0xf0] sm:$0xff] %v2682
        %2908 = vst [vmem:[#allocation2 + $0xf8] sm:$0xff] %v2684
        %2909 = vst [vmem:[#allocation2 + $0x100] sm:$0xff] %v2686
        %2910 = vst [vmem:[#allocation2 + $0x108] sm:$0xff] %v2688
        %2911 = vst [vmem:[#allocation2 + $0x110] sm:$0xff] %v2690
        %2912 = vst [vmem:[#allocation2 + $0x118] sm:$0xff] %v2692
        %2913 = vst [vmem:[#allocation2 + $0x120] sm:$0xff] %v2694
        %2914 = vst [vmem:[#allocation2 + $0x128] sm:$0xff] %v2696
        %2915 = vst [vmem:[#allocation2 + $0x130] sm:$0xff] %v2698
        %2916 = vst [vmem:[#allocation2 + $0x138] sm:$0xff] %v2700
        %2917 = vst [vmem:[#allocation2 + $0x140] sm:$0xff] %v2702
        %2918 = vst [vmem:[#allocation2 + $0x148] sm:$0xff] %v2704
        %2919 = vst [vmem:[#allocation2 + $0x150] sm:$0xff] %v2706
        %2920 = vst [vmem:[#allocation2 + $0x158] sm:$0xff] %v2708
        %2921 = vst [vmem:[#allocation2 + $0x160] sm:$0xff] %v2710
        %2922 = vst [vmem:[#allocation2 + $0x168] sm:$0xff] %v2712
        %2923 = vst [vmem:[#allocation2 + $0x170] sm:$0xff] %v2714
        %2924 = vst [vmem:[#allocation2 + $0x178] sm:$0xff] %v2716
        %2925 = vst [vmem:[#allocation2 + $0x180] sm:$0xff] %v2718
        %2926 = vst [vmem:[#allocation2 + $0x188] sm:$0xff] %v2720
        %2927 = vst [vmem:[#allocation2 + $0x190] sm:$0xff] %v2722
        %2928 = vst [vmem:[#allocation2 + $0x198] sm:$0xff] %v2724
        %2929 = vst [vmem:[#allocation2 + $0x1a0] sm:$0xff] %v2726
        %2930 = vst [vmem:[#allocation2 + $0x1a8] sm:$0xff] %v2728
        %2931 = vst [vmem:[#allocation2 + $0x1b0] sm:$0xff] %v2730
        %2932 = vst [vmem:[#allocation2 + $0x1b8] sm:$0xff] %v2732
        %2933 = vst [vmem:[#allocation2 + $0x1c0] sm:$0xff] %v2734
        %2934 = vst [vmem:[#allocation2 + $0x1c8] sm:$0xff] %v2736
        %2935 = vst [vmem:[#allocation2 + $0x1d0] sm:$0xff] %v2738
        %2936 = vst [vmem:[#allocation2 + $0x1d8] sm:$0xff] %v2740
        %2937 = vst [vmem:[#allocation2 + $0x1e0] sm:$0xff] %v2742
        %2938 = vst [vmem:[#allocation2 + $0x1e8] sm:$0xff] %v2744
        %2939 = vst [vmem:[#allocation2 + $0x1f0] sm:$0xff] %v2746
        %2940 = vst [vmem:[#allocation2 + $0x1f8] sm:$0xff] %v2748
        %2941 = vst [vmem:[#allocation2 + $0x200] sm:$0xff] %v2750
        %2942 = vst [vmem:[#allocation2 + $0x208] sm:$0xff] %v2752
        %2943 = vst [vmem:[#allocation2 + $0x210] sm:$0xff] %v2754
        %2944 = vst [vmem:[#allocation2 + $0x218] sm:$0xff] %v2756
        %2945 = vst [vmem:[#allocation2 + $0x220] sm:$0xff] %v2758
        %2946 = vst [vmem:[#allocation2 + $0x228] sm:$0xff] %v2760
        %2947 = vst [vmem:[#allocation2 + $0x230] sm:$0xff] %v2762
        %2948 = vst [vmem:[#allocation2 + $0x238] sm:$0xff] %v2764
        %2949 = vst [vmem:[#allocation2 + $0x240] sm:$0xff] %v2766
        %2950 = vst [vmem:[#allocation2 + $0x248] sm:$0xff] %v2768
        %2951 = vst [vmem:[#allocation2 + $0x250] sm:$0xff] %v2770
        %2952 = vst [vmem:[#allocation2 + $0x258] sm:$0xff] %v2772
        %2953 = vst [vmem:[#allocation2 + $0x260] sm:$0xff] %v2774
        %2954 = vst [vmem:[#allocation2 + $0x268] sm:$0xff] %v2776
        %2955 = vst [vmem:[#allocation2 + $0x270] sm:$0xff] %v2778
        %2956 = vst [vmem:[#allocation2 + $0x278] sm:$0xff] %v2780
        %2957 = vst [vmem:[#allocation2 + $0x280] sm:$0xff] %v2782
        %2958 = vst [vmem:[#allocation2 + $0x288] sm:$0xff] %v2784
        %2959 = vst [vmem:[#allocation2 + $0x290] sm:$0xff] %v2786
        %2960 = vst [vmem:[#allocation2 + $0x298] sm:$0xff] %v2788
        %2961 = vst [vmem:[#allocation2 + $0x2a0] sm:$0xff] %v2790
        %2962 = vst [vmem:[#allocation2 + $0x2a8] sm:$0xff] %v2792
        %2963 = vst [vmem:[#allocation2 + $0x2b0] sm:$0xff] %v2794
        %2964 = vst [vmem:[#allocation2 + $0x2b8] sm:$0xff] %v2796
        %2965 = vst [vmem:[#allocation2 + $0x2c0] sm:$0xff] %v2798
        %2966 = vst [vmem:[#allocation2 + $0x2c8] sm:$0xff] %v2800
        %2967 = vst [vmem:[#allocation2 + $0x2d0] sm:$0xff] %v2802
        %2968 = vst [vmem:[#allocation2 + $0x2d8] sm:$0xff] %v2804
        %2969 = vst [vmem:[#allocation2 + $0x2e0] sm:$0xff] %v2806
        %2970 = vst [vmem:[#allocation2 + $0x2e8] sm:$0xff] %v2808
        %2971 = vst [vmem:[#allocation2 + $0x2f0] sm:$0xff] %v2810
        %2972 = vst [vmem:[#allocation2 + $0x2f8] sm:$0xff] %v2812
        %2973 = vst [vmem:[#allocation2 + $0x300] sm:$0xff] %v2814
        %2974 = vst [vmem:[#allocation2 + $0x308] sm:$0xff] %v2816
        %2975 = vst [vmem:[#allocation2 + $0x310] sm:$0xff] %v2818
        %2976 = vst [vmem:[#allocation2 + $0x318] sm:$0xff] %v2820
        %2977 = vst [vmem:[#allocation2 + $0x320] sm:$0xff] %v2822
        %2978 = vst [vmem:[#allocation2 + $0x328] sm:$0xff] %v2824
        %2979 = vst [vmem:[#allocation2 + $0x330] sm:$0xff] %v2826
        %2980 = vst [vmem:[#allocation2 + $0x338] sm:$0xff] %v2828
        %2981 = vst [vmem:[#allocation2 + $0x340] sm:$0xff] %v2830
        %2982 = vst [vmem:[#allocation2 + $0x348] sm:$0xff] %v2832
        %2983 = vst [vmem:[#allocation2 + $0x350] sm:$0xff] %v2834
        %2984 = vst [vmem:[#allocation2 + $0x358] sm:$0xff] %v2836
        %2985 = vst [vmem:[#allocation2 + $0x360] sm:$0xff] %v2838
        %2986 = vst [vmem:[#allocation2 + $0x368] sm:$0xff] %v2840
        %2987 = vst [vmem:[#allocation2 + $0x370] sm:$0xff] %v2842
        %2988 = vst [vmem:[#allocation2 + $0x378] sm:$0xff] %v2844
        %2989 = vst [vmem:[#allocation2 + $0x380] sm:$0xff] %v2846
        %2990 = vst [vmem:[#allocation2 + $0x388] sm:$0xff] %v2848
        %2991 = vst [vmem:[#allocation2 + $0x390] sm:$0xff] %v2850
        %2992 = vst [vmem:[#allocation2 + $0x398] sm:$0xff] %v2852
        %2993 = vst [vmem:[#allocation2 + $0x3a0] sm:$0xff] %v2854
        %2994 = vst [vmem:[#allocation2 + $0x3a8] sm:$0xff] %v2856
        %2995 = vst [vmem:[#allocation2 + $0x3b0] sm:$0xff] %v2858
        %2996 = vst [vmem:[#allocation2 + $0x3b8] sm:$0xff] %v2860
        %2997 = vst [vmem:[#allocation2 + $0x3c0] sm:$0xff] %v2862
        %2998 = vst [vmem:[#allocation2 + $0x3c8] sm:$0xff] %v2864
        %2999 = vst [vmem:[#allocation2 + $0x3d0] sm:$0xff] %v2866
        %3000 = vst [vmem:[#allocation2 + $0x3d8] sm:$0xff] %v2868
        %3001 = vst [vmem:[#allocation2 + $0x3e0] sm:$0xff] %v2870
        %3002 = vst [vmem:[#allocation2 + $0x3e8] sm:$0xff] %v2872
        %3003 = vst [vmem:[#allocation2 + $0x3f0] sm:$0xff] %v2874
        %3004 = vst [vmem:[#allocation2 + $0x3f8] sm:$0xff] %v2876
        %v3005 = vld [vmem:[#allocation2] sm:$0xff]
        %v3006 = vld [vmem:[#allocation2 + $0x8] sm:$0xff]
        %v3007 = vld [vmem:[#allocation2 + $0x10] sm:$0xff]
        %v3008 = vld [vmem:[#allocation2 + $0x18] sm:$0xff]
        %v3009 = vld [vmem:[#allocation2 + $0x20] sm:$0xff]
        %v3010 = vld [vmem:[#allocation2 + $0x28] sm:$0xff]
        %v3011 = vld [vmem:[#allocation2 + $0x30] sm:$0xff]
        %v3012 = vld [vmem:[#allocation2 + $0x38] sm:$0xff]
        %v3013 = vld [vmem:[#allocation2 + $0x40] sm:$0xff]
        %v3014 = vld [vmem:[#allocation2 + $0x48] sm:$0xff]
        %v3015 = vld [vmem:[#allocation2 + $0x50] sm:$0xff]
        %v3016 = vld [vmem:[#allocation2 + $0x58] sm:$0xff]
        %v3017 = vld [vmem:[#allocation2 + $0x60] sm:$0xff]
        %v3018 = vld [vmem:[#allocation2 + $0x68] sm:$0xff]
        %v3019 = vld [vmem:[#allocation2 + $0x70] sm:$0xff]
        %v3020 = vld [vmem:[#allocation2 + $0x78] sm:$0xff]
        %v3021 = vld [vmem:[#allocation2 + $0x80] sm:$0xff]
        %v3022 = vld [vmem:[#allocation2 + $0x88] sm:$0xff]
        %v3023 = vld [vmem:[#allocation2 + $0x90] sm:$0xff]
        %v3024 = vld [vmem:[#allocation2 + $0x98] sm:$0xff]
        %v3025 = vld [vmem:[#allocation2 + $0xa0] sm:$0xff]
        %v3026 = vld [vmem:[#allocation2 + $0xa8] sm:$0xff]
        %v3027 = vld [vmem:[#allocation2 + $0xb0] sm:$0xff]
        %v3028 = vld [vmem:[#allocation2 + $0xb8] sm:$0xff]
        %v3029 = vld [vmem:[#allocation2 + $0xc0] sm:$0xff]
        %v3030 = vld [vmem:[#allocation2 + $0xc8] sm:$0xff]
        %v3031 = vld [vmem:[#allocation2 + $0xd0] sm:$0xff]
        %v3032 = vld [vmem:[#allocation2 + $0xd8] sm:$0xff]
        %v3033 = vld [vmem:[#allocation2 + $0xe0] sm:$0xff]
        %v3034 = vld [vmem:[#allocation2 + $0xe8] sm:$0xff]
        %v3035 = vld [vmem:[#allocation2 + $0xf0] sm:$0xff]
        %v3036 = vld [vmem:[#allocation2 + $0xf8] sm:$0xff]
        %v3037 = vld [vmem:[#allocation2 + $0x100] sm:$0xff]
        %v3038 = vld [vmem:[#allocation2 + $0x108] sm:$0xff]
        %v3039 = vld [vmem:[#allocation2 + $0x110] sm:$0xff]
        %v3040 = vld [vmem:[#allocation2 + $0x118] sm:$0xff]
        %v3041 = vld [vmem:[#allocation2 + $0x120] sm:$0xff]
        %v3042 = vld [vmem:[#allocation2 + $0x128] sm:$0xff]
        %v3043 = vld [vmem:[#allocation2 + $0x130] sm:$0xff]
        %v3044 = vld [vmem:[#allocation2 + $0x138] sm:$0xff]
        %v3045 = vld [vmem:[#allocation2 + $0x140] sm:$0xff]
        %v3046 = vld [vmem:[#allocation2 + $0x148] sm:$0xff]
        %v3047 = vld [vmem:[#allocation2 + $0x150] sm:$0xff]
        %v3048 = vld [vmem:[#allocation2 + $0x158] sm:$0xff]
        %v3049 = vld [vmem:[#allocation2 + $0x160] sm:$0xff]
        %v3050 = vld [vmem:[#allocation2 + $0x168] sm:$0xff]
        %v3051 = vld [vmem:[#allocation2 + $0x170] sm:$0xff]
        %v3052 = vld [vmem:[#allocation2 + $0x178] sm:$0xff]
        %v3053 = vld [vmem:[#allocation2 + $0x180] sm:$0xff]
        %v3054 = vld [vmem:[#allocation2 + $0x188] sm:$0xff]
        %v3055 = vld [vmem:[#allocation2 + $0x190] sm:$0xff]
        %v3056 = vld [vmem:[#allocation2 + $0x198] sm:$0xff]
        %v3057 = vld [vmem:[#allocation2 + $0x1a0] sm:$0xff]
        %v3058 = vld [vmem:[#allocation2 + $0x1a8] sm:$0xff]
        %v3059 = vld [vmem:[#allocation2 + $0x1b0] sm:$0xff]
        %v3060 = vld [vmem:[#allocation2 + $0x1b8] sm:$0xff]
        %v3061 = vld [vmem:[#allocation2 + $0x1c0] sm:$0xff]
        %v3062 = vld [vmem:[#allocation2 + $0x1c8] sm:$0xff]
        %v3063 = vld [vmem:[#allocation2 + $0x1d0] sm:$0xff]
        %v3064 = vld [vmem:[#allocation2 + $0x1d8] sm:$0xff]
        %v3065 = vld [vmem:[#allocation2 + $0x1e0] sm:$0xff]
        %v3066 = vld [vmem:[#allocation2 + $0x1e8] sm:$0xff]
        %v3067 = vld [vmem:[#allocation2 + $0x1f0] sm:$0xff]
        %v3068 = vld [vmem:[#allocation2 + $0x1f8] sm:$0xff]
        %v3069 = vld [vmem:[#allocation2 + $0x200] sm:$0xff]
        %v3070 = vld [vmem:[#allocation2 + $0x208] sm:$0xff]
        %v3071 = vld [vmem:[#allocation2 + $0x210] sm:$0xff]
        %v3072 = vld [vmem:[#allocation2 + $0x218] sm:$0xff]
        %v3073 = vld [vmem:[#allocation2 + $0x220] sm:$0xff]
        %v3074 = vld [vmem:[#allocation2 + $0x228] sm:$0xff]
        %v3075 = vld [vmem:[#allocation2 + $0x230] sm:$0xff]
        %v3076 = vld [vmem:[#allocation2 + $0x238] sm:$0xff]
        %v3077 = vld [vmem:[#allocation2 + $0x240] sm:$0xff]
        %v3078 = vld [vmem:[#allocation2 + $0x248] sm:$0xff]
        %v3079 = vld [vmem:[#allocation2 + $0x250] sm:$0xff]
        %v3080 = vld [vmem:[#allocation2 + $0x258] sm:$0xff]
        %v3081 = vld [vmem:[#allocation2 + $0x260] sm:$0xff]
        %v3082 = vld [vmem:[#allocation2 + $0x268] sm:$0xff]
        %v3083 = vld [vmem:[#allocation2 + $0x270] sm:$0xff]
        %v3084 = vld [vmem:[#allocation2 + $0x278] sm:$0xff]
        %v3085 = vld [vmem:[#allocation2 + $0x280] sm:$0xff]
        %v3086 = vld [vmem:[#allocation2 + $0x288] sm:$0xff]
        %v3087 = vld [vmem:[#allocation2 + $0x290] sm:$0xff]
        %v3088 = vld [vmem:[#allocation2 + $0x298] sm:$0xff]
        %v3089 = vld [vmem:[#allocation2 + $0x2a0] sm:$0xff]
        %v3090 = vld [vmem:[#allocation2 + $0x2a8] sm:$0xff]
        %v3091 = vld [vmem:[#allocation2 + $0x2b0] sm:$0xff]
        %v3092 = vld [vmem:[#allocation2 + $0x2b8] sm:$0xff]
        %v3093 = vld [vmem:[#allocation2 + $0x2c0] sm:$0xff]
        %v3094 = vld [vmem:[#allocation2 + $0x2c8] sm:$0xff]
        %v3095 = vld [vmem:[#allocation2 + $0x2d0] sm:$0xff]
        %v3096 = vld [vmem:[#allocation2 + $0x2d8] sm:$0xff]
        %v3097 = vld [vmem:[#allocation2 + $0x2e0] sm:$0xff]
        %v3098 = vld [vmem:[#allocation2 + $0x2e8] sm:$0xff]
        %v3099 = vld [vmem:[#allocation2 + $0x2f0] sm:$0xff]
        %v3100 = vld [vmem:[#allocation2 + $0x2f8] sm:$0xff]
        %v3101 = vld [vmem:[#allocation2 + $0x300] sm:$0xff]
        %v3102 = vld [vmem:[#allocation2 + $0x308] sm:$0xff]
        %v3103 = vld [vmem:[#allocation2 + $0x310] sm:$0xff]
        %v3104 = vld [vmem:[#allocation2 + $0x318] sm:$0xff]
        %v3105 = vld [vmem:[#allocation2 + $0x320] sm:$0xff]
        %v3106 = vld [vmem:[#allocation2 + $0x328] sm:$0xff]
        %v3107 = vld [vmem:[#allocation2 + $0x330] sm:$0xff]
        %v3108 = vld [vmem:[#allocation2 + $0x338] sm:$0xff]
        %v3109 = vld [vmem:[#allocation2 + $0x340] sm:$0xff]
        %v3110 = vld [vmem:[#allocation2 + $0x348] sm:$0xff]
        %v3111 = vld [vmem:[#allocation2 + $0x350] sm:$0xff]
        %v3112 = vld [vmem:[#allocation2 + $0x358] sm:$0xff]
        %v3113 = vld [vmem:[#allocation2 + $0x360] sm:$0xff]
        %v3114 = vld [vmem:[#allocation2 + $0x368] sm:$0xff]
        %v3115 = vld [vmem:[#allocation2 + $0x370] sm:$0xff]
        %v3116 = vld [vmem:[#allocation2 + $0x378] sm:$0xff]
        %v3117 = vld [vmem:[#allocation2 + $0x380] sm:$0xff]
        %v3118 = vld [vmem:[#allocation2 + $0x388] sm:$0xff]
        %v3119 = vld [vmem:[#allocation2 + $0x390] sm:$0xff]
        %v3120 = vld [vmem:[#allocation2 + $0x398] sm:$0xff]
        %v3121 = vld [vmem:[#allocation2 + $0x3a0] sm:$0xff]
        %v3122 = vld [vmem:[#allocation2 + $0x3a8] sm:$0xff]
        %v3123 = vld [vmem:[#allocation2 + $0x3b0] sm:$0xff]
        %v3124 = vld [vmem:[#allocation2 + $0x3b8] sm:$0xff]
        %v3125 = vld [vmem:[#allocation2 + $0x3c0] sm:$0xff]
        %v3126 = vld [vmem:[#allocation2 + $0x3c8] sm:$0xff]
        %v3127 = vld [vmem:[#allocation2 + $0x3d0] sm:$0xff]
        %v3128 = vld [vmem:[#allocation2 + $0x3d8] sm:$0xff]
        %v3129 = vld [vmem:[#allocation2 + $0x3e0] sm:$0xff]
        %v3130 = vld [vmem:[#allocation2 + $0x3e8] sm:$0xff]
        %v3131 = vld [vmem:[#allocation2 + $0x3f0] sm:$0xff]
        %v3132 = vld [vmem:[#allocation2 + $0x3f8] sm:$0xff]
        %v3133 = vadd.f32 %v3005, %v3006
        %3134 = vadd.xlane.f32.xlu0 %v3133
        %v3135 = vpop.xlane.xlu0 %3134
        %v3136 = vadd.f32 %v3007, %v3008
        %3137 = vadd.xlane.f32.xlu0 %v3136
        %v3138 = vpop.xlane.xlu0 %3137
        %v3139 = vadd.f32 %v3009, %v3010
        %3140 = vadd.xlane.f32.xlu0 %v3139
        %v3141 = vpop.xlane.xlu0 %3140
        %v3142 = vadd.f32 %v3011, %v3012
        %3143 = vadd.xlane.f32.xlu0 %v3142
        %v3144 = vpop.xlane.xlu0 %3143
        %v3145 = vadd.f32 %v3013, %v3014
        %3146 = vadd.xlane.f32.xlu0 %v3145
        %v3147 = vpop.xlane.xlu0 %3146
        %v3148 = vadd.f32 %v3015, %v3016
        %3149 = vadd.xlane.f32.xlu0 %v3148
        %v3150 = vpop.xlane.xlu0 %3149
        %v3151 = vadd.f32 %v3017, %v3018
        %3152 = vadd.xlane.f32.xlu0 %v3151
        %v3153 = vpop.xlane.xlu0 %3152
        %v3154 = vadd.f32 %v3019, %v3020
        %3155 = vadd.xlane.f32.xlu0 %v3154
        %v3156 = vpop.xlane.xlu0 %3155
        %v3157 = vadd.f32 %v3021, %v3022
        %3158 = vadd.xlane.f32.xlu0 %v3157
        %v3159 = vpop.xlane.xlu0 %3158
        %v3160 = vadd.f32 %v3023, %v3024
        %3161 = vadd.xlane.f32.xlu0 %v3160
        %v3162 = vpop.xlane.xlu0 %3161
        %v3163 = vadd.f32 %v3025, %v3026
        %3164 = vadd.xlane.f32.xlu0 %v3163
        %v3165 = vpop.xlane.xlu0 %3164
        %v3166 = vadd.f32 %v3027, %v3028
        %3167 = vadd.xlane.f32.xlu0 %v3166
        %v3168 = vpop.xlane.xlu0 %3167
        %v3169 = vadd.f32 %v3029, %v3030
        %3170 = vadd.xlane.f32.xlu0 %v3169
        %v3171 = vpop.xlane.xlu0 %3170
        %v3172 = vadd.f32 %v3031, %v3032
        %3173 = vadd.xlane.f32.xlu0 %v3172
        %v3174 = vpop.xlane.xlu0 %3173
        %v3175 = vadd.f32 %v3033, %v3034
        %3176 = vadd.xlane.f32.xlu0 %v3175
        %v3177 = vpop.xlane.xlu0 %3176
        %v3178 = vadd.f32 %v3035, %v3036
        %3179 = vadd.xlane.f32.xlu0 %v3178
        %v3180 = vpop.xlane.xlu0 %3179
        %v3181 = vadd.f32 %v3037, %v3038
        %3182 = vadd.xlane.f32.xlu0 %v3181
        %v3183 = vpop.xlane.xlu0 %3182
        %v3184 = vadd.f32 %v3039, %v3040
        %3185 = vadd.xlane.f32.xlu0 %v3184
        %v3186 = vpop.xlane.xlu0 %3185
        %v3187 = vadd.f32 %v3041, %v3042
        %3188 = vadd.xlane.f32.xlu0 %v3187
        %v3189 = vpop.xlane.xlu0 %3188
        %v3190 = vadd.f32 %v3043, %v3044
        %3191 = vadd.xlane.f32.xlu0 %v3190
        %v3192 = vpop.xlane.xlu0 %3191
        %v3193 = vadd.f32 %v3045, %v3046
        %3194 = vadd.xlane.f32.xlu0 %v3193
        %v3195 = vpop.xlane.xlu0 %3194
        %v3196 = vadd.f32 %v3047, %v3048
        %3197 = vadd.xlane.f32.xlu0 %v3196
        %v3198 = vpop.xlane.xlu0 %3197
        %v3199 = vadd.f32 %v3049, %v3050
        %3200 = vadd.xlane.f32.xlu0 %v3199
        %v3201 = vpop.xlane.xlu0 %3200
        %v3202 = vadd.f32 %v3051, %v3052
        %3203 = vadd.xlane.f32.xlu0 %v3202
        %v3204 = vpop.xlane.xlu0 %3203
        %v3205 = vadd.f32 %v3053, %v3054
        %3206 = vadd.xlane.f32.xlu0 %v3205
        %v3207 = vpop.xlane.xlu0 %3206
        %v3208 = vadd.f32 %v3055, %v3056
        %3209 = vadd.xlane.f32.xlu0 %v3208
        %v3210 = vpop.xlane.xlu0 %3209
        %v3211 = vadd.f32 %v3057, %v3058
        %3212 = vadd.xlane.f32.xlu0 %v3211
        %v3213 = vpop.xlane.xlu0 %3212
        %v3214 = vadd.f32 %v3059, %v3060
        %3215 = vadd.xlane.f32.xlu0 %v3214
        %v3216 = vpop.xlane.xlu0 %3215
        %v3217 = vadd.f32 %v3061, %v3062
        %3218 = vadd.xlane.f32.xlu0 %v3217
        %v3219 = vpop.xlane.xlu0 %3218
        %v3220 = vadd.f32 %v3063, %v3064
        %3221 = vadd.xlane.f32.xlu0 %v3220
        %v3222 = vpop.xlane.xlu0 %3221
        %v3223 = vadd.f32 %v3065, %v3066
        %3224 = vadd.xlane.f32.xlu0 %v3223
        %v3225 = vpop.xlane.xlu0 %3224
        %v3226 = vadd.f32 %v3067, %v3068
        %3227 = vadd.xlane.f32.xlu0 %v3226
        %v3228 = vpop.xlane.xlu0 %3227
        %v3229 = vadd.f32 %v3069, %v3070
        %3230 = vadd.xlane.f32.xlu0 %v3229
        %v3231 = vpop.xlane.xlu0 %3230
        %v3232 = vadd.f32 %v3071, %v3072
        %3233 = vadd.xlane.f32.xlu0 %v3232
        %v3234 = vpop.xlane.xlu0 %3233
        %v3235 = vadd.f32 %v3073, %v3074
        %3236 = vadd.xlane.f32.xlu0 %v3235
        %v3237 = vpop.xlane.xlu0 %3236
        %v3238 = vadd.f32 %v3075, %v3076
        %3239 = vadd.xlane.f32.xlu0 %v3238
        %v3240 = vpop.xlane.xlu0 %3239
        %v3241 = vadd.f32 %v3077, %v3078
        %3242 = vadd.xlane.f32.xlu0 %v3241
        %v3243 = vpop.xlane.xlu0 %3242
        %v3244 = vadd.f32 %v3079, %v3080
        %3245 = vadd.xlane.f32.xlu0 %v3244
        %v3246 = vpop.xlane.xlu0 %3245
        %v3247 = vadd.f32 %v3081, %v3082
        %3248 = vadd.xlane.f32.xlu0 %v3247
        %v3249 = vpop.xlane.xlu0 %3248
        %v3250 = vadd.f32 %v3083, %v3084
        %3251 = vadd.xlane.f32.xlu0 %v3250
        %v3252 = vpop.xlane.xlu0 %3251
        %v3253 = vadd.f32 %v3085, %v3086
        %3254 = vadd.xlane.f32.xlu0 %v3253
        %v3255 = vpop.xlane.xlu0 %3254
        %v3256 = vadd.f32 %v3087, %v3088
        %3257 = vadd.xlane.f32.xlu0 %v3256
        %v3258 = vpop.xlane.xlu0 %3257
        %v3259 = vadd.f32 %v3089, %v3090
        %3260 = vadd.xlane.f32.xlu0 %v3259
        %v3261 = vpop.xlane.xlu0 %3260
        %v3262 = vadd.f32 %v3091, %v3092
        %3263 = vadd.xlane.f32.xlu0 %v3262
        %v3264 = vpop.xlane.xlu0 %3263
        %v3265 = vadd.f32 %v3093, %v3094
        %3266 = vadd.xlane.f32.xlu0 %v3265
        %v3267 = vpop.xlane.xlu0 %3266
        %v3268 = vadd.f32 %v3095, %v3096
        %3269 = vadd.xlane.f32.xlu0 %v3268
        %v3270 = vpop.xlane.xlu0 %3269
        %v3271 = vadd.f32 %v3097, %v3098
        %3272 = vadd.xlane.f32.xlu0 %v3271
        %v3273 = vpop.xlane.xlu0 %3272
        %v3274 = vadd.f32 %v3099, %v3100
        %3275 = vadd.xlane.f32.xlu0 %v3274
        %v3276 = vpop.xlane.xlu0 %3275
        %v3277 = vadd.f32 %v3101, %v3102
        %3278 = vadd.xlane.f32.xlu0 %v3277
        %v3279 = vpop.xlane.xlu0 %3278
        %v3280 = vadd.f32 %v3103, %v3104
        %3281 = vadd.xlane.f32.xlu0 %v3280
        %v3282 = vpop.xlane.xlu0 %3281
        %v3283 = vadd.f32 %v3105, %v3106
        %3284 = vadd.xlane.f32.xlu0 %v3283
        %v3285 = vpop.xlane.xlu0 %3284
        %v3286 = vadd.f32 %v3107, %v3108
        %3287 = vadd.xlane.f32.xlu0 %v3286
        %v3288 = vpop.xlane.xlu0 %3287
        %v3289 = vadd.f32 %v3109, %v3110
        %3290 = vadd.xlane.f32.xlu0 %v3289
        %v3291 = vpop.xlane.xlu0 %3290
        %v3292 = vadd.f32 %v3111, %v3112
        %3293 = vadd.xlane.f32.xlu0 %v3292
        %v3294 = vpop.xlane.xlu0 %3293
        %v3295 = vadd.f32 %v3113, %v3114
        %3296 = vadd.xlane.f32.xlu0 %v3295
        %v3297 = vpop.xlane.xlu0 %3296
        %v3298 = vadd.f32 %v3115, %v3116
        %3299 = vadd.xlane.f32.xlu0 %v3298
        %v3300 = vpop.xlane.xlu0 %3299
        %v3301 = vadd.f32 %v3117, %v3118
        %3302 = vadd.xlane.f32.xlu0 %v3301
        %v3303 = vpop.xlane.xlu0 %3302
        %v3304 = vadd.f32 %v3119, %v3120
        %3305 = vadd.xlane.f32.xlu0 %v3304
        %v3306 = vpop.xlane.xlu0 %3305
        %v3307 = vadd.f32 %v3121, %v3122
        %3308 = vadd.xlane.f32.xlu0 %v3307
        %v3309 = vpop.xlane.xlu0 %3308
        %v3310 = vadd.f32 %v3123, %v3124
        %3311 = vadd.xlane.f32.xlu0 %v3310
        %v3312 = vpop.xlane.xlu0 %3311
        %v3313 = vadd.f32 %v3125, %v3126
        %3314 = vadd.xlane.f32.xlu0 %v3313
        %v3315 = vpop.xlane.xlu0 %3314
        %v3316 = vadd.f32 %v3127, %v3128
        %3317 = vadd.xlane.f32.xlu0 %v3316
        %v3318 = vpop.xlane.xlu0 %3317
        %v3319 = vadd.f32 %v3129, %v3130
        %3320 = vadd.xlane.f32.xlu0 %v3319
        %v3321 = vpop.xlane.xlu0 %3320
        %v3322 = vadd.f32 %v3131, %v3132
        %3323 = vadd.xlane.f32.xlu0 %v3322
        %v3324 = vpop.xlane.xlu0 %3323
        %v3325 = vrcp.pop %v3135
        %v3326 = vmul.f32 %v3005, %v3325
        %v3327 = vmul.f32 %v3006, %v3325
        %v3328 = vrcp.pop %v3138
        %v3329 = vmul.f32 %v3007, %v3328
        %v3330 = vmul.f32 %v3008, %v3328
        %v3331 = vrcp.pop %v3141
        %v3332 = vmul.f32 %v3009, %v3331
        %v3333 = vmul.f32 %v3010, %v3331
        %v3334 = vrcp.pop %v3144
        %v3335 = vmul.f32 %v3011, %v3334
        %v3336 = vmul.f32 %v3012, %v3334
        %v3337 = vrcp.pop %v3147
        %v3338 = vmul.f32 %v3013, %v3337
        %v3339 = vmul.f32 %v3014, %v3337
        %v3340 = vrcp.pop %v3150
        %v3341 = vmul.f32 %v3015, %v3340
        %v3342 = vmul.f32 %v3016, %v3340
        %v3343 = vrcp.pop %v3153
        %v3344 = vmul.f32 %v3017, %v3343
        %v3345 = vmul.f32 %v3018, %v3343
        %v3346 = vrcp.pop %v3156
        %v3347 = vmul.f32 %v3019, %v3346
        %v3348 = vmul.f32 %v3020, %v3346
        %v3349 = vrcp.pop %v3159
        %v3350 = vmul.f32 %v3021, %v3349
        %v3351 = vmul.f32 %v3022, %v3349
        %v3352 = vrcp.pop %v3162
        %v3353 = vmul.f32 %v3023, %v3352
        %v3354 = vmul.f32 %v3024, %v3352
        %v3355 = vrcp.pop %v3165
        %v3356 = vmul.f32 %v3025, %v3355
        %v3357 = vmul.f32 %v3026, %v3355
        %v3358 = vrcp.pop %v3168
        %v3359 = vmul.f32 %v3027, %v3358
        %v3360 = vmul.f32 %v3028, %v3358
        %v3361 = vrcp.pop %v3171
        %v3362 = vmul.f32 %v3029, %v3361
        %v3363 = vmul.f32 %v3030, %v3361
        %v3364 = vrcp.pop %v3174
        %v3365 = vmul.f32 %v3031, %v3364
        %v3366 = vmul.f32 %v3032, %v3364
        %v3367 = vrcp.pop %v3177
        %v3368 = vmul.f32 %v3033, %v3367
        %v3369 = vmul.f32 %v3034, %v3367
        %v3370 = vrcp.pop %v3180
        %v3371 = vmul.f32 %v3035, %v3370
        %v3372 = vmul.f32 %v3036, %v3370
        %v3373 = vrcp.pop %v3183
        %v3374 = vmul.f32 %v3037, %v3373
        %v3375 = vmul.f32 %v3038, %v3373
        %v3376 = vrcp.pop %v3186
        %v3377 = vmul.f32 %v3039, %v3376
        %v3378 = vmul.f32 %v3040, %v3376
        %v3379 = vrcp.pop %v3189
        %v3380 = vmul.f32 %v3041, %v3379
        %v3381 = vmul.f32 %v3042, %v3379
        %v3382 = vrcp.pop %v3192
        %v3383 = vmul.f32 %v3043, %v3382
        %v3384 = vmul.f32 %v3044, %v3382
        %v3385 = vrcp.pop %v3195
        %v3386 = vmul.f32 %v3045, %v3385
        %v3387 = vmul.f32 %v3046, %v3385
        %v3388 = vrcp.pop %v3198
        %v3389 = vmul.f32 %v3047, %v3388
        %v3390 = vmul.f32 %v3048, %v3388
        %v3391 = vrcp.pop %v3201
        %v3392 = vmul.f32 %v3049, %v3391
        %v3393 = vmul.f32 %v3050, %v3391
        %v3394 = vrcp.pop %v3204
        %v3395 = vmul.f32 %v3051, %v3394
        %v3396 = vmul.f32 %v3052, %v3394
        %v3397 = vrcp.pop %v3207
        %v3398 = vmul.f32 %v3053, %v3397
        %v3399 = vmul.f32 %v3054, %v3397
        %v3400 = vrcp.pop %v3210
        %v3401 = vmul.f32 %v3055, %v3400
        %v3402 = vmul.f32 %v3056, %v3400
        %v3403 = vrcp.pop %v3213
        %v3404 = vmul.f32 %v3057, %v3403
        %v3405 = vmul.f32 %v3058, %v3403
        %v3406 = vrcp.pop %v3216
        %v3407 = vmul.f32 %v3059, %v3406
        %v3408 = vmul.f32 %v3060, %v3406
        %v3409 = vrcp.pop %v3219
        %v3410 = vmul.f32 %v3061, %v3409
        %v3411 = vmul.f32 %v3062, %v3409
        %v3412 = vrcp.pop %v3222
        %v3413 = vmul.f32 %v3063, %v3412
        %v3414 = vmul.f32 %v3064, %v3412
        %v3415 = vrcp.pop %v3225
        %v3416 = vmul.f32 %v3065, %v3415
        %v3417 = vmul.f32 %v3066, %v3415
        %v3418 = vrcp.pop %v3228
        %v3419 = vmul.f32 %v3067, %v3418
        %v3420 = vmul.f32 %v3068, %v3418
        %v3421 = vrcp.pop %v3231
        %v3422 = vmul.f32 %v3069, %v3421
        %v3423 = vmul.f32 %v3070, %v3421
        %v3424 = vrcp.pop %v3234
        %v3425 = vmul.f32 %v3071, %v3424
        %v3426 = vmul.f32 %v3072, %v3424
        %v3427 = vrcp.pop %v3237
        %v3428 = vmul.f32 %v3073, %v3427
        %v3429 = vmul.f32 %v3074, %v3427
        %v3430 = vrcp.pop %v3240
        %v3431 = vmul.f32 %v3075, %v3430
        %v3432 = vmul.f32 %v3076, %v3430
        %v3433 = vrcp.pop %v3243
        %v3434 = vmul.f32 %v3077, %v3433
        %v3435 = vmul.f32 %v3078, %v3433
        %v3436 = vrcp.pop %v3246
        %v3437 = vmul.f32 %v3079, %v3436
        %v3438 = vmul.f32 %v3080, %v3436
        %v3439 = vrcp.pop %v3249
        %v3440 = vmul.f32 %v3081, %v3439
        %v3441 = vmul.f32 %v3082, %v3439
        %v3442 = vrcp.pop %v3252
        %v3443 = vmul.f32 %v3083, %v3442
        %v3444 = vmul.f32 %v3084, %v3442
        %v3445 = vrcp.pop %v3255
        %v3446 = vmul.f32 %v3085, %v3445
        %v3447 = vmul.f32 %v3086, %v3445
        %v3448 = vrcp.pop %v3258
        %v3449 = vmul.f32 %v3087, %v3448
        %v3450 = vmul.f32 %v3088, %v3448
        %v3451 = vrcp.pop %v3261
        %v3452 = vmul.f32 %v3089, %v3451
        %v3453 = vmul.f32 %v3090, %v3451
        %v3454 = vrcp.pop %v3264
        %v3455 = vmul.f32 %v3091, %v3454
        %v3456 = vmul.f32 %v3092, %v3454
        %v3457 = vrcp.pop %v3267
        %v3458 = vmul.f32 %v3093, %v3457
        %v3459 = vmul.f32 %v3094, %v3457
        %v3460 = vrcp.pop %v3270
        %v3461 = vmul.f32 %v3095, %v3460
        %v3462 = vmul.f32 %v3096, %v3460
        %v3463 = vrcp.pop %v3273
        %v3464 = vmul.f32 %v3097, %v3463
        %v3465 = vmul.f32 %v3098, %v3463
        %v3466 = vrcp.pop %v3276
        %v3467 = vmul.f32 %v3099, %v3466
        %v3468 = vmul.f32 %v3100, %v3466
        %v3469 = vrcp.pop %v3279
        %v3470 = vmul.f32 %v3101, %v3469
        %v3471 = vmul.f32 %v3102, %v3469
        %v3472 = vrcp.pop %v3282
        %v3473 = vmul.f32 %v3103, %v3472
        %v3474 = vmul.f32 %v3104, %v3472
        %v3475 = vrcp.pop %v3285
        %v3476 = vmul.f32 %v3105, %v3475
        %v3477 = vmul.f32 %v3106, %v3475
        %v3478 = vrcp.pop %v3288
        %v3479 = vmul.f32 %v3107, %v3478
        %v3480 = vmul.f32 %v3108, %v3478
        %v3481 = vrcp.pop %v3291
        %v3482 = vmul.f32 %v3109, %v3481
        %v3483 = vmul.f32 %v3110, %v3481
        %v3484 = vrcp.pop %v3294
        %v3485 = vmul.f32 %v3111, %v3484
        %v3486 = vmul.f32 %v3112, %v3484
        %v3487 = vrcp.pop %v3297
        %v3488 = vmul.f32 %v3113, %v3487
        %v3489 = vmul.f32 %v3114, %v3487
        %v3490 = vrcp.pop %v3300
        %v3491 = vmul.f32 %v3115, %v3490
        %v3492 = vmul.f32 %v3116, %v3490
        %v3493 = vrcp.pop %v3303
        %v3494 = vmul.f32 %v3117, %v3493
        %v3495 = vmul.f32 %v3118, %v3493
        %v3496 = vrcp.pop %v3306
        %v3497 = vmul.f32 %v3119, %v3496
        %v3498 = vmul.f32 %v3120, %v3496
        %v3499 = vrcp.pop %v3309
        %v3500 = vmul.f32 %v3121, %v3499
        %v3501 = vmul.f32 %v3122, %v3499
        %v3502 = vrcp.pop %v3312
        %v3503 = vmul.f32 %v3123, %v3502
        %v3504 = vmul.f32 %v3124, %v3502
        %v3505 = vrcp.pop %v3315
        %v3506 = vmul.f32 %v3125, %v3505
        %v3507 = vmul.f32 %v3126, %v3505
        %v3508 = vrcp.pop %v3318
        %v3509 = vmul.f32 %v3127, %v3508
        %v3510 = vmul.f32 %v3128, %v3508
        %v3511 = vrcp.pop %v3321
        %v3512 = vmul.f32 %v3129, %v3511
        %v3513 = vmul.f32 %v3130, %v3511
        %v3514 = vrcp.pop %v3324
        %v3515 = vmul.f32 %v3131, %v3514
        %v3516 = vmul.f32 %v3132, %v3514
        %3517 = vst [vmem:[%s547] sm:$0xff] %v3326
        %3518 = vst [vmem:[%s547 + $0x8] sm:$0xff] %v3327
        %3519 = vst [vmem:[%s547 + $0x10] sm:$0xff] %v3329
        %3520 = vst [vmem:[%s547 + $0x18] sm:$0xff] %v3330
        %3521 = vst [vmem:[%s547 + $0x20] sm:$0xff] %v3332
        %3522 = vst [vmem:[%s547 + $0x28] sm:$0xff] %v3333
        %3523 = vst [vmem:[%s547 + $0x30] sm:$0xff] %v3335
        %3524 = vst [vmem:[%s547 + $0x38] sm:$0xff] %v3336
        %3525 = vst [vmem:[%s547 + $0x40] sm:$0xff] %v3338
        %3526 = vst [vmem:[%s547 + $0x48] sm:$0xff] %v3339
        %3527 = vst [vmem:[%s547 + $0x50] sm:$0xff] %v3341
        %3528 = vst [vmem:[%s547 + $0x58] sm:$0xff] %v3342
        %3529 = vst [vmem:[%s547 + $0x60] sm:$0xff] %v3344
        %3530 = vst [vmem:[%s547 + $0x68] sm:$0xff] %v3345
        %3531 = vst [vmem:[%s547 + $0x70] sm:$0xff] %v3347
        %3532 = vst [vmem:[%s547 + $0x78] sm:$0xff] %v3348
        %3533 = vst [vmem:[%s547 + $0x80] sm:$0xff] %v3350
        %3534 = vst [vmem:[%s547 + $0x88] sm:$0xff] %v3351
        %3535 = vst [vmem:[%s547 + $0x90] sm:$0xff] %v3353
        %3536 = vst [vmem:[%s547 + $0x98] sm:$0xff] %v3354
        %3537 = vst [vmem:[%s547 + $0xa0] sm:$0xff] %v3356
        %3538 = vst [vmem:[%s547 + $0xa8] sm:$0xff] %v3357
        %3539 = vst [vmem:[%s547 + $0xb0] sm:$0xff] %v3359
        %3540 = vst [vmem:[%s547 + $0xb8] sm:$0xff] %v3360
        %3541 = vst [vmem:[%s547 + $0xc0] sm:$0xff] %v3362
        %3542 = vst [vmem:[%s547 + $0xc8] sm:$0xff] %v3363
        %3543 = vst [vmem:[%s547 + $0xd0] sm:$0xff] %v3365
        %3544 = vst [vmem:[%s547 + $0xd8] sm:$0xff] %v3366
        %3545 = vst [vmem:[%s547 + $0xe0] sm:$0xff] %v3368
        %3546 = vst [vmem:[%s547 + $0xe8] sm:$0xff] %v3369
        %3547 = vst [vmem:[%s547 + $0xf0] sm:$0xff] %v3371
        %3548 = vst [vmem:[%s547 + $0xf8] sm:$0xff] %v3372
        %3549 = vst [vmem:[%s547 + $0x100] sm:$0xff] %v3374
        %3550 = vst [vmem:[%s547 + $0x108] sm:$0xff] %v3375
        %3551 = vst [vmem:[%s547 + $0x110] sm:$0xff] %v3377
        %3552 = vst [vmem:[%s547 + $0x118] sm:$0xff] %v3378
        %3553 = vst [vmem:[%s547 + $0x120] sm:$0xff] %v3380
        %3554 = vst [vmem:[%s547 + $0x128] sm:$0xff] %v3381
        %3555 = vst [vmem:[%s547 + $0x130] sm:$0xff] %v3383
        %3556 = vst [vmem:[%s547 + $0x138] sm:$0xff] %v3384
        %3557 = vst [vmem:[%s547 + $0x140] sm:$0xff] %v3386
        %3558 = vst [vmem:[%s547 + $0x148] sm:$0xff] %v3387
        %3559 = vst [vmem:[%s547 + $0x150] sm:$0xff] %v3389
        %3560 = vst [vmem:[%s547 + $0x158] sm:$0xff] %v3390
        %3561 = vst [vmem:[%s547 + $0x160] sm:$0xff] %v3392
        %3562 = vst [vmem:[%s547 + $0x168] sm:$0xff] %v3393
        %3563 = vst [vmem:[%s547 + $0x170] sm:$0xff] %v3395
        %3564 = vst [vmem:[%s547 + $0x178] sm:$0xff] %v3396
        %3565 = vst [vmem:[%s547 + $0x180] sm:$0xff] %v3398
        %3566 = vst [vmem:[%s547 + $0x188] sm:$0xff] %v3399
        %3567 = vst [vmem:[%s547 + $0x190] sm:$0xff] %v3401
        %3568 = vst [vmem:[%s547 + $0x198] sm:$0xff] %v3402
        %3569 = vst [vmem:[%s547 + $0x1a0] sm:$0xff] %v3404
        %3570 = vst [vmem:[%s547 + $0x1a8] sm:$0xff] %v3405
        %3571 = vst [vmem:[%s547 + $0x1b0] sm:$0xff] %v3407
        %3572 = vst [vmem:[%s547 + $0x1b8] sm:$0xff] %v3408
        %3573 = vst [vmem:[%s547 + $0x1c0] sm:$0xff] %v3410
        %3574 = vst [vmem:[%s547 + $0x1c8] sm:$0xff] %v3411
        %3575 = vst [vmem:[%s547 + $0x1d0] sm:$0xff] %v3413
        %3576 = vst [vmem:[%s547 + $0x1d8] sm:$0xff] %v3414
        %3577 = vst [vmem:[%s547 + $0x1e0] sm:$0xff] %v3416
        %3578 = vst [vmem:[%s547 + $0x1e8] sm:$0xff] %v3417
        %3579 = vst [vmem:[%s547 + $0x1f0] sm:$0xff] %v3419
        %3580 = vst [vmem:[%s547 + $0x1f8] sm:$0xff] %v3420
        %3581 = vst [vmem:[%s547 + $0x200] sm:$0xff] %v3422
        %3582 = vst [vmem:[%s547 + $0x208] sm:$0xff] %v3423
        %3583 = vst [vmem:[%s547 + $0x210] sm:$0xff] %v3425
        %3584 = vst [vmem:[%s547 + $0x218] sm:$0xff] %v3426
        %3585 = vst [vmem:[%s547 + $0x220] sm:$0xff] %v3428
        %3586 = vst [vmem:[%s547 + $0x228] sm:$0xff] %v3429
        %3587 = vst [vmem:[%s547 + $0x230] sm:$0xff] %v3431
        %3588 = vst [vmem:[%s547 + $0x238] sm:$0xff] %v3432
        %3589 = vst [vmem:[%s547 + $0x240] sm:$0xff] %v3434
        %3590 = vst [vmem:[%s547 + $0x248] sm:$0xff] %v3435
        %3591 = vst [vmem:[%s547 + $0x250] sm:$0xff] %v3437
        %3592 = vst [vmem:[%s547 + $0x258] sm:$0xff] %v3438
        %3593 = vst [vmem:[%s547 + $0x260] sm:$0xff] %v3440
        %3594 = vst [vmem:[%s547 + $0x268] sm:$0xff] %v3441
        %3595 = vst [vmem:[%s547 + $0x270] sm:$0xff] %v3443
        %3596 = vst [vmem:[%s547 + $0x278] sm:$0xff] %v3444
        %3597 = vst [vmem:[%s547 + $0x280] sm:$0xff] %v3446
        %3598 = vst [vmem:[%s547 + $0x288] sm:$0xff] %v3447
        %3599 = vst [vmem:[%s547 + $0x290] sm:$0xff] %v3449
        %3600 = vst [vmem:[%s547 + $0x298] sm:$0xff] %v3450
        %3601 = vst [vmem:[%s547 + $0x2a0] sm:$0xff] %v3452
        %3602 = vst [vmem:[%s547 + $0x2a8] sm:$0xff] %v3453
        %3603 = vst [vmem:[%s547 + $0x2b0] sm:$0xff] %v3455
        %3604 = vst [vmem:[%s547 + $0x2b8] sm:$0xff] %v3456
        %3605 = vst [vmem:[%s547 + $0x2c0] sm:$0xff] %v3458
        %3606 = vst [vmem:[%s547 + $0x2c8] sm:$0xff] %v3459
        %3607 = vst [vmem:[%s547 + $0x2d0] sm:$0xff] %v3461
        %3608 = vst [vmem:[%s547 + $0x2d8] sm:$0xff] %v3462
        %3609 = vst [vmem:[%s547 + $0x2e0] sm:$0xff] %v3464
        %3610 = vst [vmem:[%s547 + $0x2e8] sm:$0xff] %v3465
        %3611 = vst [vmem:[%s547 + $0x2f0] sm:$0xff] %v3467
        %3612 = vst [vmem:[%s547 + $0x2f8] sm:$0xff] %v3468
        %3613 = vst [vmem:[%s547 + $0x300] sm:$0xff] %v3470
        %3614 = vst [vmem:[%s547 + $0x308] sm:$0xff] %v3471
        %3615 = vst [vmem:[%s547 + $0x310] sm:$0xff] %v3473
        %3616 = vst [vmem:[%s547 + $0x318] sm:$0xff] %v3474
        %3617 = vst [vmem:[%s547 + $0x320] sm:$0xff] %v3476
        %3618 = vst [vmem:[%s547 + $0x328] sm:$0xff] %v3477
        %3619 = vst [vmem:[%s547 + $0x330] sm:$0xff] %v3479
        %3620 = vst [vmem:[%s547 + $0x338] sm:$0xff] %v3480
        %3621 = vst [vmem:[%s547 + $0x340] sm:$0xff] %v3482
        %3622 = vst [vmem:[%s547 + $0x348] sm:$0xff] %v3483
        %3623 = vst [vmem:[%s547 + $0x350] sm:$0xff] %v3485
        %3624 = vst [vmem:[%s547 + $0x358] sm:$0xff] %v3486
        %3625 = vst [vmem:[%s547 + $0x360] sm:$0xff] %v3488
        %3626 = vst [vmem:[%s547 + $0x368] sm:$0xff] %v3489
        %3627 = vst [vmem:[%s547 + $0x370] sm:$0xff] %v3491
        %3628 = vst [vmem:[%s547 + $0x378] sm:$0xff] %v3492
        %3629 = vst [vmem:[%s547 + $0x380] sm:$0xff] %v3494
        %3630 = vst [vmem:[%s547 + $0x388] sm:$0xff] %v3495
        %3631 = vst [vmem:[%s547 + $0x390] sm:$0xff] %v3497
        %3632 = vst [vmem:[%s547 + $0x398] sm:$0xff] %v3498
        %3633 = vst [vmem:[%s547 + $0x3a0] sm:$0xff] %v3500
        %3634 = vst [vmem:[%s547 + $0x3a8] sm:$0xff] %v3501
        %3635 = vst [vmem:[%s547 + $0x3b0] sm:$0xff] %v3503
        %3636 = vst [vmem:[%s547 + $0x3b8] sm:$0xff] %v3504
        %3637 = vst [vmem:[%s547 + $0x3c0] sm:$0xff] %v3506
        %3638 = vst [vmem:[%s547 + $0x3c8] sm:$0xff] %v3507
        %3639 = vst [vmem:[%s547 + $0x3d0] sm:$0xff] %v3509
        %3640 = vst [vmem:[%s547 + $0x3d8] sm:$0xff] %v3510
        %3641 = vst [vmem:[%s547 + $0x3e0] sm:$0xff] %v3512
        %3642 = vst [vmem:[%s547 + $0x3e8] sm:$0xff] %v3513
        %3643 = vst [vmem:[%s547 + $0x3f0] sm:$0xff] %v3515
        %3644 = vst [vmem:[%s547 + $0x3f8] sm:$0xff] %v3516
        %v3645 = vld [vmem:[%s562] sm:$0xff]
        %v3646 = vld [vmem:[%s562 + $0x8] sm:$0xff]
        %v3647 = vld [vmem:[%s562 + $0x10] sm:$0xff]
        %v3648 = vld [vmem:[%s562 + $0x18] sm:$0xff]
        %v3649 = vld [vmem:[%s562 + $0x20] sm:$0xff]
        %v3650 = vld [vmem:[%s562 + $0x28] sm:$0xff]
        %v3651 = vld [vmem:[%s562 + $0x30] sm:$0xff]
        %v3652 = vld [vmem:[%s562 + $0x38] sm:$0xff]
        %v3653 = vld [vmem:[%s562 + $0x40] sm:$0xff]
        %v3654 = vld [vmem:[%s562 + $0x48] sm:$0xff]
        %v3655 = vld [vmem:[%s562 + $0x50] sm:$0xff]
        %v3656 = vld [vmem:[%s562 + $0x58] sm:$0xff]
        %v3657 = vld [vmem:[%s562 + $0x60] sm:$0xff]
        %v3658 = vld [vmem:[%s562 + $0x68] sm:$0xff]
        %v3659 = vld [vmem:[%s562 + $0x70] sm:$0xff]
        %v3660 = vld [vmem:[%s562 + $0x78] sm:$0xff]
        %v3661 = vld [vmem:[%s562 + $0x80] sm:$0xff]
        %v3662 = vld [vmem:[%s562 + $0x88] sm:$0xff]
        %v3663 = vld [vmem:[%s562 + $0x90] sm:$0xff]
        %v3664 = vld [vmem:[%s562 + $0x98] sm:$0xff]
        %v3665 = vld [vmem:[%s562 + $0xa0] sm:$0xff]
        %v3666 = vld [vmem:[%s562 + $0xa8] sm:$0xff]
        %v3667 = vld [vmem:[%s562 + $0xb0] sm:$0xff]
        %v3668 = vld [vmem:[%s562 + $0xb8] sm:$0xff]
        %v3669 = vld [vmem:[%s562 + $0xc0] sm:$0xff]
        %v3670 = vld [vmem:[%s562 + $0xc8] sm:$0xff]
        %v3671 = vld [vmem:[%s562 + $0xd0] sm:$0xff]
        %v3672 = vld [vmem:[%s562 + $0xd8] sm:$0xff]
        %v3673 = vld [vmem:[%s562 + $0xe0] sm:$0xff]
        %v3674 = vld [vmem:[%s562 + $0xe8] sm:$0xff]
        %v3675 = vld [vmem:[%s562 + $0xf0] sm:$0xff]
        %v3676 = vld [vmem:[%s562 + $0xf8] sm:$0xff]
        %v3677 = vld [vmem:[%s562 + $0x100] sm:$0xff]
        %v3678 = vld [vmem:[%s562 + $0x108] sm:$0xff]
        %v3679 = vld [vmem:[%s562 + $0x110] sm:$0xff]
        %v3680 = vld [vmem:[%s562 + $0x118] sm:$0xff]
        %v3681 = vld [vmem:[%s562 + $0x120] sm:$0xff]
        %v3682 = vld [vmem:[%s562 + $0x128] sm:$0xff]
        %v3683 = vld [vmem:[%s562 + $0x130] sm:$0xff]
        %v3684 = vld [vmem:[%s562 + $0x138] sm:$0xff]
        %v3685 = vld [vmem:[%s562 + $0x140] sm:$0xff]
        %v3686 = vld [vmem:[%s562 + $0x148] sm:$0xff]
        %v3687 = vld [vmem:[%s562 + $0x150] sm:$0xff]
        %v3688 = vld [vmem:[%s562 + $0x158] sm:$0xff]
        %v3689 = vld [vmem:[%s562 + $0x160] sm:$0xff]
        %v3690 = vld [vmem:[%s562 + $0x168] sm:$0xff]
        %v3691 = vld [vmem:[%s562 + $0x170] sm:$0xff]
        %v3692 = vld [vmem:[%s562 + $0x178] sm:$0xff]
        %v3693 = vld [vmem:[%s562 + $0x180] sm:$0xff]
        %v3694 = vld [vmem:[%s562 + $0x188] sm:$0xff]
        %v3695 = vld [vmem:[%s562 + $0x190] sm:$0xff]
        %v3696 = vld [vmem:[%s562 + $0x198] sm:$0xff]
        %v3697 = vld [vmem:[%s562 + $0x1a0] sm:$0xff]
        %v3698 = vld [vmem:[%s562 + $0x1a8] sm:$0xff]
        %v3699 = vld [vmem:[%s562 + $0x1b0] sm:$0xff]
        %v3700 = vld [vmem:[%s562 + $0x1b8] sm:$0xff]
        %v3701 = vld [vmem:[%s562 + $0x1c0] sm:$0xff]
        %v3702 = vld [vmem:[%s562 + $0x1c8] sm:$0xff]
        %v3703 = vld [vmem:[%s562 + $0x1d0] sm:$0xff]
        %v3704 = vld [vmem:[%s562 + $0x1d8] sm:$0xff]
        %v3705 = vld [vmem:[%s562 + $0x1e0] sm:$0xff]
        %v3706 = vld [vmem:[%s562 + $0x1e8] sm:$0xff]
        %v3707 = vld [vmem:[%s562 + $0x1f0] sm:$0xff]
        %v3708 = vld [vmem:[%s562 + $0x1f8] sm:$0xff]
        %v3709 = vld [vmem:[%s562 + $0x200] sm:$0xff]
        %v3710 = vld [vmem:[%s562 + $0x208] sm:$0xff]
        %v3711 = vld [vmem:[%s562 + $0x210] sm:$0xff]
        %v3712 = vld [vmem:[%s562 + $0x218] sm:$0xff]
        %v3713 = vld [vmem:[%s562 + $0x220] sm:$0xff]
        %v3714 = vld [vmem:[%s562 + $0x228] sm:$0xff]
        %v3715 = vld [vmem:[%s562 + $0x230] sm:$0xff]
        %v3716 = vld [vmem:[%s562 + $0x238] sm:$0xff]
        %v3717 = vld [vmem:[%s562 + $0x240] sm:$0xff]
        %v3718 = vld [vmem:[%s562 + $0x248] sm:$0xff]
        %v3719 = vld [vmem:[%s562 + $0x250] sm:$0xff]
        %v3720 = vld [vmem:[%s562 + $0x258] sm:$0xff]
        %v3721 = vld [vmem:[%s562 + $0x260] sm:$0xff]
        %v3722 = vld [vmem:[%s562 + $0x268] sm:$0xff]
        %v3723 = vld [vmem:[%s562 + $0x270] sm:$0xff]
        %v3724 = vld [vmem:[%s562 + $0x278] sm:$0xff]
        %v3725 = vld [vmem:[%s562 + $0x280] sm:$0xff]
        %v3726 = vld [vmem:[%s562 + $0x288] sm:$0xff]
        %v3727 = vld [vmem:[%s562 + $0x290] sm:$0xff]
        %v3728 = vld [vmem:[%s562 + $0x298] sm:$0xff]
        %v3729 = vld [vmem:[%s562 + $0x2a0] sm:$0xff]
        %v3730 = vld [vmem:[%s562 + $0x2a8] sm:$0xff]
        %v3731 = vld [vmem:[%s562 + $0x2b0] sm:$0xff]
        %v3732 = vld [vmem:[%s562 + $0x2b8] sm:$0xff]
        %v3733 = vld [vmem:[%s562 + $0x2c0] sm:$0xff]
        %v3734 = vld [vmem:[%s562 + $0x2c8] sm:$0xff]
        %v3735 = vld [vmem:[%s562 + $0x2d0] sm:$0xff]
        %v3736 = vld [vmem:[%s562 + $0x2d8] sm:$0xff]
        %v3737 = vld [vmem:[%s562 + $0x2e0] sm:$0xff]
        %v3738 = vld [vmem:[%s562 + $0x2e8] sm:$0xff]
        %v3739 = vld [vmem:[%s562 + $0x2f0] sm:$0xff]
        %v3740 = vld [vmem:[%s562 + $0x2f8] sm:$0xff]
        %v3741 = vld [vmem:[%s562 + $0x300] sm:$0xff]
        %v3742 = vld [vmem:[%s562 + $0x308] sm:$0xff]
        %v3743 = vld [vmem:[%s562 + $0x310] sm:$0xff]
        %v3744 = vld [vmem:[%s562 + $0x318] sm:$0xff]
        %v3745 = vld [vmem:[%s562 + $0x320] sm:$0xff]
        %v3746 = vld [vmem:[%s562 + $0x328] sm:$0xff]
        %v3747 = vld [vmem:[%s562 + $0x330] sm:$0xff]
        %v3748 = vld [vmem:[%s562 + $0x338] sm:$0xff]
        %v3749 = vld [vmem:[%s562 + $0x340] sm:$0xff]
        %v3750 = vld [vmem:[%s562 + $0x348] sm:$0xff]
        %v3751 = vld [vmem:[%s562 + $0x350] sm:$0xff]
        %v3752 = vld [vmem:[%s562 + $0x358] sm:$0xff]
        %v3753 = vld [vmem:[%s562 + $0x360] sm:$0xff]
        %v3754 = vld [vmem:[%s562 + $0x368] sm:$0xff]
        %v3755 = vld [vmem:[%s562 + $0x370] sm:$0xff]
        %v3756 = vld [vmem:[%s562 + $0x378] sm:$0xff]
        %v3757 = vld [vmem:[%s562 + $0x380] sm:$0xff]
        %v3758 = vld [vmem:[%s562 + $0x388] sm:$0xff]
        %v3759 = vld [vmem:[%s562 + $0x390] sm:$0xff]
        %v3760 = vld [vmem:[%s562 + $0x398] sm:$0xff]
        %v3761 = vld [vmem:[%s562 + $0x3a0] sm:$0xff]
        %v3762 = vld [vmem:[%s562 + $0x3a8] sm:$0xff]
        %v3763 = vld [vmem:[%s562 + $0x3b0] sm:$0xff]
        %v3764 = vld [vmem:[%s562 + $0x3b8] sm:$0xff]
        %v3765 = vld [vmem:[%s562 + $0x3c0] sm:$0xff]
        %v3766 = vld [vmem:[%s562 + $0x3c8] sm:$0xff]
        %v3767 = vld [vmem:[%s562 + $0x3d0] sm:$0xff]
        %v3768 = vld [vmem:[%s562 + $0x3d8] sm:$0xff]
        %v3769 = vld [vmem:[%s562 + $0x3e0] sm:$0xff]
        %v3770 = vld [vmem:[%s562 + $0x3e8] sm:$0xff]
        %v3771 = vld [vmem:[%s562 + $0x3f0] sm:$0xff]
        %v3772 = vld [vmem:[%s562 + $0x3f8] sm:$0xff]
        %3773 = vmatprep.subr.mxu0 0.0
        %3774 = vmatpush1.msra.mxu0 %v3660
        %3775 = vmatprep.subr.mxu0 0.0
        %3776 = vmatpush1.msra.mxu0 %v3659
        %3777 = vmatprep.subr.mxu0 0.0
        %3778 = vmatpush1.msra.mxu0 %v3658
        %3779 = vmatprep.subr.mxu0 0.0
        %3780 = vmatpush1.msra.mxu0 %v3657
        %3781 = vmatprep.subr.mxu0 0.0
        %3782 = vmatpush1.msra.mxu0 %v3656
        %3783 = vmatprep.subr.mxu0 0.0
        %3784 = vmatpush1.msra.mxu0 %v3655
        %3785 = vmatprep.subr.mxu0 0.0
        %3786 = vmatpush1.msra.mxu0 %v3654
        %3787 = vmatprep.subr.mxu0 0.0
        %3788 = vmatpush1.msra.mxu0 %v3653
        %3789 = vmatprep.subr.mxu0 0.0
        %3790 = vmatpush1.msra.mxu0 %v3652
        %3791 = vmatprep.subr.mxu0 0.0
        %3792 = vmatpush1.msra.mxu0 %v3651
        %3793 = vmatprep.subr.mxu0 0.0
        %3794 = vmatpush1.msra.mxu0 %v3650
        %3795 = vmatprep.subr.mxu0 0.0
        %3796 = vmatpush1.msra.mxu0 %v3649
        %3797 = vmatprep.subr.mxu0 0.0
        %3798 = vmatpush1.msra.mxu0 %v3648
        %3799 = vmatprep.subr.mxu0 0.0
        %3800 = vmatpush1.msra.mxu0 %v3647
        %3801 = vmatprep.subr.mxu0 0.0
        %3802 = vmatpush1.msra.mxu0 %v3646
        %3803 = vmatprep.subr.mxu0 0.0
        %3804 = vmatpush1.msra.mxu0 %v3645
        %3805 = vmatprep.subr.mxu0 0.0
        %3806 = vmatpush2.msra.mxu0 %v3676
        %3807 = vmatprep.subr.mxu0 0.0
        %3808 = vmatpush2.msra.mxu0 %v3675
        %3809 = vmatprep.subr.mxu0 0.0
        %3810 = vmatpush2.msra.mxu0 %v3674
        %3811 = vmatprep.subr.mxu0 0.0
        %3812 = vmatpush2.msra.mxu0 %v3673
        %3813 = vmatprep.subr.mxu0 0.0
        %3814 = vmatpush2.msra.mxu0 %v3672
        %3815 = vmatprep.subr.mxu0 0.0
        %3816 = vmatpush2.msra.mxu0 %v3671
        %3817 = vmatprep.subr.mxu0 0.0
        %3818 = vmatpush2.msra.mxu0 %v3670
        %3819 = vmatprep.subr.mxu0 0.0
        %3820 = vmatpush2.msra.mxu0 %v3669
        %3821 = vmatprep.subr.mxu0 0.0
        %3822 = vmatpush2.msra.mxu0 %v3668
        %3823 = vmatprep.subr.mxu0 0.0
        %3824 = vmatpush2.msra.mxu0 %v3667
        %3825 = vmatprep.subr.mxu0 0.0
        %3826 = vmatpush2.msra.mxu0 %v3666
        %3827 = vmatprep.subr.mxu0 0.0
        %3828 = vmatpush2.msra.mxu0 %v3665
        %3829 = vmatprep.subr.mxu0 0.0
        %3830 = vmatpush2.msra.mxu0 %v3664
        %3831 = vmatprep.subr.mxu0 0.0
        %3832 = vmatpush2.msra.mxu0 %v3663
        %3833 = vmatprep.subr.mxu0 0.0
        %3834 = vmatpush2.msra.mxu0 %v3662
        %3835 = vmatprep.subr.mxu0 0.0
        %3836 = vmatpush2.msra.mxu0 %v3661
        %3837 = vmatprep.mubr.f32.mxu0 %v3327
        %3838 = vmatmul.mubr.f32.gmra.mxu0 %v3326
        %v3839 = vpop.f32.mrf.mxu0
        %v3840 = vadd.f32 0.0, %v3839
        %v3841 = vpop.f32.mrf.mxu0
        %3842 = vmatprep.mubr.f32.mxu0 %v3330
        %3843 = vmatmul.mubr.f32.gmra.mxu0 %v3329
        %v3844 = vpop.f32.mrf.mxu0
        %v3845 = vadd.f32 0.0, %v3844
        %v3846 = vpop.f32.mrf.mxu0
        %3847 = vmatprep.mubr.f32.mxu0 %v3333
        %3848 = vmatmul.mubr.f32.gmra.mxu0 %v3332
        %v3849 = vpop.f32.mrf.mxu0
        %v3850 = vadd.f32 0.0, %v3849
        %v3851 = vpop.f32.mrf.mxu0
        %3852 = vmatprep.mubr.f32.mxu0 %v3336
        %3853 = vmatmul.mubr.f32.gmra.mxu0 %v3335
        %v3854 = vpop.f32.mrf.mxu0
        %v3855 = vadd.f32 0.0, %v3854
        %v3856 = vpop.f32.mrf.mxu0
        %3857 = vmatprep.mubr.f32.mxu0 %v3339
        %3858 = vmatmul.mubr.f32.gmra.mxu0 %v3338
        %v3859 = vpop.f32.mrf.mxu0
        %v3860 = vadd.f32 0.0, %v3859
        %v3861 = vpop.f32.mrf.mxu0
        %3862 = vmatprep.mubr.f32.mxu0 %v3342
        %3863 = vmatmul.mubr.f32.gmra.mxu0 %v3341
        %v3864 = vpop.f32.mrf.mxu0
        %v3865 = vadd.f32 0.0, %v3864
        %v3866 = vpop.f32.mrf.mxu0
        %3867 = vmatprep.mubr.f32.mxu0 %v3345
        %3868 = vmatmul.mubr.f32.gmra.mxu0 %v3344
        %v3869 = vpop.f32.mrf.mxu0
        %v3870 = vadd.f32 0.0, %v3869
        %v3871 = vpop.f32.mrf.mxu0
        %3872 = vmatprep.mubr.f32.mxu0 %v3348
        %3873 = vmatmul.mubr.f32.gmra.mxu0 %v3347
        %v3874 = vpop.f32.mrf.mxu0
        %v3875 = vadd.f32 0.0, %v3874
        %v3876 = vpop.f32.mrf.mxu0
        %3877 = vmatprep.mubr.f32.mxu0 %v3351
        %3878 = vmatmul.mubr.f32.gmra.mxu0 %v3350
        %v3879 = vpop.f32.mrf.mxu0
        %v3880 = vadd.f32 0.0, %v3879
        %v3881 = vpop.f32.mrf.mxu0
        %3882 = vmatprep.mubr.f32.mxu0 %v3354
        %3883 = vmatmul.mubr.f32.gmra.mxu0 %v3353
        %v3884 = vpop.f32.mrf.mxu0
        %v3885 = vadd.f32 0.0, %v3884
        %v3886 = vpop.f32.mrf.mxu0
        %3887 = vmatprep.mubr.f32.mxu0 %v3357
        %3888 = vmatmul.mubr.f32.gmra.mxu0 %v3356
        %v3889 = vpop.f32.mrf.mxu0
        %v3890 = vadd.f32 0.0, %v3889
        %v3891 = vpop.f32.mrf.mxu0
        %3892 = vmatprep.mubr.f32.mxu0 %v3360
        %3893 = vmatmul.mubr.f32.gmra.mxu0 %v3359
        %v3894 = vpop.f32.mrf.mxu0
        %v3895 = vadd.f32 0.0, %v3894
        %v3896 = vpop.f32.mrf.mxu0
        %3897 = vmatprep.mubr.f32.mxu0 %v3363
        %3898 = vmatmul.mubr.f32.gmra.mxu0 %v3362
        %v3899 = vpop.f32.mrf.mxu0
        %v3900 = vadd.f32 0.0, %v3899
        %v3901 = vpop.f32.mrf.mxu0
        %3902 = vmatprep.mubr.f32.mxu0 %v3366
        %3903 = vmatmul.mubr.f32.gmra.mxu0 %v3365
        %v3904 = vpop.f32.mrf.mxu0
        %v3905 = vadd.f32 0.0, %v3904
        %v3906 = vpop.f32.mrf.mxu0
        %3907 = vmatprep.mubr.f32.mxu0 %v3369
        %3908 = vmatmul.mubr.f32.gmra.mxu0 %v3368
        %v3909 = vpop.f32.mrf.mxu0
        %v3910 = vadd.f32 0.0, %v3909
        %v3911 = vpop.f32.mrf.mxu0
        %3912 = vmatprep.mubr.f32.mxu0 %v3372
        %3913 = vmatmul.mubr.f32.gmra.mxu0 %v3371
        %v3914 = vpop.f32.mrf.mxu0
        %v3915 = vadd.f32 0.0, %v3914
        %v3916 = vpop.f32.mrf.mxu0
        %3917 = vdwg.mxu0
        %3918 = vmatprep.subr.mxu0 0.0
        %3919 = vmatpush1.msra.mxu0 %v3692
        %3920 = vmatprep.subr.mxu0 0.0
        %3921 = vmatpush1.msra.mxu0 %v3691
        %3922 = vmatprep.subr.mxu0 0.0
        %3923 = vmatpush1.msra.mxu0 %v3690
        %3924 = vmatprep.subr.mxu0 0.0
        %3925 = vmatpush1.msra.mxu0 %v3689
        %3926 = vmatprep.subr.mxu0 0.0
        %3927 = vmatpush1.msra.mxu0 %v3688
        %3928 = vmatprep.subr.mxu0 0.0
        %3929 = vmatpush1.msra.mxu0 %v3687
        %3930 = vmatprep.subr.mxu0 0.0
        %3931 = vmatpush1.msra.mxu0 %v3686
        %3932 = vmatprep.subr.mxu0 0.0
        %3933 = vmatpush1.msra.mxu0 %v3685
        %3934 = vmatprep.subr.mxu0 0.0
        %3935 = vmatpush1.msra.mxu0 %v3684
        %3936 = vmatprep.subr.mxu0 0.0
        %3937 = vmatpush1.msra.mxu0 %v3683
        %3938 = vmatprep.subr.mxu0 0.0
        %3939 = vmatpush1.msra.mxu0 %v3682
        %3940 = vmatprep.subr.mxu0 0.0
        %3941 = vmatpush1.msra.mxu0 %v3681
        %3942 = vmatprep.subr.mxu0 0.0
        %3943 = vmatpush1.msra.mxu0 %v3680
        %3944 = vmatprep.subr.mxu0 0.0
        %3945 = vmatpush1.msra.mxu0 %v3679
        %3946 = vmatprep.subr.mxu0 0.0
        %3947 = vmatpush1.msra.mxu0 %v3678
        %3948 = vmatprep.subr.mxu0 0.0
        %3949 = vmatpush1.msra.mxu0 %v3677
        %3950 = vmatprep.subr.mxu0 0.0
        %3951 = vmatpush2.msra.mxu0 %v3708
        %3952 = vmatprep.subr.mxu0 0.0
        %3953 = vmatpush2.msra.mxu0 %v3707
        %3954 = vmatprep.subr.mxu0 0.0
        %3955 = vmatpush2.msra.mxu0 %v3706
        %3956 = vmatprep.subr.mxu0 0.0
        %3957 = vmatpush2.msra.mxu0 %v3705
        %3958 = vmatprep.subr.mxu0 0.0
        %3959 = vmatpush2.msra.mxu0 %v3704
        %3960 = vmatprep.subr.mxu0 0.0
        %3961 = vmatpush2.msra.mxu0 %v3703
        %3962 = vmatprep.subr.mxu0 0.0
        %3963 = vmatpush2.msra.mxu0 %v3702
        %3964 = vmatprep.subr.mxu0 0.0
        %3965 = vmatpush2.msra.mxu0 %v3701
        %3966 = vmatprep.subr.mxu0 0.0
        %3967 = vmatpush2.msra.mxu0 %v3700
        %3968 = vmatprep.subr.mxu0 0.0
        %3969 = vmatpush2.msra.mxu0 %v3699
        %3970 = vmatprep.subr.mxu0 0.0
        %3971 = vmatpush2.msra.mxu0 %v3698
        %3972 = vmatprep.subr.mxu0 0.0
        %3973 = vmatpush2.msra.mxu0 %v3697
        %3974 = vmatprep.subr.mxu0 0.0
        %3975 = vmatpush2.msra.mxu0 %v3696
        %3976 = vmatprep.subr.mxu0 0.0
        %3977 = vmatpush2.msra.mxu0 %v3695
        %3978 = vmatprep.subr.mxu0 0.0
        %3979 = vmatpush2.msra.mxu0 %v3694
        %3980 = vmatprep.subr.mxu0 0.0
        %3981 = vmatpush2.msra.mxu0 %v3693
        %3982 = vmatprep.mubr.f32.mxu0 %v3375
        %3983 = vmatmul.mubr.f32.gmra.mxu0 %v3374
        %v3984 = vpop.f32.mrf.mxu0
        %v3985 = vadd.f32 0.0, %v3984
        %v3986 = vpop.f32.mrf.mxu0
        %3987 = vmatprep.mubr.f32.mxu0 %v3378
        %3988 = vmatmul.mubr.f32.gmra.mxu0 %v3377
        %v3989 = vpop.f32.mrf.mxu0
        %v3990 = vadd.f32 0.0, %v3989
        %v3991 = vpop.f32.mrf.mxu0
        %3992 = vmatprep.mubr.f32.mxu0 %v3381
        %3993 = vmatmul.mubr.f32.gmra.mxu0 %v3380
        %v3994 = vpop.f32.mrf.mxu0
        %v3995 = vadd.f32 0.0, %v3994
        %v3996 = vpop.f32.mrf.mxu0
        %3997 = vmatprep.mubr.f32.mxu0 %v3384
        %3998 = vmatmul.mubr.f32.gmra.mxu0 %v3383
        %v3999 = vpop.f32.mrf.mxu0
        %v4000 = vadd.f32 0.0, %v3999
        %v4001 = vpop.f32.mrf.mxu0
        %4002 = vmatprep.mubr.f32.mxu0 %v3387
        %4003 = vmatmul.mubr.f32.gmra.mxu0 %v3386
        %v4004 = vpop.f32.mrf.mxu0
        %v4005 = vadd.f32 0.0, %v4004
        %v4006 = vpop.f32.mrf.mxu0
        %4007 = vmatprep.mubr.f32.mxu0 %v3390
        %4008 = vmatmul.mubr.f32.gmra.mxu0 %v3389
        %v4009 = vpop.f32.mrf.mxu0
        %v4010 = vadd.f32 0.0, %v4009
        %v4011 = vpop.f32.mrf.mxu0
        %4012 = vmatprep.mubr.f32.mxu0 %v3393
        %4013 = vmatmul.mubr.f32.gmra.mxu0 %v3392
        %v4014 = vpop.f32.mrf.mxu0
        %v4015 = vadd.f32 0.0, %v4014
        %v4016 = vpop.f32.mrf.mxu0
        %4017 = vmatprep.mubr.f32.mxu0 %v3396
        %4018 = vmatmul.mubr.f32.gmra.mxu0 %v3395
        %v4019 = vpop.f32.mrf.mxu0
        %v4020 = vadd.f32 0.0, %v4019
        %v4021 = vpop.f32.mrf.mxu0
        %4022 = vmatprep.mubr.f32.mxu0 %v3399
        %4023 = vmatmul.mubr.f32.gmra.mxu0 %v3398
        %v4024 = vpop.f32.mrf.mxu0
        %v4025 = vadd.f32 0.0, %v4024
        %v4026 = vpop.f32.mrf.mxu0
        %4027 = vmatprep.mubr.f32.mxu0 %v3402
        %4028 = vmatmul.mubr.f32.gmra.mxu0 %v3401
        %v4029 = vpop.f32.mrf.mxu0
        %v4030 = vadd.f32 0.0, %v4029
        %v4031 = vpop.f32.mrf.mxu0
        %4032 = vmatprep.mubr.f32.mxu0 %v3405
        %4033 = vmatmul.mubr.f32.gmra.mxu0 %v3404
        %v4034 = vpop.f32.mrf.mxu0
        %v4035 = vadd.f32 0.0, %v4034
        %v4036 = vpop.f32.mrf.mxu0
        %4037 = vmatprep.mubr.f32.mxu0 %v3408
        %4038 = vmatmul.mubr.f32.gmra.mxu0 %v3407
        %v4039 = vpop.f32.mrf.mxu0
        %v4040 = vadd.f32 0.0, %v4039
        %v4041 = vpop.f32.mrf.mxu0
        %4042 = vmatprep.mubr.f32.mxu0 %v3411
        %4043 = vmatmul.mubr.f32.gmra.mxu0 %v3410
        %v4044 = vpop.f32.mrf.mxu0
        %v4045 = vadd.f32 0.0, %v4044
        %v4046 = vpop.f32.mrf.mxu0
        %4047 = vmatprep.mubr.f32.mxu0 %v3414
        %4048 = vmatmul.mubr.f32.gmra.mxu0 %v3413
        %v4049 = vpop.f32.mrf.mxu0
        %v4050 = vadd.f32 0.0, %v4049
        %v4051 = vpop.f32.mrf.mxu0
        %4052 = vmatprep.mubr.f32.mxu0 %v3417
        %4053 = vmatmul.mubr.f32.gmra.mxu0 %v3416
        %v4054 = vpop.f32.mrf.mxu0
        %v4055 = vadd.f32 0.0, %v4054
        %v4056 = vpop.f32.mrf.mxu0
        %4057 = vmatprep.mubr.f32.mxu0 %v3420
        %4058 = vmatmul.mubr.f32.gmra.mxu0 %v3419
        %v4059 = vpop.f32.mrf.mxu0
        %v4060 = vadd.f32 0.0, %v4059
        %v4061 = vpop.f32.mrf.mxu0
        %4062 = vdwg.mxu0
        %4063 = vmatprep.subr.mxu0 0.0
        %4064 = vmatpush1.msra.mxu0 %v3724
        %4065 = vmatprep.subr.mxu0 0.0
        %4066 = vmatpush1.msra.mxu0 %v3723
        %4067 = vmatprep.subr.mxu0 0.0
        %4068 = vmatpush1.msra.mxu0 %v3722
        %4069 = vmatprep.subr.mxu0 0.0
        %4070 = vmatpush1.msra.mxu0 %v3721
        %4071 = vmatprep.subr.mxu0 0.0
        %4072 = vmatpush1.msra.mxu0 %v3720
        %4073 = vmatprep.subr.mxu0 0.0
        %4074 = vmatpush1.msra.mxu0 %v3719
        %4075 = vmatprep.subr.mxu0 0.0
        %4076 = vmatpush1.msra.mxu0 %v3718
        %4077 = vmatprep.subr.mxu0 0.0
        %4078 = vmatpush1.msra.mxu0 %v3717
        %4079 = vmatprep.subr.mxu0 0.0
        %4080 = vmatpush1.msra.mxu0 %v3716
        %4081 = vmatprep.subr.mxu0 0.0
        %4082 = vmatpush1.msra.mxu0 %v3715
        %4083 = vmatprep.subr.mxu0 0.0
        %4084 = vmatpush1.msra.mxu0 %v3714
        %4085 = vmatprep.subr.mxu0 0.0
        %4086 = vmatpush1.msra.mxu0 %v3713
        %4087 = vmatprep.subr.mxu0 0.0
        %4088 = vmatpush1.msra.mxu0 %v3712
        %4089 = vmatprep.subr.mxu0 0.0
        %4090 = vmatpush1.msra.mxu0 %v3711
        %4091 = vmatprep.subr.mxu0 0.0
        %4092 = vmatpush1.msra.mxu0 %v3710
        %4093 = vmatprep.subr.mxu0 0.0
        %4094 = vmatpush1.msra.mxu0 %v3709
        %4095 = vmatprep.subr.mxu0 0.0
        %4096 = vmatpush2.msra.mxu0 %v3740
        %4097 = vmatprep.subr.mxu0 0.0
        %4098 = vmatpush2.msra.mxu0 %v3739
        %4099 = vmatprep.subr.mxu0 0.0
        %4100 = vmatpush2.msra.mxu0 %v3738
        %4101 = vmatprep.subr.mxu0 0.0
        %4102 = vmatpush2.msra.mxu0 %v3737
        %4103 = vmatprep.subr.mxu0 0.0
        %4104 = vmatpush2.msra.mxu0 %v3736
        %4105 = vmatprep.subr.mxu0 0.0
        %4106 = vmatpush2.msra.mxu0 %v3735
        %4107 = vmatprep.subr.mxu0 0.0
        %4108 = vmatpush2.msra.mxu0 %v3734
        %4109 = vmatprep.subr.mxu0 0.0
        %4110 = vmatpush2.msra.mxu0 %v3733
        %4111 = vmatprep.subr.mxu0 0.0
        %4112 = vmatpush2.msra.mxu0 %v3732
        %4113 = vmatprep.subr.mxu0 0.0
        %4114 = vmatpush2.msra.mxu0 %v3731
        %4115 = vmatprep.subr.mxu0 0.0
        %4116 = vmatpush2.msra.mxu0 %v3730
        %4117 = vmatprep.subr.mxu0 0.0
        %4118 = vmatpush2.msra.mxu0 %v3729
        %4119 = vmatprep.subr.mxu0 0.0
        %4120 = vmatpush2.msra.mxu0 %v3728
        %4121 = vmatprep.subr.mxu0 0.0
        %4122 = vmatpush2.msra.mxu0 %v3727
        %4123 = vmatprep.subr.mxu0 0.0
        %4124 = vmatpush2.msra.mxu0 %v3726
        %4125 = vmatprep.subr.mxu0 0.0
        %4126 = vmatpush2.msra.mxu0 %v3725
        %4127 = vmatprep.mubr.f32.mxu0 %v3423
        %4128 = vmatmul.mubr.f32.gmra.mxu0 %v3422
        %v4129 = vpop.f32.mrf.mxu0
        %v4130 = vadd.f32 0.0, %v4129
        %v4131 = vpop.f32.mrf.mxu0
        %4132 = vmatprep.mubr.f32.mxu0 %v3426
        %4133 = vmatmul.mubr.f32.gmra.mxu0 %v3425
        %v4134 = vpop.f32.mrf.mxu0
        %v4135 = vadd.f32 0.0, %v4134
        %v4136 = vpop.f32.mrf.mxu0
        %4137 = vmatprep.mubr.f32.mxu0 %v3429
        %4138 = vmatmul.mubr.f32.gmra.mxu0 %v3428
        %v4139 = vpop.f32.mrf.mxu0
        %v4140 = vadd.f32 0.0, %v4139
        %v4141 = vpop.f32.mrf.mxu0
        %4142 = vmatprep.mubr.f32.mxu0 %v3432
        %4143 = vmatmul.mubr.f32.gmra.mxu0 %v3431
        %v4144 = vpop.f32.mrf.mxu0
        %v4145 = vadd.f32 0.0, %v4144
        %v4146 = vpop.f32.mrf.mxu0
        %4147 = vmatprep.mubr.f32.mxu0 %v3435
        %4148 = vmatmul.mubr.f32.gmra.mxu0 %v3434
        %v4149 = vpop.f32.mrf.mxu0
        %v4150 = vadd.f32 0.0, %v4149
        %v4151 = vpop.f32.mrf.mxu0
        %4152 = vmatprep.mubr.f32.mxu0 %v3438
        %4153 = vmatmul.mubr.f32.gmra.mxu0 %v3437
        %v4154 = vpop.f32.mrf.mxu0
        %v4155 = vadd.f32 0.0, %v4154
        %v4156 = vpop.f32.mrf.mxu0
        %4157 = vmatprep.mubr.f32.mxu0 %v3441
        %4158 = vmatmul.mubr.f32.gmra.mxu0 %v3440
        %v4159 = vpop.f32.mrf.mxu0
        %v4160 = vadd.f32 0.0, %v4159
        %v4161 = vpop.f32.mrf.mxu0
        %4162 = vmatprep.mubr.f32.mxu0 %v3444
        %4163 = vmatmul.mubr.f32.gmra.mxu0 %v3443
        %v4164 = vpop.f32.mrf.mxu0
        %v4165 = vadd.f32 0.0, %v4164
        %v4166 = vpop.f32.mrf.mxu0
        %4167 = vmatprep.mubr.f32.mxu0 %v3447
        %4168 = vmatmul.mubr.f32.gmra.mxu0 %v3446
        %v4169 = vpop.f32.mrf.mxu0
        %v4170 = vadd.f32 0.0, %v4169
        %v4171 = vpop.f32.mrf.mxu0
        %4172 = vmatprep.mubr.f32.mxu0 %v3450
        %4173 = vmatmul.mubr.f32.gmra.mxu0 %v3449
        %v4174 = vpop.f32.mrf.mxu0
        %v4175 = vadd.f32 0.0, %v4174
        %v4176 = vpop.f32.mrf.mxu0
        %4177 = vmatprep.mubr.f32.mxu0 %v3453
        %4178 = vmatmul.mubr.f32.gmra.mxu0 %v3452
        %v4179 = vpop.f32.mrf.mxu0
        %v4180 = vadd.f32 0.0, %v4179
        %v4181 = vpop.f32.mrf.mxu0
        %4182 = vmatprep.mubr.f32.mxu0 %v3456
        %4183 = vmatmul.mubr.f32.gmra.mxu0 %v3455
        %v4184 = vpop.f32.mrf.mxu0
        %v4185 = vadd.f32 0.0, %v4184
        %v4186 = vpop.f32.mrf.mxu0
        %4187 = vmatprep.mubr.f32.mxu0 %v3459
        %4188 = vmatmul.mubr.f32.gmra.mxu0 %v3458
        %v4189 = vpop.f32.mrf.mxu0
        %v4190 = vadd.f32 0.0, %v4189
        %v4191 = vpop.f32.mrf.mxu0
        %4192 = vmatprep.mubr.f32.mxu0 %v3462
        %4193 = vmatmul.mubr.f32.gmra.mxu0 %v3461
        %v4194 = vpop.f32.mrf.mxu0
        %v4195 = vadd.f32 0.0, %v4194
        %v4196 = vpop.f32.mrf.mxu0
        %4197 = vmatprep.mubr.f32.mxu0 %v3465
        %4198 = vmatmul.mubr.f32.gmra.mxu0 %v3464
        %v4199 = vpop.f32.mrf.mxu0
        %v4200 = vadd.f32 0.0, %v4199
        %v4201 = vpop.f32.mrf.mxu0
        %4202 = vmatprep.mubr.f32.mxu0 %v3468
        %4203 = vmatmul.mubr.f32.gmra.mxu0 %v3467
        %v4204 = vpop.f32.mrf.mxu0
        %v4205 = vadd.f32 0.0, %v4204
        %v4206 = vpop.f32.mrf.mxu0
        %4207 = vdwg.mxu0
        %4208 = vmatprep.subr.mxu0 0.0
        %4209 = vmatpush1.msra.mxu0 %v3756
        %4210 = vmatprep.subr.mxu0 0.0
        %4211 = vmatpush1.msra.mxu0 %v3755
        %4212 = vmatprep.subr.mxu0 0.0
        %4213 = vmatpush1.msra.mxu0 %v3754
        %4214 = vmatprep.subr.mxu0 0.0
        %4215 = vmatpush1.msra.mxu0 %v3753
        %4216 = vmatprep.subr.mxu0 0.0
        %4217 = vmatpush1.msra.mxu0 %v3752
        %4218 = vmatprep.subr.mxu0 0.0
        %4219 = vmatpush1.msra.mxu0 %v3751
        %4220 = vmatprep.subr.mxu0 0.0
        %4221 = vmatpush1.msra.mxu0 %v3750
        %4222 = vmatprep.subr.mxu0 0.0
        %4223 = vmatpush1.msra.mxu0 %v3749
        %4224 = vmatprep.subr.mxu0 0.0
        %4225 = vmatpush1.msra.mxu0 %v3748
        %4226 = vmatprep.subr.mxu0 0.0
        %4227 = vmatpush1.msra.mxu0 %v3747
        %4228 = vmatprep.subr.mxu0 0.0
        %4229 = vmatpush1.msra.mxu0 %v3746
        %4230 = vmatprep.subr.mxu0 0.0
        %4231 = vmatpush1.msra.mxu0 %v3745
        %4232 = vmatprep.subr.mxu0 0.0
        %4233 = vmatpush1.msra.mxu0 %v3744
        %4234 = vmatprep.subr.mxu0 0.0
        %4235 = vmatpush1.msra.mxu0 %v3743
        %4236 = vmatprep.subr.mxu0 0.0
        %4237 = vmatpush1.msra.mxu0 %v3742
        %4238 = vmatprep.subr.mxu0 0.0
        %4239 = vmatpush1.msra.mxu0 %v3741
        %4240 = vmatprep.subr.mxu0 0.0
        %4241 = vmatpush2.msra.mxu0 %v3772
        %4242 = vmatprep.subr.mxu0 0.0
        %4243 = vmatpush2.msra.mxu0 %v3771
        %4244 = vmatprep.subr.mxu0 0.0
        %4245 = vmatpush2.msra.mxu0 %v3770
        %4246 = vmatprep.subr.mxu0 0.0
        %4247 = vmatpush2.msra.mxu0 %v3769
        %4248 = vmatprep.subr.mxu0 0.0
        %4249 = vmatpush2.msra.mxu0 %v3768
        %4250 = vmatprep.subr.mxu0 0.0
        %4251 = vmatpush2.msra.mxu0 %v3767
        %4252 = vmatprep.subr.mxu0 0.0
        %4253 = vmatpush2.msra.mxu0 %v3766
        %4254 = vmatprep.subr.mxu0 0.0
        %4255 = vmatpush2.msra.mxu0 %v3765
        %4256 = vmatprep.subr.mxu0 0.0
        %4257 = vmatpush2.msra.mxu0 %v3764
        %4258 = vmatprep.subr.mxu0 0.0
        %4259 = vmatpush2.msra.mxu0 %v3763
        %4260 = vmatprep.subr.mxu0 0.0
        %4261 = vmatpush2.msra.mxu0 %v3762
        %4262 = vmatprep.subr.mxu0 0.0
        %4263 = vmatpush2.msra.mxu0 %v3761
        %4264 = vmatprep.subr.mxu0 0.0
        %4265 = vmatpush2.msra.mxu0 %v3760
        %4266 = vmatprep.subr.mxu0 0.0
        %4267 = vmatpush2.msra.mxu0 %v3759
        %4268 = vmatprep.subr.mxu0 0.0
        %4269 = vmatpush2.msra.mxu0 %v3758
        %4270 = vmatprep.subr.mxu0 0.0
        %4271 = vmatpush2.msra.mxu0 %v3757
        %4272 = vmatprep.mubr.f32.mxu0 %v3471
        %4273 = vmatmul.mubr.f32.gmra.mxu0 %v3470
        %v4274 = vpop.f32.mrf.mxu0
        %v4275 = vadd.f32 0.0, %v4274
        %v4276 = vpop.f32.mrf.mxu0
        %4277 = vmatprep.mubr.f32.mxu0 %v3474
        %4278 = vmatmul.mubr.f32.gmra.mxu0 %v3473
        %v4279 = vpop.f32.mrf.mxu0
        %v4280 = vadd.f32 0.0, %v4279
        %v4281 = vpop.f32.mrf.mxu0
        %4282 = vmatprep.mubr.f32.mxu0 %v3477
        %4283 = vmatmul.mubr.f32.gmra.mxu0 %v3476
        %v4284 = vpop.f32.mrf.mxu0
        %v4285 = vadd.f32 0.0, %v4284
        %v4286 = vpop.f32.mrf.mxu0
        %4287 = vmatprep.mubr.f32.mxu0 %v3480
        %4288 = vmatmul.mubr.f32.gmra.mxu0 %v3479
        %v4289 = vpop.f32.mrf.mxu0
        %v4290 = vadd.f32 0.0, %v4289
        %v4291 = vpop.f32.mrf.mxu0
        %4292 = vmatprep.mubr.f32.mxu0 %v3483
        %4293 = vmatmul.mubr.f32.gmra.mxu0 %v3482
        %v4294 = vpop.f32.mrf.mxu0
        %v4295 = vadd.f32 0.0, %v4294
        %v4296 = vpop.f32.mrf.mxu0
        %4297 = vmatprep.mubr.f32.mxu0 %v3486
        %4298 = vmatmul.mubr.f32.gmra.mxu0 %v3485
        %v4299 = vpop.f32.mrf.mxu0
        %v4300 = vadd.f32 0.0, %v4299
        %v4301 = vpop.f32.mrf.mxu0
        %4302 = vmatprep.mubr.f32.mxu0 %v3489
        %4303 = vmatmul.mubr.f32.gmra.mxu0 %v3488
        %v4304 = vpop.f32.mrf.mxu0
        %v4305 = vadd.f32 0.0, %v4304
        %v4306 = vpop.f32.mrf.mxu0
        %4307 = vmatprep.mubr.f32.mxu0 %v3492
        %4308 = vmatmul.mubr.f32.gmra.mxu0 %v3491
        %v4309 = vpop.f32.mrf.mxu0
        %v4310 = vadd.f32 0.0, %v4309
        %v4311 = vpop.f32.mrf.mxu0
        %4312 = vmatprep.mubr.f32.mxu0 %v3495
        %4313 = vmatmul.mubr.f32.gmra.mxu0 %v3494
        %v4314 = vpop.f32.mrf.mxu0
        %v4315 = vadd.f32 0.0, %v4314
        %v4316 = vpop.f32.mrf.mxu0
        %4317 = vmatprep.mubr.f32.mxu0 %v3498
        %4318 = vmatmul.mubr.f32.gmra.mxu0 %v3497
        %v4319 = vpop.f32.mrf.mxu0
        %v4320 = vadd.f32 0.0, %v4319
        %v4321 = vpop.f32.mrf.mxu0
        %4322 = vmatprep.mubr.f32.mxu0 %v3501
        %4323 = vmatmul.mubr.f32.gmra.mxu0 %v3500
        %v4324 = vpop.f32.mrf.mxu0
        %v4325 = vadd.f32 0.0, %v4324
        %v4326 = vpop.f32.mrf.mxu0
        %4327 = vmatprep.mubr.f32.mxu0 %v3504
        %4328 = vmatmul.mubr.f32.gmra.mxu0 %v3503
        %v4329 = vpop.f32.mrf.mxu0
        %v4330 = vadd.f32 0.0, %v4329
        %v4331 = vpop.f32.mrf.mxu0
        %4332 = vmatprep.mubr.f32.mxu0 %v3507
        %4333 = vmatmul.mubr.f32.gmra.mxu0 %v3506
        %v4334 = vpop.f32.mrf.mxu0
        %v4335 = vadd.f32 0.0, %v4334
        %v4336 = vpop.f32.mrf.mxu0
        %4337 = vmatprep.mubr.f32.mxu0 %v3510
        %4338 = vmatmul.mubr.f32.gmra.mxu0 %v3509
        %v4339 = vpop.f32.mrf.mxu0
        %v4340 = vadd.f32 0.0, %v4339
        %v4341 = vpop.f32.mrf.mxu0
        %4342 = vmatprep.mubr.f32.mxu0 %v3513
        %4343 = vmatmul.mubr.f32.gmra.mxu0 %v3512
        %v4344 = vpop.f32.mrf.mxu0
        %v4345 = vadd.f32 0.0, %v4344
        %v4346 = vpop.f32.mrf.mxu0
        %4347 = vmatprep.mubr.f32.mxu0 %v3516
        %4348 = vmatmul.mubr.f32.gmra.mxu0 %v3515
        %v4349 = vpop.f32.mrf.mxu0
        %v4350 = vadd.f32 0.0, %v4349
        %v4351 = vpop.f32.mrf.mxu0
        %4352 = vdwg.mxu0
        %4353 = vst.msk [vmem:[%s540] sm:$0xff] %vm824, %v3840
        %4354 = vst.msk [vmem:[%s540 + $0x8] sm:$0xff] %vm824, %v3845
        %4355 = vst.msk [vmem:[%s540 + $0x10] sm:$0xff] %vm824, %v3850
        %4356 = vst.msk [vmem:[%s540 + $0x18] sm:$0xff] %vm824, %v3855
        %4357 = vst.msk [vmem:[%s540 + $0x20] sm:$0xff] %vm824, %v3860
        %4358 = vst.msk [vmem:[%s540 + $0x28] sm:$0xff] %vm824, %v3865
        %4359 = vst.msk [vmem:[%s540 + $0x30] sm:$0xff] %vm824, %v3870
        %4360 = vst.msk [vmem:[%s540 + $0x38] sm:$0xff] %vm824, %v3875
        %4361 = vst.msk [vmem:[%s540 + $0x40] sm:$0xff] %vm824, %v3880
        %4362 = vst.msk [vmem:[%s540 + $0x48] sm:$0xff] %vm824, %v3885
        %4363 = vst.msk [vmem:[%s540 + $0x50] sm:$0xff] %vm824, %v3890
        %4364 = vst.msk [vmem:[%s540 + $0x58] sm:$0xff] %vm824, %v3895
        %4365 = vst.msk [vmem:[%s540 + $0x60] sm:$0xff] %vm824, %v3900
        %4366 = vst.msk [vmem:[%s540 + $0x68] sm:$0xff] %vm824, %v3905
        %4367 = vst.msk [vmem:[%s540 + $0x70] sm:$0xff] %vm824, %v3910
        %4368 = vst.msk [vmem:[%s540 + $0x78] sm:$0xff] %vm824, %v3915
        %4369 = vst.msk [vmem:[%s540 + $0x80] sm:$0xff] %vm824, %v3985
        %4370 = vst.msk [vmem:[%s540 + $0x88] sm:$0xff] %vm824, %v3990
        %4371 = vst.msk [vmem:[%s540 + $0x90] sm:$0xff] %vm824, %v3995
        %4372 = vst.msk [vmem:[%s540 + $0x98] sm:$0xff] %vm824, %v4000
        %4373 = vst.msk [vmem:[%s540 + $0xa0] sm:$0xff] %vm824, %v4005
        %4374 = vst.msk [vmem:[%s540 + $0xa8] sm:$0xff] %vm824, %v4010
        %4375 = vst.msk [vmem:[%s540 + $0xb0] sm:$0xff] %vm824, %v4015
        %4376 = vst.msk [vmem:[%s540 + $0xb8] sm:$0xff] %vm824, %v4020
        %4377 = vst.msk [vmem:[%s540 + $0xc0] sm:$0xff] %vm824, %v4025
        %4378 = vst.msk [vmem:[%s540 + $0xc8] sm:$0xff] %vm824, %v4030
        %4379 = vst.msk [vmem:[%s540 + $0xd0] sm:$0xff] %vm824, %v4035
        %4380 = vst.msk [vmem:[%s540 + $0xd8] sm:$0xff] %vm824, %v4040
        %4381 = vst.msk [vmem:[%s540 + $0xe0] sm:$0xff] %vm824, %v4045
        %4382 = vst.msk [vmem:[%s540 + $0xe8] sm:$0xff] %vm824, %v4050
        %4383 = vst.msk [vmem:[%s540 + $0xf0] sm:$0xff] %vm824, %v4055
        %4384 = vst.msk [vmem:[%s540 + $0xf8] sm:$0xff] %vm824, %v4060
        %4385 = vst.msk [vmem:[%s540 + $0x100] sm:$0xff] %vm824, %v4130
        %4386 = vst.msk [vmem:[%s540 + $0x108] sm:$0xff] %vm824, %v4135
        %4387 = vst.msk [vmem:[%s540 + $0x110] sm:$0xff] %vm824, %v4140
        %4388 = vst.msk [vmem:[%s540 + $0x118] sm:$0xff] %vm824, %v4145
        %4389 = vst.msk [vmem:[%s540 + $0x120] sm:$0xff] %vm824, %v4150
        %4390 = vst.msk [vmem:[%s540 + $0x128] sm:$0xff] %vm824, %v4155
        %4391 = vst.msk [vmem:[%s540 + $0x130] sm:$0xff] %vm824, %v4160
        %4392 = vst.msk [vmem:[%s540 + $0x138] sm:$0xff] %vm824, %v4165
        %4393 = vst.msk [vmem:[%s540 + $0x140] sm:$0xff] %vm824, %v4170
        %4394 = vst.msk [vmem:[%s540 + $0x148] sm:$0xff] %vm824, %v4175
        %4395 = vst.msk [vmem:[%s540 + $0x150] sm:$0xff] %vm824, %v4180
        %4396 = vst.msk [vmem:[%s540 + $0x158] sm:$0xff] %vm824, %v4185
        %4397 = vst.msk [vmem:[%s540 + $0x160] sm:$0xff] %vm824, %v4190
        %4398 = vst.msk [vmem:[%s540 + $0x168] sm:$0xff] %vm824, %v4195
        %4399 = vst.msk [vmem:[%s540 + $0x170] sm:$0xff] %vm824, %v4200
        %4400 = vst.msk [vmem:[%s540 + $0x178] sm:$0xff] %vm824, %v4205
        %4401 = vst.msk [vmem:[%s540 + $0x180] sm:$0xff] %vm824, %v4275
        %4402 = vst.msk [vmem:[%s540 + $0x188] sm:$0xff] %vm824, %v4280
        %4403 = vst.msk [vmem:[%s540 + $0x190] sm:$0xff] %vm824, %v4285
        %4404 = vst.msk [vmem:[%s540 + $0x198] sm:$0xff] %vm824, %v4290
        %4405 = vst.msk [vmem:[%s540 + $0x1a0] sm:$0xff] %vm824, %v4295
        %4406 = vst.msk [vmem:[%s540 + $0x1a8] sm:$0xff] %vm824, %v4300
        %4407 = vst.msk [vmem:[%s540 + $0x1b0] sm:$0xff] %vm824, %v4305
        %4408 = vst.msk [vmem:[%s540 + $0x1b8] sm:$0xff] %vm824, %v4310
        %4409 = vst.msk [vmem:[%s540 + $0x1c0] sm:$0xff] %vm824, %v4315
        %4410 = vst.msk [vmem:[%s540 + $0x1c8] sm:$0xff] %vm824, %v4320
        %4411 = vst.msk [vmem:[%s540 + $0x1d0] sm:$0xff] %vm824, %v4325
        %4412 = vst.msk [vmem:[%s540 + $0x1d8] sm:$0xff] %vm824, %v4330
        %4413 = vst.msk [vmem:[%s540 + $0x1e0] sm:$0xff] %vm824, %v4335
        %4414 = vst.msk [vmem:[%s540 + $0x1e8] sm:$0xff] %vm824, %v4340
        %4415 = vst.msk [vmem:[%s540 + $0x1f0] sm:$0xff] %vm824, %v4345
        %4416 = vst.msk [vmem:[%s540 + $0x1f8] sm:$0xff] %vm824, %v4350
        %s4417 = sand.u32 %s121, 1
        %s4418 = sand.u32 %s121, 1
        %s4419 = smul.addr %s4418, 512
        %s4420 = scalar_lea.vmem [#allocation4], %s4419
        %s4421 = sand.u32 %s149, 1
        %s4422 = scalar_lea.sflag [#allocation6], %s4421
        %s4423 = sand.u32 %s149, 1
        %s4424 = smul.addr %s4423, 1024
        %s4425 = scalar_lea.vmem [#allocation5], %s4424
        // Predicated region
        $region71: #{tpu_custom_call.1} parent=65 // pred_check
          %p4426 = pneg %p131
        $region72: #{tpu_custom_call.1} parent=65 // pred_check_branch
          %4428 = sbr.rel (%p4426) target = $region74
        $region73: #{tpu_custom_call.1} parent=65 // pred_region
          %s4429 = smul.u32 4, %s23
          %s4430 = smul.u32 16, %s24
          %s4431 = smul.addr %s4429, 32
          %s4432 = sadd.s32 %s4430, %s4431
          %s4433 = smul.addr %s4432, 8
          %s4434 = scalar_lea.vmem %s3, %s4433
          // Predicated region
          $region75: #{tpu_custom_call.1} parent=73 // pred_check
            _
          $region76: #{tpu_custom_call.1} parent=73 // pred_check_branch
            %4436 = sbr.rel (0) target = $region78
          $region77: #{tpu_custom_call.1} parent=73 // pred_region
            // Predicated region
            $region79: #{tpu_custom_call.1} parent=77 // pred_check
              _
            $region80: #{tpu_custom_call.1} parent=77 // pred_check_branch
              %4438 = sbr.rel (0) target = $region82
            $region81: #{tpu_custom_call.1} parent=77 // pred_region
              // Predicated region
              $region94: #{tpu_custom_call.1} parent=81 // pred_check
                _
              $region95: #{tpu_custom_call.1} parent=81 // pred_check_branch
                %4580 = sbr.rel (0) target = $region97
              $region96: #{tpu_custom_call.1} parent=81 // pred_region
                loop: start=0, step=1, limit=1
                $region98: #{tpu_custom_call.1} parent=96 // loop_pre_header
                  _
                $region99: #{tpu_custom_call.1} parent=96 // loop_header
                  %s4582 = sphi 0, %s4586
                  %p4583 = scmp.ge.s32.totalorder %s4582, 1
                  %s4587 = sphi %s4420, %s4420
                  %s4588 = sphi %s4434, %s4434
                $region100: #{tpu_custom_call.1} parent=96 // loop_header_branch
                  %4585 = sbr.rel (%p4583) target = $region104
                $region101: #{tpu_custom_call.1} parent=96 // loop_body
                  %v4589 = vld [vmem:[%s4587] sm:$0xff]
                  %4590 = vst [vmem:[%s4588] sm:$0xff] %v4589
                  %v4591 = vld [vmem:[%s4587 + $0x8] sm:$0xff]
                  %4592 = vst [vmem:[%s4588 + $0x8] sm:$0xff] %v4591
                  %v4593 = vld [vmem:[%s4587 + $0x10] sm:$0xff]
                  %4594 = vst [vmem:[%s4588 + $0x10] sm:$0xff] %v4593
                  %v4595 = vld [vmem:[%s4587 + $0x18] sm:$0xff]
                  %4596 = vst [vmem:[%s4588 + $0x18] sm:$0xff] %v4595
                  %v4597 = vld [vmem:[%s4587 + $0x20] sm:$0xff]
                  %4598 = vst [vmem:[%s4588 + $0x20] sm:$0xff] %v4597
                  %v4599 = vld [vmem:[%s4587 + $0x28] sm:$0xff]
                  %4600 = vst [vmem:[%s4588 + $0x28] sm:$0xff] %v4599
                  %v4601 = vld [vmem:[%s4587 + $0x30] sm:$0xff]
                  %4602 = vst [vmem:[%s4588 + $0x30] sm:$0xff] %v4601
                  %v4603 = vld [vmem:[%s4587 + $0x38] sm:$0xff]
                  %4604 = vst [vmem:[%s4588 + $0x38] sm:$0xff] %v4603
                  %v4605 = vld [vmem:[%s4587 + $0x40] sm:$0xff]
                  %4606 = vst [vmem:[%s4588 + $0x40] sm:$0xff] %v4605
                  %v4607 = vld [vmem:[%s4587 + $0x48] sm:$0xff]
                  %4608 = vst [vmem:[%s4588 + $0x48] sm:$0xff] %v4607
                  %v4609 = vld [vmem:[%s4587 + $0x50] sm:$0xff]
                  %4610 = vst [vmem:[%s4588 + $0x50] sm:$0xff] %v4609
                  %v4611 = vld [vmem:[%s4587 + $0x58] sm:$0xff]
                  %4612 = vst [vmem:[%s4588 + $0x58] sm:$0xff] %v4611
                  %v4613 = vld [vmem:[%s4587 + $0x60] sm:$0xff]
                  %4614 = vst [vmem:[%s4588 + $0x60] sm:$0xff] %v4613
                  %v4615 = vld [vmem:[%s4587 + $0x68] sm:$0xff]
                  %4616 = vst [vmem:[%s4588 + $0x68] sm:$0xff] %v4615
                  %v4617 = vld [vmem:[%s4587 + $0x70] sm:$0xff]
                  %4618 = vst [vmem:[%s4588 + $0x70] sm:$0xff] %v4617
                  %v4619 = vld [vmem:[%s4587 + $0x78] sm:$0xff]
                  %4620 = vst [vmem:[%s4588 + $0x78] sm:$0xff] %v4619
                  %v4621 = vld [vmem:[%s4587 + $0x80] sm:$0xff]
                  %4622 = vst [vmem:[%s4588 + $0x100] sm:$0xff] %v4621
                  %v4623 = vld [vmem:[%s4587 + $0x88] sm:$0xff]
                  %4624 = vst [vmem:[%s4588 + $0x108] sm:$0xff] %v4623
                  %v4625 = vld [vmem:[%s4587 + $0x90] sm:$0xff]
                  %4626 = vst [vmem:[%s4588 + $0x110] sm:$0xff] %v4625
                  %v4627 = vld [vmem:[%s4587 + $0x98] sm:$0xff]
                  %4628 = vst [vmem:[%s4588 + $0x118] sm:$0xff] %v4627
                  %v4629 = vld [vmem:[%s4587 + $0xa0] sm:$0xff]
                  %4630 = vst [vmem:[%s4588 + $0x120] sm:$0xff] %v4629
                  %v4631 = vld [vmem:[%s4587 + $0xa8] sm:$0xff]
                  %4632 = vst [vmem:[%s4588 + $0x128] sm:$0xff] %v4631
                  %v4633 = vld [vmem:[%s4587 + $0xb0] sm:$0xff]
                  %4634 = vst [vmem:[%s4588 + $0x130] sm:$0xff] %v4633
                  %v4635 = vld [vmem:[%s4587 + $0xb8] sm:$0xff]
                  %4636 = vst [vmem:[%s4588 + $0x138] sm:$0xff] %v4635
                  %v4637 = vld [vmem:[%s4587 + $0xc0] sm:$0xff]
                  %4638 = vst [vmem:[%s4588 + $0x140] sm:$0xff] %v4637
                  %v4639 = vld [vmem:[%s4587 + $0xc8] sm:$0xff]
                  %4640 = vst [vmem:[%s4588 + $0x148] sm:$0xff] %v4639
                  %v4641 = vld [vmem:[%s4587 + $0xd0] sm:$0xff]
                  %4642 = vst [vmem:[%s4588 + $0x150] sm:$0xff] %v4641
                  %v4643 = vld [vmem:[%s4587 + $0xd8] sm:$0xff]
                  %4644 = vst [vmem:[%s4588 + $0x158] sm:$0xff] %v4643
                  %v4645 = vld [vmem:[%s4587 + $0xe0] sm:$0xff]
                  %4646 = vst [vmem:[%s4588 + $0x160] sm:$0xff] %v4645
                  %v4647 = vld [vmem:[%s4587 + $0xe8] sm:$0xff]
                  %4648 = vst [vmem:[%s4588 + $0x168] sm:$0xff] %v4647
                  %v4649 = vld [vmem:[%s4587 + $0xf0] sm:$0xff]
                  %4650 = vst [vmem:[%s4588 + $0x170] sm:$0xff] %v4649
                  %v4651 = vld [vmem:[%s4587 + $0xf8] sm:$0xff]
                  %4652 = vst [vmem:[%s4588 + $0x178] sm:$0xff] %v4651
                  %v4653 = vld [vmem:[%s4587 + $0x100] sm:$0xff]
                  %4654 = vst [vmem:[%s4588 + $0x200] sm:$0xff] %v4653
                  %v4655 = vld [vmem:[%s4587 + $0x108] sm:$0xff]
                  %4656 = vst [vmem:[%s4588 + $0x208] sm:$0xff] %v4655
                  %v4657 = vld [vmem:[%s4587 + $0x110] sm:$0xff]
                  %4658 = vst [vmem:[%s4588 + $0x210] sm:$0xff] %v4657
                  %v4659 = vld [vmem:[%s4587 + $0x118] sm:$0xff]
                  %4660 = vst [vmem:[%s4588 + $0x218] sm:$0xff] %v4659
                  %v4661 = vld [vmem:[%s4587 + $0x120] sm:$0xff]
                  %4662 = vst [vmem:[%s4588 + $0x220] sm:$0xff] %v4661
                  %v4663 = vld [vmem:[%s4587 + $0x128] sm:$0xff]
                  %4664 = vst [vmem:[%s4588 + $0x228] sm:$0xff] %v4663
                  %v4665 = vld [vmem:[%s4587 + $0x130] sm:$0xff]
                  %4666 = vst [vmem:[%s4588 + $0x230] sm:$0xff] %v4665
                  %v4667 = vld [vmem:[%s4587 + $0x138] sm:$0xff]
                  %4668 = vst [vmem:[%s4588 + $0x238] sm:$0xff] %v4667
                  %v4669 = vld [vmem:[%s4587 + $0x140] sm:$0xff]
                  %4670 = vst [vmem:[%s4588 + $0x240] sm:$0xff] %v4669
                  %v4671 = vld [vmem:[%s4587 + $0x148] sm:$0xff]
                  %4672 = vst [vmem:[%s4588 + $0x248] sm:$0xff] %v4671
                  %v4673 = vld [vmem:[%s4587 + $0x150] sm:$0xff]
                  %4674 = vst [vmem:[%s4588 + $0x250] sm:$0xff] %v4673
                  %v4675 = vld [vmem:[%s4587 + $0x158] sm:$0xff]
                  %4676 = vst [vmem:[%s4588 + $0x258] sm:$0xff] %v4675
                  %v4677 = vld [vmem:[%s4587 + $0x160] sm:$0xff]
                  %4678 = vst [vmem:[%s4588 + $0x260] sm:$0xff] %v4677
                  %v4679 = vld [vmem:[%s4587 + $0x168] sm:$0xff]
                  %4680 = vst [vmem:[%s4588 + $0x268] sm:$0xff] %v4679
                  %v4681 = vld [vmem:[%s4587 + $0x170] sm:$0xff]
                  %4682 = vst [vmem:[%s4588 + $0x270] sm:$0xff] %v4681
                  %v4683 = vld [vmem:[%s4587 + $0x178] sm:$0xff]
                  %4684 = vst [vmem:[%s4588 + $0x278] sm:$0xff] %v4683
                  %v4685 = vld [vmem:[%s4587 + $0x180] sm:$0xff]
                  %4686 = vst [vmem:[%s4588 + $0x300] sm:$0xff] %v4685
                  %v4687 = vld [vmem:[%s4587 + $0x188] sm:$0xff]
                  %4688 = vst [vmem:[%s4588 + $0x308] sm:$0xff] %v4687
                  %v4689 = vld [vmem:[%s4587 + $0x190] sm:$0xff]
                  %4690 = vst [vmem:[%s4588 + $0x310] sm:$0xff] %v4689
                  %v4691 = vld [vmem:[%s4587 + $0x198] sm:$0xff]
                  %4692 = vst [vmem:[%s4588 + $0x318] sm:$0xff] %v4691
                  %v4693 = vld [vmem:[%s4587 + $0x1a0] sm:$0xff]
                  %4694 = vst [vmem:[%s4588 + $0x320] sm:$0xff] %v4693
                  %v4695 = vld [vmem:[%s4587 + $0x1a8] sm:$0xff]
                  %4696 = vst [vmem:[%s4588 + $0x328] sm:$0xff] %v4695
                  %v4697 = vld [vmem:[%s4587 + $0x1b0] sm:$0xff]
                  %4698 = vst [vmem:[%s4588 + $0x330] sm:$0xff] %v4697
                  %v4699 = vld [vmem:[%s4587 + $0x1b8] sm:$0xff]
                  %4700 = vst [vmem:[%s4588 + $0x338] sm:$0xff] %v4699
                  %v4701 = vld [vmem:[%s4587 + $0x1c0] sm:$0xff]
                  %4702 = vst [vmem:[%s4588 + $0x340] sm:$0xff] %v4701
                  %v4703 = vld [vmem:[%s4587 + $0x1c8] sm:$0xff]
                  %4704 = vst [vmem:[%s4588 + $0x348] sm:$0xff] %v4703
                  %v4705 = vld [vmem:[%s4587 + $0x1d0] sm:$0xff]
                  %4706 = vst [vmem:[%s4588 + $0x350] sm:$0xff] %v4705
                  %v4707 = vld [vmem:[%s4587 + $0x1d8] sm:$0xff]
                  %4708 = vst [vmem:[%s4588 + $0x358] sm:$0xff] %v4707
                  %v4709 = vld [vmem:[%s4587 + $0x1e0] sm:$0xff]
                  %4710 = vst [vmem:[%s4588 + $0x360] sm:$0xff] %v4709
                  %v4711 = vld [vmem:[%s4587 + $0x1e8] sm:$0xff]
                  %4712 = vst [vmem:[%s4588 + $0x368] sm:$0xff] %v4711
                  %v4713 = vld [vmem:[%s4587 + $0x1f0] sm:$0xff]
                  %4714 = vst [vmem:[%s4588 + $0x370] sm:$0xff] %v4713
                  %v4715 = vld [vmem:[%s4587 + $0x1f8] sm:$0xff]
                  %4716 = vst [vmem:[%s4588 + $0x378] sm:$0xff] %v4715
                $region102: #{tpu_custom_call.1} parent=96 // loop_footer
                  %s4586 = sadd.s32 1, %s4582
                $region103: #{tpu_custom_call.1} parent=96 // loop_footer_branch
                  %4581 = sbr.rel target = $region99
                $region104: #{tpu_custom_call.1} parent=96 // loop_exit
                  _
              $region97: #{tpu_custom_call.1} parent=81 // pred_fallthru
                _
              // Predicated region
              $region105: #{tpu_custom_call.1} parent=81 // pred_check
                _
              $region106: #{tpu_custom_call.1} parent=81 // pred_check_branch
                %4718 = sbr.rel target = $region108
              $region107: #{tpu_custom_call.1} parent=81 // pred_region
                _
              $region108: #{tpu_custom_call.1} parent=81 // pred_fallthru
                _
            $region82: #{tpu_custom_call.1} parent=77 // pred_fallthru
              _
            // Predicated region
            $region83: #{tpu_custom_call.1} parent=77 // pred_check
              _
            $region84: #{tpu_custom_call.1} parent=77 // pred_check_branch
              %4440 = sbr.rel target = $region86
            $region85: #{tpu_custom_call.1} parent=77 // pred_region
              %s4442 = ssub.s32 256, 1
              loop: start=0, step=1, limit=1
              $region87: #{tpu_custom_call.1} parent=85 // loop_pre_header
                _
              $region88: #{tpu_custom_call.1} parent=85 // loop_header
                %s4444 = sphi 0, %s4448
                %p4445 = scmp.ge.s32.totalorder %s4444, 1
                %s4449 = sphi %s4420, %s4420
                %s4450 = sphi %s4434, %s4434
              $region89: #{tpu_custom_call.1} parent=85 // loop_header_branch
                %4447 = sbr.rel (%p4445) target = $region93
              $region90: #{tpu_custom_call.1} parent=85 // loop_body
                %v4451 = vld [vmem:[%s4449] sm:%s4442]
                %4452 = vst [vmem:[%s4450] sm:%s4442] %v4451
                %v4453 = vld [vmem:[%s4449 + $0x8] sm:%s4442]
                %4454 = vst [vmem:[%s4450 + $0x8] sm:%s4442] %v4453
                %v4455 = vld [vmem:[%s4449 + $0x10] sm:%s4442]
                %4456 = vst [vmem:[%s4450 + $0x10] sm:%s4442] %v4455
                %v4457 = vld [vmem:[%s4449 + $0x18] sm:%s4442]
                %4458 = vst [vmem:[%s4450 + $0x18] sm:%s4442] %v4457
                %v4459 = vld [vmem:[%s4449 + $0x20] sm:%s4442]
                %4460 = vst [vmem:[%s4450 + $0x20] sm:%s4442] %v4459
                %v4461 = vld [vmem:[%s4449 + $0x28] sm:%s4442]
                %4462 = vst [vmem:[%s4450 + $0x28] sm:%s4442] %v4461
                %v4463 = vld [vmem:[%s4449 + $0x30] sm:%s4442]
                %4464 = vst [vmem:[%s4450 + $0x30] sm:%s4442] %v4463
                %v4465 = vld [vmem:[%s4449 + $0x38] sm:%s4442]
                %4466 = vst [vmem:[%s4450 + $0x38] sm:%s4442] %v4465
                %v4467 = vld [vmem:[%s4449 + $0x40] sm:%s4442]
                %4468 = vst [vmem:[%s4450 + $0x40] sm:%s4442] %v4467
                %v4469 = vld [vmem:[%s4449 + $0x48] sm:%s4442]
                %4470 = vst [vmem:[%s4450 + $0x48] sm:%s4442] %v4469
                %v4471 = vld [vmem:[%s4449 + $0x50] sm:%s4442]
                %4472 = vst [vmem:[%s4450 + $0x50] sm:%s4442] %v4471
                %v4473 = vld [vmem:[%s4449 + $0x58] sm:%s4442]
                %4474 = vst [vmem:[%s4450 + $0x58] sm:%s4442] %v4473
                %v4475 = vld [vmem:[%s4449 + $0x60] sm:%s4442]
                %4476 = vst [vmem:[%s4450 + $0x60] sm:%s4442] %v4475
                %v4477 = vld [vmem:[%s4449 + $0x68] sm:%s4442]
                %4478 = vst [vmem:[%s4450 + $0x68] sm:%s4442] %v4477
                %v4479 = vld [vmem:[%s4449 + $0x70] sm:%s4442]
                %4480 = vst [vmem:[%s4450 + $0x70] sm:%s4442] %v4479
                %v4481 = vld [vmem:[%s4449 + $0x78] sm:%s4442]
                %4482 = vst [vmem:[%s4450 + $0x78] sm:%s4442] %v4481
                %v4483 = vld [vmem:[%s4449 + $0x80] sm:%s4442]
                %4484 = vst [vmem:[%s4450 + $0x100] sm:%s4442] %v4483
                %v4485 = vld [vmem:[%s4449 + $0x88] sm:%s4442]
                %4486 = vst [vmem:[%s4450 + $0x108] sm:%s4442] %v4485
                %v4487 = vld [vmem:[%s4449 + $0x90] sm:%s4442]
                %4488 = vst [vmem:[%s4450 + $0x110] sm:%s4442] %v4487
                %v4489 = vld [vmem:[%s4449 + $0x98] sm:%s4442]
                %4490 = vst [vmem:[%s4450 + $0x118] sm:%s4442] %v4489
                %v4491 = vld [vmem:[%s4449 + $0xa0] sm:%s4442]
                %4492 = vst [vmem:[%s4450 + $0x120] sm:%s4442] %v4491
                %v4493 = vld [vmem:[%s4449 + $0xa8] sm:%s4442]
                %4494 = vst [vmem:[%s4450 + $0x128] sm:%s4442] %v4493
                %v4495 = vld [vmem:[%s4449 + $0xb0] sm:%s4442]
                %4496 = vst [vmem:[%s4450 + $0x130] sm:%s4442] %v4495
                %v4497 = vld [vmem:[%s4449 + $0xb8] sm:%s4442]
                %4498 = vst [vmem:[%s4450 + $0x138] sm:%s4442] %v4497
                %v4499 = vld [vmem:[%s4449 + $0xc0] sm:%s4442]
                %4500 = vst [vmem:[%s4450 + $0x140] sm:%s4442] %v4499
                %v4501 = vld [vmem:[%s4449 + $0xc8] sm:%s4442]
                %4502 = vst [vmem:[%s4450 + $0x148] sm:%s4442] %v4501
                %v4503 = vld [vmem:[%s4449 + $0xd0] sm:%s4442]
                %4504 = vst [vmem:[%s4450 + $0x150] sm:%s4442] %v4503
                %v4505 = vld [vmem:[%s4449 + $0xd8] sm:%s4442]
                %4506 = vst [vmem:[%s4450 + $0x158] sm:%s4442] %v4505
                %v4507 = vld [vmem:[%s4449 + $0xe0] sm:%s4442]
                %4508 = vst [vmem:[%s4450 + $0x160] sm:%s4442] %v4507
                %v4509 = vld [vmem:[%s4449 + $0xe8] sm:%s4442]
                %4510 = vst [vmem:[%s4450 + $0x168] sm:%s4442] %v4509
                %v4511 = vld [vmem:[%s4449 + $0xf0] sm:%s4442]
                %4512 = vst [vmem:[%s4450 + $0x170] sm:%s4442] %v4511
                %v4513 = vld [vmem:[%s4449 + $0xf8] sm:%s4442]
                %4514 = vst [vmem:[%s4450 + $0x178] sm:%s4442] %v4513
                %v4515 = vld [vmem:[%s4449 + $0x100] sm:%s4442]
                %4516 = vst [vmem:[%s4450 + $0x200] sm:%s4442] %v4515
                %v4517 = vld [vmem:[%s4449 + $0x108] sm:%s4442]
                %4518 = vst [vmem:[%s4450 + $0x208] sm:%s4442] %v4517
                %v4519 = vld [vmem:[%s4449 + $0x110] sm:%s4442]
                %4520 = vst [vmem:[%s4450 + $0x210] sm:%s4442] %v4519
                %v4521 = vld [vmem:[%s4449 + $0x118] sm:%s4442]
                %4522 = vst [vmem:[%s4450 + $0x218] sm:%s4442] %v4521
                %v4523 = vld [vmem:[%s4449 + $0x120] sm:%s4442]
                %4524 = vst [vmem:[%s4450 + $0x220] sm:%s4442] %v4523
                %v4525 = vld [vmem:[%s4449 + $0x128] sm:%s4442]
                %4526 = vst [vmem:[%s4450 + $0x228] sm:%s4442] %v4525
                %v4527 = vld [vmem:[%s4449 + $0x130] sm:%s4442]
                %4528 = vst [vmem:[%s4450 + $0x230] sm:%s4442] %v4527
                %v4529 = vld [vmem:[%s4449 + $0x138] sm:%s4442]
                %4530 = vst [vmem:[%s4450 + $0x238] sm:%s4442] %v4529
                %v4531 = vld [vmem:[%s4449 + $0x140] sm:%s4442]
                %4532 = vst [vmem:[%s4450 + $0x240] sm:%s4442] %v4531
                %v4533 = vld [vmem:[%s4449 + $0x148] sm:%s4442]
                %4534 = vst [vmem:[%s4450 + $0x248] sm:%s4442] %v4533
                %v4535 = vld [vmem:[%s4449 + $0x150] sm:%s4442]
                %4536 = vst [vmem:[%s4450 + $0x250] sm:%s4442] %v4535
                %v4537 = vld [vmem:[%s4449 + $0x158] sm:%s4442]
                %4538 = vst [vmem:[%s4450 + $0x258] sm:%s4442] %v4537
                %v4539 = vld [vmem:[%s4449 + $0x160] sm:%s4442]
                %4540 = vst [vmem:[%s4450 + $0x260] sm:%s4442] %v4539
                %v4541 = vld [vmem:[%s4449 + $0x168] sm:%s4442]
                %4542 = vst [vmem:[%s4450 + $0x268] sm:%s4442] %v4541
                %v4543 = vld [vmem:[%s4449 + $0x170] sm:%s4442]
                %4544 = vst [vmem:[%s4450 + $0x270] sm:%s4442] %v4543
                %v4545 = vld [vmem:[%s4449 + $0x178] sm:%s4442]
                %4546 = vst [vmem:[%s4450 + $0x278] sm:%s4442] %v4545
                %v4547 = vld [vmem:[%s4449 + $0x180] sm:%s4442]
                %4548 = vst [vmem:[%s4450 + $0x300] sm:%s4442] %v4547
                %v4549 = vld [vmem:[%s4449 + $0x188] sm:%s4442]
                %4550 = vst [vmem:[%s4450 + $0x308] sm:%s4442] %v4549
                %v4551 = vld [vmem:[%s4449 + $0x190] sm:%s4442]
                %4552 = vst [vmem:[%s4450 + $0x310] sm:%s4442] %v4551
                %v4553 = vld [vmem:[%s4449 + $0x198] sm:%s4442]
                %4554 = vst [vmem:[%s4450 + $0x318] sm:%s4442] %v4553
                %v4555 = vld [vmem:[%s4449 + $0x1a0] sm:%s4442]
                %4556 = vst [vmem:[%s4450 + $0x320] sm:%s4442] %v4555
                %v4557 = vld [vmem:[%s4449 + $0x1a8] sm:%s4442]
                %4558 = vst [vmem:[%s4450 + $0x328] sm:%s4442] %v4557
                %v4559 = vld [vmem:[%s4449 + $0x1b0] sm:%s4442]
                %4560 = vst [vmem:[%s4450 + $0x330] sm:%s4442] %v4559
                %v4561 = vld [vmem:[%s4449 + $0x1b8] sm:%s4442]
                %4562 = vst [vmem:[%s4450 + $0x338] sm:%s4442] %v4561
                %v4563 = vld [vmem:[%s4449 + $0x1c0] sm:%s4442]
                %4564 = vst [vmem:[%s4450 + $0x340] sm:%s4442] %v4563
                %v4565 = vld [vmem:[%s4449 + $0x1c8] sm:%s4442]
                %4566 = vst [vmem:[%s4450 + $0x348] sm:%s4442] %v4565
                %v4567 = vld [vmem:[%s4449 + $0x1d0] sm:%s4442]
                %4568 = vst [vmem:[%s4450 + $0x350] sm:%s4442] %v4567
                %v4569 = vld [vmem:[%s4449 + $0x1d8] sm:%s4442]
                %4570 = vst [vmem:[%s4450 + $0x358] sm:%s4442] %v4569
                %v4571 = vld [vmem:[%s4449 + $0x1e0] sm:%s4442]
                %4572 = vst [vmem:[%s4450 + $0x360] sm:%s4442] %v4571
                %v4573 = vld [vmem:[%s4449 + $0x1e8] sm:%s4442]
                %4574 = vst [vmem:[%s4450 + $0x368] sm:%s4442] %v4573
                %v4575 = vld [vmem:[%s4449 + $0x1f0] sm:%s4442]
                %4576 = vst [vmem:[%s4450 + $0x370] sm:%s4442] %v4575
                %v4577 = vld [vmem:[%s4449 + $0x1f8] sm:%s4442]
                %4578 = vst [vmem:[%s4450 + $0x378] sm:%s4442] %v4577
              $region91: #{tpu_custom_call.1} parent=85 // loop_footer
                %s4448 = sadd.s32 1, %s4444
              $region92: #{tpu_custom_call.1} parent=85 // loop_footer_branch
                %4443 = sbr.rel target = $region88
              $region93: #{tpu_custom_call.1} parent=85 // loop_exit
                _
            $region86: #{tpu_custom_call.1} parent=77 // pred_fallthru
              _
          $region78: #{tpu_custom_call.1} parent=73 // pred_fallthru
            _
          %4719 = vnop
        $region74: #{tpu_custom_call.1} parent=65 // pred_fallthru
          _
        // Predicated region
        $region109: #{tpu_custom_call.1} parent=65 // pred_check
          %p4720 = pneg %p159
        $region110: #{tpu_custom_call.1} parent=65 // pred_check_branch
          %4722 = sbr.rel (%p4720) target = $region112
        $region111: #{tpu_custom_call.1} parent=65 // pred_region
          #allocation8 [shape = 'u32[6]{0}', space=smem, size = 0x18, scoped, tag = 'DMA stride descriptor']
          %s4723 = smul.u32 4, %s23
          %s4724 = smul.u32 16, %s24
          %s4726 = ssub.s32 16384, 16384
          %4727 = vsyncadd %s4422, %s4726
          %s4728 = smul.addr %s4724, 2
          %s4729 = smul.addr %s4723, 64
          %s4730 = sadd.s32 %s4728, %s4729
          %s4731 = smul.addr %s4730, 128
          %s4732 = scalar_lea.hbm %s4, %s4731
          %s4734 = sshll.u32 1, 14
          %s4735 = sxor.u32 4294967295, %s4734
          %s4738 = sshll.u32 7, 18
          %s4739 = sxor.u32 4294967295, %s4738
          %s4740 = sand.u32 0, %s4739
          %s4742 = sor.u32 %s4740, 0
          %s4743 = sshll.u32 %s4425, 4
          %s4744 = int_to_ptr.vmem [resolvable:$true] %s4743
          %4750 = sst [smem:[#allocation8]] 4096
          %s4751 = scalar_lea.smem [#allocation8], 1
          %4752 = sst [smem:[%s4751]] 8192
          %s4753 = scalar_lea.smem [#allocation8], 2
          %4754 = sst [smem:[%s4753]] 16
          %s4755 = scalar_lea.smem [#allocation8], 3
          %4756 = sst [smem:[%s4755]] 256
          %s4757 = scalar_lea.smem [#allocation8], 4
          %4758 = sst [smem:[%s4757]] 256
          %s4759 = scalar_lea.smem [#allocation8], 5
          %4760 = sst [smem:[%s4759]] 16
          %4762 = dma.general %s4744, 16384, %s4732, %s4422, 131072, [#allocation8], %s4742, 0
        $region112: #{tpu_custom_call.1} parent=65 // pred_fallthru
          _
      $region66: #{tpu_custom_call.1} parent=5 // pred_fallthru
        _
      %p4763 = scmp.le.s32.totalorder 2, %s14
      // Predicated region
      $region113: #{tpu_custom_call.1} parent=5 // pred_check
        %p4764 = pneg %p4763
      $region114: #{tpu_custom_call.1} parent=5 // pred_check_branch
        %4766 = sbr.rel (%p4764) target = $region116
      $region115: #{tpu_custom_call.1} parent=5 // pred_region
        %s4767 = ssub.s32 %s14, 2
        // Predicated region
        $region117: #{tpu_custom_call.1} parent=115 // pred_check
          %p4768 = pneg %p137
        $region118: #{tpu_custom_call.1} parent=115 // pred_check_branch
          %4770 = sbr.rel (%p4768) target = $region120
        $region119: #{tpu_custom_call.1} parent=115 // pred_region
          %s4771 = sand.u32 %s122, 1
          %s4772 = sand.u32 %s122, 1
          %s4773 = smul.addr %s4772, 512
          %s4774 = scalar_lea.vmem [#allocation4], %s4773
        $region120: #{tpu_custom_call.1} parent=115 // pred_fallthru
          _
        // Predicated region
        $region121: #{tpu_custom_call.1} parent=115 // pred_check
          %p4775 = pneg %p165
        $region122: #{tpu_custom_call.1} parent=115 // pred_check_branch
          %4777 = sbr.rel (%p4775) target = $region124
        $region123: #{tpu_custom_call.1} parent=115 // pred_region
          %s4778 = sand.u32 %s150, 1
          %s4779 = scalar_lea.sflag [#allocation6], %s4778
          %s4780 = sand.u32 %s150, 1
          %s4781 = smul.addr %s4780, 1024
          %s4782 = scalar_lea.vmem [#allocation5], %s4781
          %4783 = dma.done %s4779, 16384
        $region124: #{tpu_custom_call.1} parent=115 // pred_fallthru
          _
      $region116: #{tpu_custom_call.1} parent=5 // pred_fallthru
        _
    $region6: #{tpu_custom_call.1} parent=1 // loop_footer
      %s18 = sadd.s32 1, %s14
    $region7: #{tpu_custom_call.1} parent=1 // loop_footer_branch
      %13 = sbr.rel target = $region3
    $region8: #{tpu_custom_call.1} parent=1 // loop_exit
      _
    %4784 = vsyncpa [#allocation6], 1
    %s4785 = scalar_lea.sflag [#allocation6], 1
    %4786 = vsyncpa %s4785, 1

</llo_original>
